<compile_context>
chip_gen: v6e
topology: v6e:2x2x1
jax: 0.10.0
libtpu: 0.0.40
codegen_flags: <defaults>
</compile_context>

<pallas_src>
import functools

import jax
import jax.numpy as jnp
import numpy as np
from jax.experimental import pallas as pl
from jax.experimental.pallas import tpu as pltpu

_EPS = 1e-5  # nn.InstanceNorm2d default (affine=False, track_running_stats=False)


# ----------------------------------------------------------------------------- kernel


def _write_reflect_pad(pad_ref, x, H, W):
    """Write ReflectionPad2d(1) of x (NB, H, W, C) into pad_ref (NB, H+2, W+2, C)."""
    # interior
    pad_ref[:, 1:H + 1, 1:W + 1, :] = x
    # top / bottom rows (padded row 0 <- x row 1, padded row H+1 <- x row H-2)
    pad_ref[:, 0:1, 1:W + 1, :] = x[:, 1:2]
    pad_ref[:, H + 1:H + 2, 1:W + 1, :] = x[:, H - 2:H - 1]
    # left / right columns (incl. corners): padded col 0 <- padded col 2,
    # padded col W+1 <- padded col W-1
    pad_ref[:, :, 0:1, :] = pad_ref[:, :, 2:3, :]
    pad_ref[:, :, W + 1:W + 2, :] = pad_ref[:, :, W - 1:W, :]


def _conv3x3_instance_norm(pad_ref, w_ref, NB, H, W, C, relu):
    """3x3 'valid' conv (single tap-concatenated matmul) + per-(image,channel) IN."""
    # im2col LHS: (NB*H*W, 9C) built directly from the padded scratch (no separate
    # shifted-copy materialization); K = 9C feeds the 256-wide MXU much better.
    taps = [pad_ref[:, ky:ky + H, kx:kx + W, :]
            for ky in range(3) for kx in range(3)]
    lhs = jnp.concatenate(taps, axis=-1).reshape(NB * H * W, 9 * C)

    acc = jax.lax.dot_general(
        lhs, w_ref[...],
        dimension_numbers=(((1,), (0,)), ((), ())),
        preferred_element_type=jnp.float32).reshape(NB, H, W, C)

    # Two-pass InstanceNorm stats in f32 (mean, then centered sum of squares).
    inv_n = 1.0 / float(H * W)
    mean = jnp.sum(acc, axis=(1, 2), keepdims=True) * inv_n
    centered = acc - mean
    var = jnp.sum(centered * centered, axis=(1, 2), keepdims=True) * inv_n
    y = centered * jax.lax.rsqrt(var + _EPS)
    if relu:
        y = jnp.maximum(y, 0.0)
    return y


def _residual_block_kernel(x_ref, w1_ref, w2_ref, out_ref, pad_ref, *, matmul_dtype):
    NB, H, W, C = out_ref.shape

    # pad1 -> conv1 -> IN -> ReLU   (pad scratch holds matmul_dtype operands)
    _write_reflect_pad(pad_ref, x_ref[...].astype(matmul_dtype), H, W)
    y1 = _conv3x3_instance_norm(pad_ref, w1_ref, NB, H, W, C, relu=True)

    # pad2 (reuse scratch) -> conv2 -> IN
    _write_reflect_pad(pad_ref, y1.astype(matmul_dtype), H, W)
    y2 = _conv3x3_instance_norm(pad_ref, w2_ref, NB, H, W, C, relu=False)

    # residual add: re-read x (cheap VMEM vld) instead of keeping it live across
    # both convs (smaller live set -> larger NB, less spill).
    out_ref[...] = (x_ref[...].astype(jnp.float32) + y2).astype(out_ref.dtype)


# ----------------------------------------------------------------------------- wrapper


def _torch_weight_to_im2col(w_oihw, matmul_dtype):
    """PyTorch Conv2d weight (Co, Ci, 3, 3) -> (9*Ci, Co) im2col matrix, cast once."""
    co, ci, kh, kw = w_oihw.shape
    return (jnp.transpose(w_oihw, (2, 3, 1, 0))          # (ky, kx, Ci, Co)
            .reshape(kh * kw * ci, co)
            .astype(matmul_dtype))


def _tpu_vmem_and_cores():
    """(VMEM capacity bytes, #TensorCores per chip), with safe fallbacks."""
    cap, cores = None, None
    try:
        info = pltpu.get_tpu_info()
        for name in ("vmem_capacity_bytes", "vmem_bytes", "vmem_size_bytes"):
            v = getattr(info, name, None)
            if v:
                cap = int(v)
                break
        for name in ("num_tensorcores", "tensorcores_per_chip", "num_cores"):
            v = getattr(info, name, None)
            if v:
                cores = int(v)
                break
    except Exception:
        pass
    if cap is None:
        cap = 64 * 1024 * 1024            # conservative (v7x-sized) fallback
    if cores is None:
        cores = 2 if cap <= 64 * 1024 * 1024 else 1   # v7x: 64 MiB VMEM/TC, 2 TCs
    return cap, cores


def _choose_images_per_step(N, H, W, C, matmul_dtype, vmem_budget_bytes, num_tc):
    """Images per grid step from the real per-image live set (no double counting)."""
    mm = int(jnp.dtype(matmul_dtype).itemsize)
    f32 = 4
    hwc = H * W * C
    per_image = (
        2 * hwc * f32                          # input block, double-buffered
        + 2 * hwc * f32                        # output block, double-buffered
        + (H + 2) * (W + 2) * C * mm           # reflection-pad scratch
        + 9 * hwc * mm                         # im2col LHS
        + 2 * hwc * f32                        # f32 conv acc + normalized activation
        + 2 * hwc * f32                        # slack: temporaries / spill headroom
    )
    fixed = 2 * (9 * C * C * mm) * 2           # two weight blocks, double-buffered
    nb = max(1, min(N, (vmem_budget_bytes - fixed) // max(per_image, 1)))
    if num_tc > 1 and N >= num_tc:
        nb = min(nb, N // num_tc)              # keep >= num_tc steps only when 2 TCs exist
    nb = max(1, nb)
    while N % nb:
        nb -= 1
    return nb


def residual_block(x_nhwc, w1, b1, w2, b2, *, matmul_dtype=jnp.bfloat16,
                   images_per_step=None):
    """Forward pass of ResidualBlock, NHWC activations (no layout transposes).

    x_nhwc: (N, H, W, C) float32.  w1/w2: (C, C, 3, 3) PyTorch OIHW.  b1/b2: (C,).
    NOTE: conv biases are accepted for API parity but skipped — this is valid
    ONLY because InstanceNorm2d(affine=False) immediately follows each conv and
    removes any per-channel constant (mean shift; variance unaffected).
    """
    del b1, b2

    x = x_nhwc.astype(jnp.float32)
    N, H, W, C = x.shape
    w1m = _torch_weight_to_im2col(w1, matmul_dtype)
    w2m = _torch_weight_to_im2col(w2, matmul_dtype)

    vmem_cap, num_tc = _tpu_vmem_and_cores()
    if images_per_step is None:
        images_per_step = _choose_images_per_step(
            N, H, W, C, matmul_dtype, int(vmem_cap * 0.70), num_tc)
    NB = int(images_per_step)
    assert N % NB == 0, "images_per_step must divide the batch"
    grid = (N // NB,)

    img_spec = pl.BlockSpec((NB, H, W, C), lambda n: (n, 0, 0, 0))
    w_spec = pl.BlockSpec((9 * C, C), lambda n: (0, 0))

    kernel = functools.partial(_residual_block_kernel, matmul_dtype=matmul_dtype)

    out = pl.pallas_call(
        kernel,
        out_shape=jax.ShapeDtypeStruct((N, H, W, C), jnp.float32),
        grid=grid,
        in_specs=[img_spec, w_spec, w_spec],
        out_specs=img_spec,
        scratch_shapes=[pltpu.VMEM((NB, H + 2, W + 2, C), matmul_dtype)],
        compiler_params=pltpu.CompilerParams(
            dimension_semantics=("parallel",),
            vmem_limit_bytes=int(vmem_cap * 0.85),
        ),
    )(x, w1m, w2m)
    return out


def residual_block_nchw(x_nchw, w1, b1, w2, b2, **kw):
    """PyTorch-layout parity wrapper (adds 2 transposes; prefer residual_block)."""
    x = jnp.transpose(x_nchw, (0, 2, 3, 1))
    y = residual_block(x, w1, b1, w2, b2, **kw)
    return jnp.transpose(y, (0, 3, 1, 2))


# ----------------------------------------------------------------------------- reference


def _reference_nhwc(x, w1, b1, w2, b2):
    """Pure-JAX NHWC reference mirroring the PyTorch module (f32, with bias)."""
    def conv_in(x, w, b):
        xp = jnp.pad(x, ((0, 0), (1, 1), (1, 1), (0, 0)), mode="reflect")
        y = jax.lax.conv_general_dilated(
            xp, w, window_strides=(1, 1), padding="VALID",
            dimension_numbers=("NHWC", "OIHW", "NHWC")) + b[None, None, None, :]
        m = jnp.mean(y, axis=(1, 2), keepdims=True)
        v = jnp.mean((y - m) ** 2, axis=(1, 2), keepdims=True)
        return (y - m) * jax.lax.rsqrt(v + _EPS)

    h = jnp.maximum(conv_in(x, w1, b1), 0.0)
    return x + conv_in(h, w2, b2)


if __name__ == "__main__":
    N, C, H, W = 2, 4, 16, 16
    key = jax.random.PRNGKey(0)
    kx, kw1, kb1, kw2, kb2 = jax.random.split(key, 5)

    x_nhwc = jax.random.normal(kx, (N, H, W, C), dtype=jnp.float32)
    bound = 1.0 / np.sqrt(C * 3 * 3)  # same scale as PyTorch default conv init
    w1 = jax.random.uniform(kw1, (C, C, 3, 3), jnp.float32, -bound, bound)
    b1 = jax.random.uniform(kb1, (C,), jnp.float32, -bound, bound)
    w2 = jax.random.uniform(kw2, (C, C, 3, 3), jnp.float32, -bound, bound)
    b2 = jax.random.uniform(kb2, (C,), jnp.float32, -bound, bound)

    ref = jax.block_until_ready(_reference_nhwc(x_nhwc, w1, b1, w2, b2))

    # Exact f32-MXU path.
    out_f32 = jax.block_until_ready(
        residual_block(x_nhwc, w1, b1, w2, b2, matmul_dtype=jnp.float32))
    np.testing.assert_allclose(np.asarray(out_f32), np.asarray(ref),
                               rtol=1e-4, atol=1e-4)

    # Default fast path: bf16 matmul operands, f32 accumulation / f32 IN stats.
    out_bf16 = jax.block_until_ready(residual_block(x_nhwc, w1, b1, w2, b2))
    np.testing.assert_allclose(np.asarray(out_bf16), np.asarray(ref),
                               rtol=1e-1, atol=1e-1)

    # NCHW PyTorch-parity wrapper.
    x_nchw = jnp.transpose(x_nhwc, (0, 3, 1, 2))
    out_nchw = jax.block_until_ready(
        residual_block_nchw(x_nchw, w1, b1, w2, b2, matmul_dtype=jnp.float32))
    np.testing.assert_allclose(np.asarray(out_nchw),
                               np.asarray(jnp.transpose(ref, (0, 3, 1, 2))),
                               rtol=1e-4, atol=1e-4)

    print("KERNEL_OK")
</pallas_src>

<mosaic_0001>
module attributes {stable_mosaic.version = 11 : i64} {
  func.func @_residual_block_kernel(%arg0: i32, %arg1: memref<1x16x16x4xf32, #tpu.memory_space<vmem>>, %arg2: memref<36x4xf32, #tpu.memory_space<vmem>>, %arg3: memref<36x4xf32, #tpu.memory_space<vmem>>, %arg4: memref<1x16x16x4xf32, #tpu.memory_space<vmem>>, %arg5: memref<1x18x18x4xf32, #tpu.memory_space<vmem>>) attributes {dimension_semantics = [#tpu.dimension_semantics<parallel>], iteration_bounds = array<i64: 2>, scalar_prefetch = 0 : i64, scratch_operands = 1 : i64, tpu.core_type = #tpu.core_type<tc>, window_params = [{transform_indices = @transform_0, window_bounds = array<i64: 1, 16, 16, 4>}, {pipeline_mode = #tpu.pipeline_mode<synchronous>, transform_indices = @transform_1, window_bounds = array<i64: 36, 4>}, {pipeline_mode = #tpu.pipeline_mode<synchronous>, transform_indices = @transform_2, window_bounds = array<i64: 36, 4>}, {transform_indices = @transform_3, window_bounds = array<i64: 1, 16, 16, 4>}]} {
    %c0 = arith.constant 0 : index
    %c0_0 = arith.constant 0 : index
    %c0_1 = arith.constant 0 : index
    %c0_2 = arith.constant 0 : index
    %0 = vector.load %arg1[%c0, %c0_0, %c0_1, %c0_2] : memref<1x16x16x4xf32, #tpu.memory_space<vmem>>, vector<1x16x16x4xf32>
    %c0_3 = arith.constant 0 : index
    %c1 = arith.constant 1 : index
    %c1_4 = arith.constant 1 : index
    %c0_5 = arith.constant 0 : index
    %1 = vector.load %arg5[%c0_3, %c1, %c1_4, %c0_5] : memref<1x18x18x4xf32, #tpu.memory_space<vmem>>, vector<1x16x16x4xf32>
    tpu.vector_store %arg5[%c0_3, %c1, %c1_4, %c0_5], %0 {strides = array<i32>} : memref<1x18x18x4xf32, #tpu.memory_space<vmem>>, vector<1x16x16x4xf32>,
    %2 = vector.extract_strided_slice %0 {offsets = [0, 1, 0, 0], sizes = [1, 1, 16, 4], strides = [1, 1, 1, 1]} : vector<1x16x16x4xf32> to vector<1x1x16x4xf32>
    %c0_6 = arith.constant 0 : index
    %c0_7 = arith.constant 0 : index
    %c1_8 = arith.constant 1 : index
    %c0_9 = arith.constant 0 : index
    %3 = vector.load %arg5[%c0_6, %c0_7, %c1_8, %c0_9] : memref<1x18x18x4xf32, #tpu.memory_space<vmem>>, vector<1x1x16x4xf32>
    tpu.vector_store %arg5[%c0_6, %c0_7, %c1_8, %c0_9], %2 {strides = array<i32>} : memref<1x18x18x4xf32, #tpu.memory_space<vmem>>, vector<1x1x16x4xf32>,
    %4 = vector.extract_strided_slice %0 {offsets = [0, 14, 0, 0], sizes = [1, 1, 16, 4], strides = [1, 1, 1, 1]} : vector<1x16x16x4xf32> to vector<1x1x16x4xf32>
    %c0_10 = arith.constant 0 : index
    %c17 = arith.constant 17 : index
    %c1_11 = arith.constant 1 : index
    %c0_12 = arith.constant 0 : index
    %5 = vector.load %arg5[%c0_10, %c17, %c1_11, %c0_12] : memref<1x18x18x4xf32, #tpu.memory_space<vmem>>, vector<1x1x16x4xf32>
    tpu.vector_store %arg5[%c0_10, %c17, %c1_11, %c0_12], %4 {strides = array<i32>} : memref<1x18x18x4xf32, #tpu.memory_space<vmem>>, vector<1x1x16x4xf32>,
    %c0_13 = arith.constant 0 : index
    %c0_14 = arith.constant 0 : index
    %c2 = arith.constant 2 : index
    %c0_15 = arith.constant 0 : index
    %6 = vector.load %arg5[%c0_13, %c0_14, %c2, %c0_15] : memref<1x18x18x4xf32, #tpu.memory_space<vmem>>, vector<1x18x1x4xf32>
    %c0_16 = arith.constant 0 : index
    %c0_17 = arith.constant 0 : index
    %c0_18 = arith.constant 0 : index
    %c0_19 = arith.constant 0 : index
    %7 = vector.load %arg5[%c0_16, %c0_17, %c0_18, %c0_19] : memref<1x18x18x4xf32, #tpu.memory_space<vmem>>, vector<1x18x1x4xf32>
    tpu.vector_store %arg5[%c0_16, %c0_17, %c0_18, %c0_19], %6 {strides = array<i32>} : memref<1x18x18x4xf32, #tpu.memory_space<vmem>>, vector<1x18x1x4xf32>,
    %c0_20 = arith.constant 0 : index
    %c0_21 = arith.constant 0 : index
    %c15 = arith.constant 15 : index
    %c0_22 = arith.constant 0 : index
    %8 = vector.load %arg5[%c0_20, %c0_21, %c15, %c0_22] : memref<1x18x18x4xf32, #tpu.memory_space<vmem>>, vector<1x18x1x4xf32>
    %c0_23 = arith.constant 0 : index
    %c0_24 = arith.constant 0 : index
    %c17_25 = arith.constant 17 : index
    %c0_26 = arith.constant 0 : index
    %9 = vector.load %arg5[%c0_23, %c0_24, %c17_25, %c0_26] : memref<1x18x18x4xf32, #tpu.memory_space<vmem>>, vector<1x18x1x4xf32>
    tpu.vector_store %arg5[%c0_23, %c0_24, %c17_25, %c0_26], %8 {strides = array<i32>} : memref<1x18x18x4xf32, #tpu.memory_space<vmem>>, vector<1x18x1x4xf32>,
    %c0_27 = arith.constant 0 : index
    %c0_28 = arith.constant 0 : index
    %c0_29 = arith.constant 0 : index
    %c0_30 = arith.constant 0 : index
    %10 = vector.load %arg5[%c0_27, %c0_28, %c0_29, %c0_30] : memref<1x18x18x4xf32, #tpu.memory_space<vmem>>, vector<1x16x16x4xf32>
    %c0_31 = arith.constant 0 : index
    %c0_32 = arith.constant 0 : index
    %c1_33 = arith.constant 1 : index
    %c0_34 = arith.constant 0 : index
    %11 = vector.load %arg5[%c0_31, %c0_32, %c1_33, %c0_34] : memref<1x18x18x4xf32, #tpu.memory_space<vmem>>, vector<1x16x16x4xf32>
    %c0_35 = arith.constant 0 : index
    %c0_36 = arith.constant 0 : index
    %c2_37 = arith.constant 2 : index
    %c0_38 = arith.constant 0 : index
    %12 = vector.load %arg5[%c0_35, %c0_36, %c2_37, %c0_38] : memref<1x18x18x4xf32, #tpu.memory_space<vmem>>, vector<1x16x16x4xf32>
    %c0_39 = arith.constant 0 : index
    %c1_40 = arith.constant 1 : index
    %c0_41 = arith.constant 0 : index
    %c0_42 = arith.constant 0 : index
    %13 = vector.load %arg5[%c0_39, %c1_40, %c0_41, %c0_42] : memref<1x18x18x4xf32, #tpu.memory_space<vmem>>, vector<1x16x16x4xf32>
    %c0_43 = arith.constant 0 : index
    %c1_44 = arith.constant 1 : index
    %c1_45 = arith.constant 1 : index
    %c0_46 = arith.constant 0 : index
    %14 = vector.load %arg5[%c0_43, %c1_44, %c1_45, %c0_46] : memref<1x18x18x4xf32, #tpu.memory_space<vmem>>, vector<1x16x16x4xf32>
    %c0_47 = arith.constant 0 : index
    %c1_48 = arith.constant 1 : index
    %c2_49 = arith.constant 2 : index
    %c0_50 = arith.constant 0 : index
    %15 = vector.load %arg5[%c0_47, %c1_48, %c2_49, %c0_50] : memref<1x18x18x4xf32, #tpu.memory_space<vmem>>, vector<1x16x16x4xf32>
    %c0_51 = arith.constant 0 : index
    %c2_52 = arith.constant 2 : index
    %c0_53 = arith.constant 0 : index
    %c0_54 = arith.constant 0 : index
    %16 = vector.load %arg5[%c0_51, %c2_52, %c0_53, %c0_54] : memref<1x18x18x4xf32, #tpu.memory_space<vmem>>, vector<1x16x16x4xf32>
    %c0_55 = arith.constant 0 : index
    %c2_56 = arith.constant 2 : index
    %c1_57 = arith.constant 1 : index
    %c0_58 = arith.constant 0 : index
    %17 = vector.load %arg5[%c0_55, %c2_56, %c1_57, %c0_58] : memref<1x18x18x4xf32, #tpu.memory_space<vmem>>, vector<1x16x16x4xf32>
    %c0_59 = arith.constant 0 : index
    %c2_60 = arith.constant 2 : index
    %c2_61 = arith.constant 2 : index
    %c0_62 = arith.constant 0 : index
    %18 = vector.load %arg5[%c0_59, %c2_60, %c2_61, %c0_62] : memref<1x18x18x4xf32, #tpu.memory_space<vmem>>, vector<1x16x16x4xf32>
    %19 = tpu.concatenate %10, %11, %12, %13, %14, %15, %16, %17, %18 in 3 : vector<1x16x16x4xf32>, vector<1x16x16x4xf32>, vector<1x16x16x4xf32>, vector<1x16x16x4xf32>, vector<1x16x16x4xf32>, vector<1x16x16x4xf32>, vector<1x16x16x4xf32>, vector<1x16x16x4xf32>, vector<1x16x16x4xf32> -> vector<1x16x16x36xf32>
    %20 = vector.shape_cast %19 : vector<1x16x16x36xf32> to vector<256x36xf32>
    %c0_63 = arith.constant 0 : index
    %c0_64 = arith.constant 0 : index
    %21 = vector.load %arg2[%c0_63, %c0_64] : memref<36x4xf32, #tpu.memory_space<vmem>>, vector<36x4xf32>
    %cst = arith.constant dense<0.000000e+00> : vector<256x4xf32>
    %22 = tpu.matmul %20, %21, %cst {dimension_numbers = #tpu.dot_dimension_numbers<[1], [0], [0], [1], [0, 0, 1, 1], [], []>} : vector<256x36xf32>, vector<36x4xf32>, vector<256x4xf32> -> vector<256x4xf32>
    %23 = vector.shape_cast %22 : vector<256x4xf32> to vector<1x16x16x4xf32>
    %cst_65 = arith.constant dense<0.000000e+00> : vector<1x4xf32>
    %24 = vector.multi_reduction <add>, %23, %cst_65 [1, 2] : vector<1x16x16x4xf32> to vector<1x4xf32>
    %25 = vector.shape_cast %24 : vector<1x4xf32> to vector<1x1x1x4xf32>
    %cst_66 = arith.constant 3.906250e-03 : f32
    %26 = vector.broadcast %cst_66 : f32 to vector<1x1x1x4xf32>
    %27 = arith.mulf %25, %26 : vector<1x1x1x4xf32>
    %28 = vector.broadcast %27 : vector<1x1x1x4xf32> to vector<1x16x16x4xf32>
    %29 = arith.subf %23, %28 : vector<1x16x16x4xf32>
    %30 = arith.mulf %29, %29 : vector<1x16x16x4xf32>
    %cst_67 = arith.constant dense<0.000000e+00> : vector<1x4xf32>
    %31 = vector.multi_reduction <add>, %30, %cst_67 [1, 2] : vector<1x16x16x4xf32> to vector<1x4xf32>
    %32 = vector.shape_cast %31 : vector<1x4xf32> to vector<1x1x1x4xf32>
    %cst_68 = arith.constant 3.906250e-03 : f32
    %33 = vector.broadcast %cst_68 : f32 to vector<1x1x1x4xf32>
    %34 = arith.mulf %32, %33 : vector<1x1x1x4xf32>
    %cst_69 = arith.constant 9.99999974E-6 : f32
    %35 = vector.broadcast %cst_69 : f32 to vector<1x1x1x4xf32>
    %36 = arith.addf %34, %35 : vector<1x1x1x4xf32>
    %37 = math.rsqrt %36 : vector<1x1x1x4xf32>
    %38 = vector.broadcast %37 : vector<1x1x1x4xf32> to vector<1x16x16x4xf32>
    %39 = arith.mulf %29, %38 : vector<1x16x16x4xf32>
    %cst_70 = arith.constant 0.000000e+00 : f32
    %40 = vector.broadcast %cst_70 : f32 to vector<1x16x16x4xf32>
    %41 = arith.maximumf %39, %40 : vector<1x16x16x4xf32>
    %c0_71 = arith.constant 0 : index
    %c1_72 = arith.constant 1 : index
    %c1_73 = arith.constant 1 : index
    %c0_74 = arith.constant 0 : index
    %42 = vector.load %arg5[%c0_71, %c1_72, %c1_73, %c0_74] : memref<1x18x18x4xf32, #tpu.memory_space<vmem>>, vector<1x16x16x4xf32>
    tpu.vector_store %arg5[%c0_71, %c1_72, %c1_73, %c0_74], %41 {strides = array<i32>} : memref<1x18x18x4xf32, #tpu.memory_space<vmem>>, vector<1x16x16x4xf32>,
    %43 = vector.extract_strided_slice %41 {offsets = [0, 1, 0, 0], sizes = [1, 1, 16, 4], strides = [1, 1, 1, 1]} : vector<1x16x16x4xf32> to vector<1x1x16x4xf32>
    %c0_75 = arith.constant 0 : index
    %c0_76 = arith.constant 0 : index
    %c1_77 = arith.constant 1 : index
    %c0_78 = arith.constant 0 : index
    %44 = vector.load %arg5[%c0_75, %c0_76, %c1_77, %c0_78] : memref<1x18x18x4xf32, #tpu.memory_space<vmem>>, vector<1x1x16x4xf32>
    tpu.vector_store %arg5[%c0_75, %c0_76, %c1_77, %c0_78], %43 {strides = array<i32>} : memref<1x18x18x4xf32, #tpu.memory_space<vmem>>, vector<1x1x16x4xf32>,
    %45 = vector.extract_strided_slice %41 {offsets = [0, 14, 0, 0], sizes = [1, 1, 16, 4], strides = [1, 1, 1, 1]} : vector<1x16x16x4xf32> to vector<1x1x16x4xf32>
    %c0_79 = arith.constant 0 : index
    %c17_80 = arith.constant 17 : index
    %c1_81 = arith.constant 1 : index
    %c0_82 = arith.constant 0 : index
    %46 = vector.load %arg5[%c0_79, %c17_80, %c1_81, %c0_82] : memref<1x18x18x4xf32, #tpu.memory_space<vmem>>, vector<1x1x16x4xf32>
    tpu.vector_store %arg5[%c0_79, %c17_80, %c1_81, %c0_82], %45 {strides = array<i32>} : memref<1x18x18x4xf32, #tpu.memory_space<vmem>>, vector<1x1x16x4xf32>,
    %c0_83 = arith.constant 0 : index
    %c0_84 = arith.constant 0 : index
    %c2_85 = arith.constant 2 : index
    %c0_86 = arith.constant 0 : index
    %47 = vector.load %arg5[%c0_83, %c0_84, %c2_85, %c0_86] : memref<1x18x18x4xf32, #tpu.memory_space<vmem>>, vector<1x18x1x4xf32>
    %c0_87 = arith.constant 0 : index
    %c0_88 = arith.constant 0 : index
    %c0_89 = arith.constant 0 : index
    %c0_90 = arith.constant 0 : index
    %48 = vector.load %arg5[%c0_87, %c0_88, %c0_89, %c0_90] : memref<1x18x18x4xf32, #tpu.memory_space<vmem>>, vector<1x18x1x4xf32>
    tpu.vector_store %arg5[%c0_87, %c0_88, %c0_89, %c0_90], %47 {strides = array<i32>} : memref<1x18x18x4xf32, #tpu.memory_space<vmem>>, vector<1x18x1x4xf32>,
    %c0_91 = arith.constant 0 : index
    %c0_92 = arith.constant 0 : index
    %c15_93 = arith.constant 15 : index
    %c0_94 = arith.constant 0 : index
    %49 = vector.load %arg5[%c0_91, %c0_92, %c15_93, %c0_94] : memref<1x18x18x4xf32, #tpu.memory_space<vmem>>, vector<1x18x1x4xf32>
    %c0_95 = arith.constant 0 : index
    %c0_96 = arith.constant 0 : index
    %c17_97 = arith.constant 17 : index
    %c0_98 = arith.constant 0 : index
    %50 = vector.load %arg5[%c0_95, %c0_96, %c17_97, %c0_98] : memref<1x18x18x4xf32, #tpu.memory_space<vmem>>, vector<1x18x1x4xf32>
    tpu.vector_store %arg5[%c0_95, %c0_96, %c17_97, %c0_98], %49 {strides = array<i32>} : memref<1x18x18x4xf32, #tpu.memory_space<vmem>>, vector<1x18x1x4xf32>,
    %c0_99 = arith.constant 0 : index
    %c0_100 = arith.constant 0 : index
    %c0_101 = arith.constant 0 : index
    %c0_102 = arith.constant 0 : index
    %51 = vector.load %arg5[%c0_99, %c0_100, %c0_101, %c0_102] : memref<1x18x18x4xf32, #tpu.memory_space<vmem>>, vector<1x16x16x4xf32>
    %c0_103 = arith.constant 0 : index
    %c0_104 = arith.constant 0 : index
    %c1_105 = arith.constant 1 : index
    %c0_106 = arith.constant 0 : index
    %52 = vector.load %arg5[%c0_103, %c0_104, %c1_105, %c0_106] : memref<1x18x18x4xf32, #tpu.memory_space<vmem>>, vector<1x16x16x4xf32>
    %c0_107 = arith.constant 0 : index
    %c0_108 = arith.constant 0 : index
    %c2_109 = arith.constant 2 : index
    %c0_110 = arith.constant 0 : index
    %53 = vector.load %arg5[%c0_107, %c0_108, %c2_109, %c0_110] : memref<1x18x18x4xf32, #tpu.memory_space<vmem>>, vector<1x16x16x4xf32>
    %c0_111 = arith.constant 0 : index
    %c1_112 = arith.constant 1 : index
    %c0_113 = arith.constant 0 : index
    %c0_114 = arith.constant 0 : index
    %54 = vector.load %arg5[%c0_111, %c1_112, %c0_113, %c0_114] : memref<1x18x18x4xf32, #tpu.memory_space<vmem>>, vector<1x16x16x4xf32>
    %c0_115 = arith.constant 0 : index
    %c1_116 = arith.constant 1 : index
    %c1_117 = arith.constant 1 : index
    %c0_118 = arith.constant 0 : index
    %55 = vector.load %arg5[%c0_115, %c1_116, %c1_117, %c0_118] : memref<1x18x18x4xf32, #tpu.memory_space<vmem>>, vector<1x16x16x4xf32>
    %c0_119 = arith.constant 0 : index
    %c1_120 = arith.constant 1 : index
    %c2_121 = arith.constant 2 : index
    %c0_122 = arith.constant 0 : index
    %56 = vector.load %arg5[%c0_119, %c1_120, %c2_121, %c0_122] : memref<1x18x18x4xf32, #tpu.memory_space<vmem>>, vector<1x16x16x4xf32>
    %c0_123 = arith.constant 0 : index
    %c2_124 = arith.constant 2 : index
    %c0_125 = arith.constant 0 : index
    %c0_126 = arith.constant 0 : index
    %57 = vector.load %arg5[%c0_123, %c2_124, %c0_125, %c0_126] : memref<1x18x18x4xf32, #tpu.memory_space<vmem>>, vector<1x16x16x4xf32>
    %c0_127 = arith.constant 0 : index
    %c2_128 = arith.constant 2 : index
    %c1_129 = arith.constant 1 : index
    %c0_130 = arith.constant 0 : index
    %58 = vector.load %arg5[%c0_127, %c2_128, %c1_129, %c0_130] : memref<1x18x18x4xf32, #tpu.memory_space<vmem>>, vector<1x16x16x4xf32>
    %c0_131 = arith.constant 0 : index
    %c2_132 = arith.constant 2 : index
    %c2_133 = arith.constant 2 : index
    %c0_134 = arith.constant 0 : index
    %59 = vector.load %arg5[%c0_131, %c2_132, %c2_133, %c0_134] : memref<1x18x18x4xf32, #tpu.memory_space<vmem>>, vector<1x16x16x4xf32>
    %60 = tpu.concatenate %51, %52, %53, %54, %55, %56, %57, %58, %59 in 3 : vector<1x16x16x4xf32>, vector<1x16x16x4xf32>, vector<1x16x16x4xf32>, vector<1x16x16x4xf32>, vector<1x16x16x4xf32>, vector<1x16x16x4xf32>, vector<1x16x16x4xf32>, vector<1x16x16x4xf32>, vector<1x16x16x4xf32> -> vector<1x16x16x36xf32>
    %61 = vector.shape_cast %60 : vector<1x16x16x36xf32> to vector<256x36xf32>
    %c0_135 = arith.constant 0 : index
    %c0_136 = arith.constant 0 : index
    %62 = vector.load %arg3[%c0_135, %c0_136] : memref<36x4xf32, #tpu.memory_space<vmem>>, vector<36x4xf32>
    %cst_137 = arith.constant dense<0.000000e+00> : vector<256x4xf32>
    %63 = tpu.matmul %61, %62, %cst_137 {dimension_numbers = #tpu.dot_dimension_numbers<[1], [0], [0], [1], [0, 0, 1, 1], [], []>} : vector<256x36xf32>, vector<36x4xf32>, vector<256x4xf32> -> vector<256x4xf32>
    %64 = vector.shape_cast %63 : vector<256x4xf32> to vector<1x16x16x4xf32>
    %cst_138 = arith.constant dense<0.000000e+00> : vector<1x4xf32>
    %65 = vector.multi_reduction <add>, %64, %cst_138 [1, 2] : vector<1x16x16x4xf32> to vector<1x4xf32>
    %66 = vector.shape_cast %65 : vector<1x4xf32> to vector<1x1x1x4xf32>
    %cst_139 = arith.constant 3.906250e-03 : f32
    %67 = vector.broadcast %cst_139 : f32 to vector<1x1x1x4xf32>
    %68 = arith.mulf %66, %67 : vector<1x1x1x4xf32>
    %69 = vector.broadcast %68 : vector<1x1x1x4xf32> to vector<1x16x16x4xf32>
    %70 = arith.subf %64, %69 : vector<1x16x16x4xf32>
    %71 = arith.mulf %70, %70 : vector<1x16x16x4xf32>
    %cst_140 = arith.constant dense<0.000000e+00> : vector<1x4xf32>
    %72 = vector.multi_reduction <add>, %71, %cst_140 [1, 2] : vector<1x16x16x4xf32> to vector<1x4xf32>
    %73 = vector.shape_cast %72 : vector<1x4xf32> to vector<1x1x1x4xf32>
    %cst_141 = arith.constant 3.906250e-03 : f32
    %74 = vector.broadcast %cst_141 : f32 to vector<1x1x1x4xf32>
    %75 = arith.mulf %73, %74 : vector<1x1x1x4xf32>
    %cst_142 = arith.constant 9.99999974E-6 : f32
    %76 = vector.broadcast %cst_142 : f32 to vector<1x1x1x4xf32>
    %77 = arith.addf %75, %76 : vector<1x1x1x4xf32>
    %78 = math.rsqrt %77 : vector<1x1x1x4xf32>
    %79 = vector.broadcast %78 : vector<1x1x1x4xf32> to vector<1x16x16x4xf32>
    %80 = arith.mulf %70, %79 : vector<1x16x16x4xf32>
    %c0_143 = arith.constant 0 : index
    %c0_144 = arith.constant 0 : index
    %c0_145 = arith.constant 0 : index
    %c0_146 = arith.constant 0 : index
    %81 = vector.load %arg1[%c0_143, %c0_144, %c0_145, %c0_146] : memref<1x16x16x4xf32, #tpu.memory_space<vmem>>, vector<1x16x16x4xf32>
    %82 = arith.addf %81, %80 : vector<1x16x16x4xf32>
    %c0_147 = arith.constant 0 : index
    %c0_148 = arith.constant 0 : index
    %c0_149 = arith.constant 0 : index
    %c0_150 = arith.constant 0 : index
    %83 = vector.load %arg4[%c0_147, %c0_148, %c0_149, %c0_150] : memref<1x16x16x4xf32, #tpu.memory_space<vmem>>, vector<1x16x16x4xf32>
    tpu.vector_store %arg4[%c0_147, %c0_148, %c0_149, %c0_150], %82 {strides = array<i32>} : memref<1x16x16x4xf32, #tpu.memory_space<vmem>>, vector<1x16x16x4xf32>,
    return
  }
  func.func @transform_0(%arg0: i32) -> (i32, i32, i32, i32) {
    %c0_i32 = arith.constant 0 : i32
    %c0_i32_0 = arith.constant 0 : i32
    %c0_i32_1 = arith.constant 0 : i32
    %c0_i32_2 = arith.constant 0 : i32
    return %arg0, %c0_i32, %c0_i32_0, %c0_i32_1 : i32, i32, i32, i32
  }
  func.func @transform_1(%arg0: i32) -> (i32, i32) {
    %c0_i32 = arith.constant 0 : i32
    %c0_i32_0 = arith.constant 0 : i32
    %c0_i32_1 = arith.constant 0 : i32
    return %c0_i32, %c0_i32_0 : i32, i32
  }
  func.func @transform_2(%arg0: i32) -> (i32, i32) {
    %c0_i32 = arith.constant 0 : i32
    %c0_i32_0 = arith.constant 0 : i32
    %c0_i32_1 = arith.constant 0 : i32
    return %c0_i32, %c0_i32_0 : i32, i32
  }
  func.func @transform_3(%arg0: i32) -> (i32, i32, i32, i32) {
    %c0_i32 = arith.constant 0 : i32
    %c0_i32_0 = arith.constant 0 : i32
    %c0_i32_1 = arith.constant 0 : i32
    %c0_i32_2 = arith.constant 0 : i32
    return %arg0, %c0_i32, %c0_i32_0, %c0_i32_1 : i32, i32, i32, i32
  }
}

</mosaic_0001>

<llo_original>
// kernel: tpu_custom_call.1
$region0: #{tpu_custom_call.1}
  #allocation0 [shape = 'u32[]', space=smem, size = 0x4, offset = 0x4, fixed_abs, tag = 'smem constant byte address 0x4 - core index']
  #allocation1 [shape = 'u32[144,128]{1,0:T(1,128)}', space=vmem, size = 0x12000, scoped, tag = 'internal scratch']
  #allocation2 [shape = 'f32[1,18,18,4]{3,2,1,0:T(8,128)}', space=vmem, size = 0x36000, scoped, tag = 'scratch operand']
  %s0 = inlined_call_operand.vmem [shape: f32[2,16,16,4], index: 0, kind: input, shape index: {}]
  %s1 = inlined_call_operand.vmem [shape: f32[36,4], index: 1, kind: input, shape index: {}]
  %s2 = inlined_call_operand.vmem [shape: f32[36,4], index: 2, kind: input, shape index: {}]
  %s3 = inlined_call_operand.vmem [shape: f32[2,16,16,4], index: 3, kind: output, shape index: {}]
  %s4 = sld [smem:[#allocation0]]
  $region45: #{tpu_custom_call.1} parent=0
    _
  %s6 = ssub.s32 1, %s4
  %s7 = scalar_select 0, %s6, %s4
  loop: start=0, step=1, limit=4
  $region2: #{tpu_custom_call.1} parent=0 // loop_pre_header
    _
  $region3: #{tpu_custom_call.1} parent=0 // loop_header
    %s9 = sphi 0, %s13
    %p10 = scmp.ge.s32.totalorder %s9, 4
    %s19 = sphi 0, %s21
    %s22 = sphi 0, %s19
    %s23 = sphi 0, %s22
    %s39 = sphi 0, %s23
    %s43 = sphi 0, %s43
    %s45 = sphi 0, %s43
    %s46 = sphi 0, %s45
    %s60 = sphi 0, %s46
    %s64 = sphi 0, %s64
    %s66 = sphi 0, %s64
    %s67 = sphi 0, %s66
    %s81 = sphi 0, %s67
    %s87 = sphi 0, %s89
    %s90 = sphi 0, %s87
    %s91 = sphi 0, %s90
    %s107 = sphi 0, %s91
  $region4: #{tpu_custom_call.1} parent=0 // loop_header_branch
    %12 = sbr.rel (%p10) target = $region8
  $region5: #{tpu_custom_call.1} parent=0 // loop_body
    %s14 = ssub.s32 %s9, 1
    %s15 = ssub.s32 %s9, 2
    %s16 = sadd.s32 %s9, 1
    %s17 = ssub.s32 %s9, %s16
    %p18 = scmp.eq.s32.totalorder %s17, 0
    %s20 = sadd.s32 %s19, 1
    %s21 = scalar_select %p18, %s19, %s20
    %p24 = pneg %p18
    %p25 = scmp.eq.s32.totalorder %s9, 1
    %p26 = por %p24, %p25
    %p27 = scmp.ne.s32.totalorder %s19, %s22
    %p28 = scmp.eq.s32.totalorder %s9, 0
    %p29 = por %p27, %p28
    %p30 = scmp.ne.s32.totalorder %s19, %s22
    %p31 = scmp.eq.s32.totalorder %s14, 1
    %p32 = por %p30, %p31
    %p33 = scmp.ne.s32.totalorder %s22, %s23
    %p34 = scmp.eq.s32.totalorder %s14, 0
    %p35 = por %p33, %p34
    %p36 = scmp.ne.s32.totalorder %s22, %s23
    %p37 = scmp.eq.s32.totalorder %s15, 1
    %p38 = por %p36, %p37
    %p40 = scmp.ne.s32.totalorder %s23, %s39
    %p41 = scmp.eq.s32.totalorder %s15, 0
    %p42 = por %p40, %p41
    %s44 = sadd.s32 %s43, 1
    %p47 = scmp.eq.s32.totalorder %s9, 1
    %p48 = scmp.ne.s32.totalorder %s43, %s45
    %p49 = scmp.eq.s32.totalorder %s9, 0
    %p50 = por %p48, %p49
    %p51 = scmp.ne.s32.totalorder %s43, %s45
    %p52 = scmp.eq.s32.totalorder %s14, 1
    %p53 = por %p51, %p52
    %p54 = scmp.ne.s32.totalorder %s45, %s46
    %p55 = scmp.eq.s32.totalorder %s14, 0
    %p56 = por %p54, %p55
    %p57 = scmp.ne.s32.totalorder %s45, %s46
    %p58 = scmp.eq.s32.totalorder %s15, 1
    %p59 = por %p57, %p58
    %p61 = scmp.ne.s32.totalorder %s46, %s60
    %p62 = scmp.eq.s32.totalorder %s15, 0
    %p63 = por %p61, %p62
    %s65 = sadd.s32 %s64, 1
    %p68 = scmp.eq.s32.totalorder %s9, 1
    %p69 = scmp.ne.s32.totalorder %s64, %s66
    %p70 = scmp.eq.s32.totalorder %s9, 0
    %p71 = por %p69, %p70
    %p72 = scmp.ne.s32.totalorder %s64, %s66
    %p73 = scmp.eq.s32.totalorder %s14, 1
    %p74 = por %p72, %p73
    %p75 = scmp.ne.s32.totalorder %s66, %s67
    %p76 = scmp.eq.s32.totalorder %s14, 0
    %p77 = por %p75, %p76
    %p78 = scmp.ne.s32.totalorder %s66, %s67
    %p79 = scmp.eq.s32.totalorder %s15, 1
    %p80 = por %p78, %p79
    %p82 = scmp.ne.s32.totalorder %s67, %s81
    %p83 = scmp.eq.s32.totalorder %s15, 0
    %p84 = por %p82, %p83
    %s85 = ssub.s32 %s9, %s16
    %p86 = scmp.eq.s32.totalorder %s85, 0
    %s88 = sadd.s32 %s87, 1
    %s89 = scalar_select %p86, %s87, %s88
    %p92 = pneg %p86
    %p93 = scmp.eq.s32.totalorder %s9, 1
    %p94 = por %p92, %p93
    %p95 = scmp.ne.s32.totalorder %s87, %s90
    %p96 = scmp.eq.s32.totalorder %s9, 0
    %p97 = por %p95, %p96
    %p98 = scmp.ne.s32.totalorder %s87, %s90
    %p99 = scmp.eq.s32.totalorder %s14, 1
    %p100 = por %p98, %p99
    %p101 = scmp.ne.s32.totalorder %s90, %s91
    %p102 = scmp.eq.s32.totalorder %s14, 0
    %p103 = por %p101, %p102
    %p104 = scmp.ne.s32.totalorder %s90, %s91
    %p105 = scmp.eq.s32.totalorder %s15, 1
    %p106 = por %p104, %p105
    %p108 = scmp.ne.s32.totalorder %s91, %s107
    %p109 = scmp.eq.s32.totalorder %s15, 0
    %p110 = por %p108, %p109
    %p111 = scmp.le.s32.totalorder 1, %s9
    %p112 = scmp.lt.s32.totalorder %s9, 3
    %p113 = pnand %p111, %p112
    %p114 = pneg %p113
    // Predicated region
    $region9: #{tpu_custom_call.1} parent=5 // pred_check
      _
    $region10: #{tpu_custom_call.1} parent=5 // pred_check_branch
      %116 = sbr.rel (%p113) target = $region12
    $region11: #{tpu_custom_call.1} parent=5 // pred_region
      %s117 = ssub.s32 %s9, 1
      // Predicated region
      $region13: #{tpu_custom_call.1} parent=11 // pred_check
        %p118 = pneg %p56
      $region14: #{tpu_custom_call.1} parent=11 // pred_check_branch
        %120 = sbr.rel (%p118) target = $region16
      $region15: #{tpu_custom_call.1} parent=11 // pred_region
        _
      $region16: #{tpu_custom_call.1} parent=11 // pred_fallthru
        _
      // Predicated region
      $region17: #{tpu_custom_call.1} parent=11 // pred_check
        %p121 = pneg %p77
      $region18: #{tpu_custom_call.1} parent=11 // pred_check_branch
        %123 = sbr.rel (%p121) target = $region20
      $region19: #{tpu_custom_call.1} parent=11 // pred_region
        _
      $region20: #{tpu_custom_call.1} parent=11 // pred_fallthru
        _
    $region12: #{tpu_custom_call.1} parent=5 // pred_fallthru
      _
    %p124 = scmp.lt.s32.totalorder %s9, 2
    // Predicated region
    $region21: #{tpu_custom_call.1} parent=5 // pred_check
      %p125 = pneg %p124
    $region22: #{tpu_custom_call.1} parent=5 // pred_check_branch
      %127 = sbr.rel (%p125) target = $region24
    $region23: #{tpu_custom_call.1} parent=5 // pred_region
      // Predicated region
      $region25: #{tpu_custom_call.1} parent=23 // pred_check
        %p128 = pneg %p29
      $region26: #{tpu_custom_call.1} parent=23 // pred_check_branch
        %130 = sbr.rel (%p128) target = $region28
      $region27: #{tpu_custom_call.1} parent=23 // pred_region
        %p131 = scmp.lt.s32.totalorder %s9, 1
        %s132 = scalar_select %p131, %s9, 1
        %s133 = smul.addr %s132, 32
        %s134 = smul.addr %s133, 8
        %s135 = scalar_lea.vmem %s0, %s134
      $region28: #{tpu_custom_call.1} parent=23 // pred_fallthru
        _
    $region24: #{tpu_custom_call.1} parent=5 // pred_fallthru
      _
    %p136 = scmp.le.s32.totalorder 1, %s9
    %p137 = scmp.lt.s32.totalorder %s9, 3
    %p138 = pnand %p136, %p137
    %p139 = pneg %p138
    // Predicated region
    $region29: #{tpu_custom_call.1} parent=5 // pred_check
      _
    $region30: #{tpu_custom_call.1} parent=5 // pred_check_branch
      %141 = sbr.rel (%p138) target = $region32
    $region31: #{tpu_custom_call.1} parent=5 // pred_region
      %s142 = ssub.s32 %s9, 1
      %p143 = scmp.lt.s32.totalorder %s14, 1
      %s144 = scalar_select %p143, %s14, 1
      %s145 = smul.addr %s144, 32
      %s146 = smul.addr %s145, 8
      %s147 = scalar_lea.vmem %s0, %s146
      %p148 = pneg %p35
      %p149 = pneg %p32
      %p150 = pneg %p56
      %p151 = pneg %p53
      %p152 = pneg %p77
      %p153 = pneg %p74
      %p154 = pneg %p103
      %p155 = pneg %p100
      %p156 = scmp.lt.s32.totalorder %s14, 1
      %s157 = scalar_select %p156, %s14, 1
      %s158 = smul.addr %s157, 32
      %s159 = smul.addr %s158, 8
      %s160 = scalar_lea.vmem %s3, %s159
      %p161 = scmp.lt.s32.totalorder %s14, 1
      %s162 = scalar_select %p161, %s14, 1
      %s163 = smul.addr %s162, 32
      %s164 = smul.addr %s163, 8
      %s165 = scalar_lea.vmem %s0, %s164
      %p166 = scmp.lt.s32.totalorder %s14, 1
      %s167 = scalar_select %p166, %s14, 1
      %s168 = smul.addr %s167, 32
      %s169 = smul.addr %s168, 8
      %s170 = scalar_lea.vmem %s3, %s169
      %v171 = vld [vmem:[%s165] sm:$0xff]
      %v172 = vld [vmem:[%s165 + $0x8] sm:$0xff]
      %v173 = vld [vmem:[%s165 + $0x10] sm:$0xff]
      %v174 = vld [vmem:[%s165 + $0x18] sm:$0xff]
      %v175 = vld [vmem:[%s165 + $0x20] sm:$0xff]
      %v176 = vld [vmem:[%s165 + $0x28] sm:$0xff]
      %v177 = vld [vmem:[%s165 + $0x30] sm:$0xff]
      %v178 = vld [vmem:[%s165 + $0x38] sm:$0xff]
      %v179 = vld [vmem:[%s165 + $0x40] sm:$0xff]
      %v180 = vld [vmem:[%s165 + $0x48] sm:$0xff]
      %v181 = vld [vmem:[%s165 + $0x50] sm:$0xff]
      %v182 = vld [vmem:[%s165 + $0x58] sm:$0xff]
      %v183 = vld [vmem:[%s165 + $0x60] sm:$0xff]
      %v184 = vld [vmem:[%s165 + $0x68] sm:$0xff]
      %v185 = vld [vmem:[%s165 + $0x70] sm:$0xff]
      %v186 = vld [vmem:[%s165 + $0x78] sm:$0xff]
      %v187 = vld [vmem:[%s165 + $0x80] sm:$0xff]
      %v188 = vld [vmem:[%s165 + $0x88] sm:$0xff]
      %v189 = vld [vmem:[%s165 + $0x90] sm:$0xff]
      %v190 = vld [vmem:[%s165 + $0x98] sm:$0xff]
      %v191 = vld [vmem:[%s165 + $0xa0] sm:$0xff]
      %v192 = vld [vmem:[%s165 + $0xa8] sm:$0xff]
      %v193 = vld [vmem:[%s165 + $0xb0] sm:$0xff]
      %v194 = vld [vmem:[%s165 + $0xb8] sm:$0xff]
      %v195 = vld [vmem:[%s165 + $0xc0] sm:$0xff]
      %v196 = vld [vmem:[%s165 + $0xc8] sm:$0xff]
      %v197 = vld [vmem:[%s165 + $0xd0] sm:$0xff]
      %v198 = vld [vmem:[%s165 + $0xd8] sm:$0xff]
      %v199 = vld [vmem:[%s165 + $0xe0] sm:$0xff]
      %v200 = vld [vmem:[%s165 + $0xe8] sm:$0xff]
      %v201 = vld [vmem:[%s165 + $0xf0] sm:$0xff]
      %v202 = vld [vmem:[%s165 + $0xf8] sm:$0xff]
      %s203 = scalar_lea.vmem [#allocation2], 24
      %vm204 = vcmask 31744
      %205 = vst.msk [vmem:[%s203 + $0x1] sm:$0xff] %vm204, %v171
      %206 = vst.msk [vmem:[%s203 + $0x9] sm:$0xff] %vm204, %v172
      %207 = vst.msk [vmem:[%s203 + $0x19] sm:$0xff] %vm204, %v173
      %208 = vst.msk [vmem:[%s203 + $0x21] sm:$0xff] %vm204, %v174
      %209 = vst.msk [vmem:[%s203 + $0x31] sm:$0xff] %vm204, %v175
      %210 = vst.msk [vmem:[%s203 + $0x39] sm:$0xff] %vm204, %v176
      %211 = vst.msk [vmem:[%s203 + $0x49] sm:$0xff] %vm204, %v177
      %212 = vst.msk [vmem:[%s203 + $0x51] sm:$0xff] %vm204, %v178
      %213 = vst.msk [vmem:[%s203 + $0x61] sm:$0xff] %vm204, %v179
      %214 = vst.msk [vmem:[%s203 + $0x69] sm:$0xff] %vm204, %v180
      %215 = vst.msk [vmem:[%s203 + $0x79] sm:$0xff] %vm204, %v181
      %216 = vst.msk [vmem:[%s203 + $0x81] sm:$0xff] %vm204, %v182
      %217 = vst.msk [vmem:[%s203 + $0x91] sm:$0xff] %vm204, %v183
      %218 = vst.msk [vmem:[%s203 + $0x99] sm:$0xff] %vm204, %v184
      %219 = vst.msk [vmem:[%s203 + $0xa9] sm:$0xff] %vm204, %v185
      %220 = vst.msk [vmem:[%s203 + $0xb1] sm:$0xff] %vm204, %v186
      %221 = vst.msk [vmem:[%s203 + $0xc1] sm:$0xff] %vm204, %v187
      %222 = vst.msk [vmem:[%s203 + $0xc9] sm:$0xff] %vm204, %v188
      %223 = vst.msk [vmem:[%s203 + $0xd9] sm:$0xff] %vm204, %v189
      %224 = vst.msk [vmem:[%s203 + $0xe1] sm:$0xff] %vm204, %v190
      %225 = vst.msk [vmem:[%s203 + $0xf1] sm:$0xff] %vm204, %v191
      %226 = vst.msk [vmem:[%s203 + $0xf9] sm:$0xff] %vm204, %v192
      %227 = vst.msk [vmem:[%s203 + $0x109] sm:$0xff] %vm204, %v193
      %228 = vst.msk [vmem:[%s203 + $0x111] sm:$0xff] %vm204, %v194
      %229 = vst.msk [vmem:[%s203 + $0x121] sm:$0xff] %vm204, %v195
      %230 = vst.msk [vmem:[%s203 + $0x129] sm:$0xff] %vm204, %v196
      %231 = vst.msk [vmem:[%s203 + $0x139] sm:$0xff] %vm204, %v197
      %232 = vst.msk [vmem:[%s203 + $0x141] sm:$0xff] %vm204, %v198
      %233 = vst.msk [vmem:[%s203 + $0x151] sm:$0xff] %vm204, %v199
      %234 = vst.msk [vmem:[%s203 + $0x159] sm:$0xff] %vm204, %v200
      %235 = vst.msk [vmem:[%s203 + $0x169] sm:$0xff] %vm204, %v201
      %236 = vst.msk [vmem:[%s203 + $0x171] sm:$0xff] %vm204, %v202
      %237 = vst.msk [vmem:[#allocation2 + $0x1] sm:$0xff] %vm204, %v173
      %238 = vst.msk [vmem:[#allocation2 + $0x9] sm:$0xff] %vm204, %v174
      %s239 = scalar_lea.vmem [#allocation2], 408
      %240 = vst.msk [vmem:[%s239 + $0x1] sm:$0xff] %vm204, %v199
      %241 = vst.msk [vmem:[%s239 + $0x9] sm:$0xff] %vm204, %v200
      %v242 = vld [vmem:[#allocation2 + $0x2] sm:$0x1]
      %v243 = vld [vmem:[#allocation2 + $0x1a] sm:$0x1]
      %v244 = vld [vmem:[#allocation2 + $0x32] sm:$0x1]
      %v245 = vld [vmem:[#allocation2 + $0x4a] sm:$0x1]
      %v246 = vld [vmem:[#allocation2 + $0x62] sm:$0x1]
      %v247 = vld [vmem:[#allocation2 + $0x7a] sm:$0x1]
      %v248 = vld [vmem:[#allocation2 + $0x92] sm:$0x1]
      %v249 = vld [vmem:[#allocation2 + $0xaa] sm:$0x1]
      %v250 = vld [vmem:[#allocation2 + $0xc2] sm:$0x1]
      %v251 = vld [vmem:[#allocation2 + $0xda] sm:$0x1]
      %v252 = vld [vmem:[#allocation2 + $0xf2] sm:$0x1]
      %v253 = vld [vmem:[#allocation2 + $0x10a] sm:$0x1]
      %v254 = vld [vmem:[#allocation2 + $0x122] sm:$0x1]
      %v255 = vld [vmem:[#allocation2 + $0x13a] sm:$0x1]
      %v256 = vld [vmem:[#allocation2 + $0x152] sm:$0x1]
      %v257 = vld [vmem:[#allocation2 + $0x16a] sm:$0x1]
      %v258 = vld [vmem:[#allocation2 + $0x182] sm:$0x1]
      %v259 = vld [vmem:[#allocation2 + $0x19a] sm:$0x1]
      %vm260 = vcmask 24576
      %261 = vst.msk [vmem:[#allocation2] sm:$0x1] %vm260, %v242
      %262 = vst.msk [vmem:[#allocation2 + $0x18] sm:$0x1] %vm260, %v243
      %263 = vst.msk [vmem:[#allocation2 + $0x30] sm:$0x1] %vm260, %v244
      %264 = vst.msk [vmem:[#allocation2 + $0x48] sm:$0x1] %vm260, %v245
      %265 = vst.msk [vmem:[#allocation2 + $0x60] sm:$0x1] %vm260, %v246
      %266 = vst.msk [vmem:[#allocation2 + $0x78] sm:$0x1] %vm260, %v247
      %267 = vst.msk [vmem:[#allocation2 + $0x90] sm:$0x1] %vm260, %v248
      %268 = vst.msk [vmem:[#allocation2 + $0xa8] sm:$0x1] %vm260, %v249
      %269 = vst.msk [vmem:[#allocation2 + $0xc0] sm:$0x1] %vm260, %v250
      %270 = vst.msk [vmem:[#allocation2 + $0xd8] sm:$0x1] %vm260, %v251
      %271 = vst.msk [vmem:[#allocation2 + $0xf0] sm:$0x1] %vm260, %v252
      %272 = vst.msk [vmem:[#allocation2 + $0x108] sm:$0x1] %vm260, %v253
      %273 = vst.msk [vmem:[#allocation2 + $0x120] sm:$0x1] %vm260, %v254
      %274 = vst.msk [vmem:[#allocation2 + $0x138] sm:$0x1] %vm260, %v255
      %275 = vst.msk [vmem:[#allocation2 + $0x150] sm:$0x1] %vm260, %v256
      %276 = vst.msk [vmem:[#allocation2 + $0x168] sm:$0x1] %vm260, %v257
      %277 = vst.msk [vmem:[#allocation2 + $0x180] sm:$0x1] %vm260, %v258
      %278 = vst.msk [vmem:[#allocation2 + $0x198] sm:$0x1] %vm260, %v259
      %v279 = vld [vmem:[#allocation2 + $0xf] sm:$0x1]
      %v280 = vld [vmem:[#allocation2 + $0x27] sm:$0x1]
      %v281 = vld [vmem:[#allocation2 + $0x3f] sm:$0x1]
      %v282 = vld [vmem:[#allocation2 + $0x57] sm:$0x1]
      %v283 = vld [vmem:[#allocation2 + $0x6f] sm:$0x1]
      %v284 = vld [vmem:[#allocation2 + $0x87] sm:$0x1]
      %v285 = vld [vmem:[#allocation2 + $0x9f] sm:$0x1]
      %v286 = vld [vmem:[#allocation2 + $0xb7] sm:$0x1]
      %v287 = vld [vmem:[#allocation2 + $0xcf] sm:$0x1]
      %v288 = vld [vmem:[#allocation2 + $0xe7] sm:$0x1]
      %v289 = vld [vmem:[#allocation2 + $0xff] sm:$0x1]
      %v290 = vld [vmem:[#allocation2 + $0x117] sm:$0x1]
      %v291 = vld [vmem:[#allocation2 + $0x12f] sm:$0x1]
      %v292 = vld [vmem:[#allocation2 + $0x147] sm:$0x1]
      %v293 = vld [vmem:[#allocation2 + $0x15f] sm:$0x1]
      %v294 = vld [vmem:[#allocation2 + $0x177] sm:$0x1]
      %v295 = vld [vmem:[#allocation2 + $0x18f] sm:$0x1]
      %v296 = vld [vmem:[#allocation2 + $0x1a7] sm:$0x1]
      %297 = vst.msk [vmem:[#allocation2 + $0x11] sm:$0x1] %vm260, %v279
      %298 = vst.msk [vmem:[#allocation2 + $0x29] sm:$0x1] %vm260, %v280
      %299 = vst.msk [vmem:[#allocation2 + $0x41] sm:$0x1] %vm260, %v281
      %300 = vst.msk [vmem:[#allocation2 + $0x59] sm:$0x1] %vm260, %v282
      %301 = vst.msk [vmem:[#allocation2 + $0x71] sm:$0x1] %vm260, %v283
      %302 = vst.msk [vmem:[#allocation2 + $0x89] sm:$0x1] %vm260, %v284
      %303 = vst.msk [vmem:[#allocation2 + $0xa1] sm:$0x1] %vm260, %v285
      %304 = vst.msk [vmem:[#allocation2 + $0xb9] sm:$0x1] %vm260, %v286
      %305 = vst.msk [vmem:[#allocation2 + $0xd1] sm:$0x1] %vm260, %v287
      %306 = vst.msk [vmem:[#allocation2 + $0xe9] sm:$0x1] %vm260, %v288
      %307 = vst.msk [vmem:[#allocation2 + $0x101] sm:$0x1] %vm260, %v289
      %308 = vst.msk [vmem:[#allocation2 + $0x119] sm:$0x1] %vm260, %v290
      %309 = vst.msk [vmem:[#allocation2 + $0x131] sm:$0x1] %vm260, %v291
      %310 = vst.msk [vmem:[#allocation2 + $0x149] sm:$0x1] %vm260, %v292
      %311 = vst.msk [vmem:[#allocation2 + $0x161] sm:$0x1] %vm260, %v293
      %312 = vst.msk [vmem:[#allocation2 + $0x179] sm:$0x1] %vm260, %v294
      %313 = vst.msk [vmem:[#allocation2 + $0x191] sm:$0x1] %vm260, %v295
      %314 = vst.msk [vmem:[#allocation2 + $0x1a9] sm:$0x1] %vm260, %v296
      %v315 = vld [vmem:[#allocation2] sm:$0xff]
      %v316 = vld [vmem:[#allocation2 + $0x8] sm:$0xff]
      %v317 = vld [vmem:[#allocation2 + $0x18] sm:$0xff]
      %v318 = vld [vmem:[#allocation2 + $0x20] sm:$0xff]
      %v319 = vld [vmem:[#allocation2 + $0x30] sm:$0xff]
      %v320 = vld [vmem:[#allocation2 + $0x38] sm:$0xff]
      %v321 = vld [vmem:[#allocation2 + $0x48] sm:$0xff]
      %v322 = vld [vmem:[#allocation2 + $0x50] sm:$0xff]
      %v323 = vld [vmem:[#allocation2 + $0x60] sm:$0xff]
      %v324 = vld [vmem:[#allocation2 + $0x68] sm:$0xff]
      %v325 = vld [vmem:[#allocation2 + $0x78] sm:$0xff]
      %v326 = vld [vmem:[#allocation2 + $0x80] sm:$0xff]
      %v327 = vld [vmem:[#allocation2 + $0x90] sm:$0xff]
      %v328 = vld [vmem:[#allocation2 + $0x98] sm:$0xff]
      %v329 = vld [vmem:[#allocation2 + $0xa8] sm:$0xff]
      %v330 = vld [vmem:[#allocation2 + $0xb0] sm:$0xff]
      %v331 = vld [vmem:[#allocation2 + $0xc0] sm:$0xff]
      %v332 = vld [vmem:[#allocation2 + $0xc8] sm:$0xff]
      %v333 = vld [vmem:[#allocation2 + $0xd8] sm:$0xff]
      %v334 = vld [vmem:[#allocation2 + $0xe0] sm:$0xff]
      %v335 = vld [vmem:[#allocation2 + $0xf0] sm:$0xff]
      %v336 = vld [vmem:[#allocation2 + $0xf8] sm:$0xff]
      %v337 = vld [vmem:[#allocation2 + $0x108] sm:$0xff]
      %v338 = vld [vmem:[#allocation2 + $0x110] sm:$0xff]
      %v339 = vld [vmem:[#allocation2 + $0x120] sm:$0xff]
      %v340 = vld [vmem:[#allocation2 + $0x128] sm:$0xff]
      %v341 = vld [vmem:[#allocation2 + $0x138] sm:$0xff]
      %v342 = vld [vmem:[#allocation2 + $0x140] sm:$0xff]
      %v343 = vld [vmem:[#allocation2 + $0x150] sm:$0xff]
      %v344 = vld [vmem:[#allocation2 + $0x158] sm:$0xff]
      %v345 = vld [vmem:[#allocation2 + $0x168] sm:$0xff]
      %v346 = vld [vmem:[#allocation2 + $0x170] sm:$0xff]
      %v347 = vld [vmem:[#allocation2 + $0x1] sm:$0xff]
      %v348 = vld [vmem:[#allocation2 + $0x9] sm:$0xff]
      %v349 = vld [vmem:[#allocation2 + $0x19] sm:$0xff]
      %v350 = vld [vmem:[#allocation2 + $0x21] sm:$0xff]
      %v351 = vld [vmem:[#allocation2 + $0x31] sm:$0xff]
      %v352 = vld [vmem:[#allocation2 + $0x39] sm:$0xff]
      %v353 = vld [vmem:[#allocation2 + $0x49] sm:$0xff]
      %v354 = vld [vmem:[#allocation2 + $0x51] sm:$0xff]
      %v355 = vld [vmem:[#allocation2 + $0x61] sm:$0xff]
      %v356 = vld [vmem:[#allocation2 + $0x69] sm:$0xff]
      %v357 = vld [vmem:[#allocation2 + $0x79] sm:$0xff]
      %v358 = vld [vmem:[#allocation2 + $0x81] sm:$0xff]
      %v359 = vld [vmem:[#allocation2 + $0x91] sm:$0xff]
      %v360 = vld [vmem:[#allocation2 + $0x99] sm:$0xff]
      %v361 = vld [vmem:[#allocation2 + $0xa9] sm:$0xff]
      %v362 = vld [vmem:[#allocation2 + $0xb1] sm:$0xff]
      %v363 = vld [vmem:[#allocation2 + $0xc1] sm:$0xff]
      %v364 = vld [vmem:[#allocation2 + $0xc9] sm:$0xff]
      %v365 = vld [vmem:[#allocation2 + $0xd9] sm:$0xff]
      %v366 = vld [vmem:[#allocation2 + $0xe1] sm:$0xff]
      %v367 = vld [vmem:[#allocation2 + $0xf1] sm:$0xff]
      %v368 = vld [vmem:[#allocation2 + $0xf9] sm:$0xff]
      %v369 = vld [vmem:[#allocation2 + $0x109] sm:$0xff]
      %v370 = vld [vmem:[#allocation2 + $0x111] sm:$0xff]
      %v371 = vld [vmem:[#allocation2 + $0x121] sm:$0xff]
      %v372 = vld [vmem:[#allocation2 + $0x129] sm:$0xff]
      %v373 = vld [vmem:[#allocation2 + $0x139] sm:$0xff]
      %v374 = vld [vmem:[#allocation2 + $0x141] sm:$0xff]
      %v375 = vld [vmem:[#allocation2 + $0x151] sm:$0xff]
      %v376 = vld [vmem:[#allocation2 + $0x159] sm:$0xff]
      %v377 = vld [vmem:[#allocation2 + $0x169] sm:$0xff]
      %v378 = vld [vmem:[#allocation2 + $0x171] sm:$0xff]
      %v379 = vld [vmem:[#allocation2 + $0x2] sm:$0xff]
      %v380 = vld [vmem:[#allocation2 + $0xa] sm:$0xff]
      %v381 = vld [vmem:[#allocation2 + $0x1a] sm:$0xff]
      %v382 = vld [vmem:[#allocation2 + $0x22] sm:$0xff]
      %v383 = vld [vmem:[#allocation2 + $0x32] sm:$0xff]
      %v384 = vld [vmem:[#allocation2 + $0x3a] sm:$0xff]
      %v385 = vld [vmem:[#allocation2 + $0x4a] sm:$0xff]
      %v386 = vld [vmem:[#allocation2 + $0x52] sm:$0xff]
      %v387 = vld [vmem:[#allocation2 + $0x62] sm:$0xff]
      %v388 = vld [vmem:[#allocation2 + $0x6a] sm:$0xff]
      %v389 = vld [vmem:[#allocation2 + $0x7a] sm:$0xff]
      %v390 = vld [vmem:[#allocation2 + $0x82] sm:$0xff]
      %v391 = vld [vmem:[#allocation2 + $0x92] sm:$0xff]
      %v392 = vld [vmem:[#allocation2 + $0x9a] sm:$0xff]
      %v393 = vld [vmem:[#allocation2 + $0xaa] sm:$0xff]
      %v394 = vld [vmem:[#allocation2 + $0xb2] sm:$0xff]
      %v395 = vld [vmem:[#allocation2 + $0xc2] sm:$0xff]
      %v396 = vld [vmem:[#allocation2 + $0xca] sm:$0xff]
      %v397 = vld [vmem:[#allocation2 + $0xda] sm:$0xff]
      %v398 = vld [vmem:[#allocation2 + $0xe2] sm:$0xff]
      %v399 = vld [vmem:[#allocation2 + $0xf2] sm:$0xff]
      %v400 = vld [vmem:[#allocation2 + $0xfa] sm:$0xff]
      %v401 = vld [vmem:[#allocation2 + $0x10a] sm:$0xff]
      %v402 = vld [vmem:[#allocation2 + $0x112] sm:$0xff]
      %v403 = vld [vmem:[#allocation2 + $0x122] sm:$0xff]
      %v404 = vld [vmem:[#allocation2 + $0x12a] sm:$0xff]
      %v405 = vld [vmem:[#allocation2 + $0x13a] sm:$0xff]
      %v406 = vld [vmem:[#allocation2 + $0x142] sm:$0xff]
      %v407 = vld [vmem:[#allocation2 + $0x152] sm:$0xff]
      %v408 = vld [vmem:[#allocation2 + $0x15a] sm:$0xff]
      %v409 = vld [vmem:[#allocation2 + $0x16a] sm:$0xff]
      %v410 = vld [vmem:[#allocation2 + $0x172] sm:$0xff]
      %v411 = vld [vmem:[%s203] sm:$0xff]
      %v412 = vld [vmem:[%s203 + $0x8] sm:$0xff]
      %v413 = vld [vmem:[%s203 + $0x18] sm:$0xff]
      %v414 = vld [vmem:[%s203 + $0x20] sm:$0xff]
      %v415 = vld [vmem:[%s203 + $0x30] sm:$0xff]
      %v416 = vld [vmem:[%s203 + $0x38] sm:$0xff]
      %v417 = vld [vmem:[%s203 + $0x48] sm:$0xff]
      %v418 = vld [vmem:[%s203 + $0x50] sm:$0xff]
      %v419 = vld [vmem:[%s203 + $0x60] sm:$0xff]
      %v420 = vld [vmem:[%s203 + $0x68] sm:$0xff]
      %v421 = vld [vmem:[%s203 + $0x78] sm:$0xff]
      %v422 = vld [vmem:[%s203 + $0x80] sm:$0xff]
      %v423 = vld [vmem:[%s203 + $0x90] sm:$0xff]
      %v424 = vld [vmem:[%s203 + $0x98] sm:$0xff]
      %v425 = vld [vmem:[%s203 + $0xa8] sm:$0xff]
      %v426 = vld [vmem:[%s203 + $0xb0] sm:$0xff]
      %v427 = vld [vmem:[%s203 + $0xc0] sm:$0xff]
      %v428 = vld [vmem:[%s203 + $0xc8] sm:$0xff]
      %v429 = vld [vmem:[%s203 + $0xd8] sm:$0xff]
      %v430 = vld [vmem:[%s203 + $0xe0] sm:$0xff]
      %v431 = vld [vmem:[%s203 + $0xf0] sm:$0xff]
      %v432 = vld [vmem:[%s203 + $0xf8] sm:$0xff]
      %v433 = vld [vmem:[%s203 + $0x108] sm:$0xff]
      %v434 = vld [vmem:[%s203 + $0x110] sm:$0xff]
      %v435 = vld [vmem:[%s203 + $0x120] sm:$0xff]
      %v436 = vld [vmem:[%s203 + $0x128] sm:$0xff]
      %v437 = vld [vmem:[%s203 + $0x138] sm:$0xff]
      %v438 = vld [vmem:[%s203 + $0x140] sm:$0xff]
      %v439 = vld [vmem:[%s203 + $0x150] sm:$0xff]
      %v440 = vld [vmem:[%s203 + $0x158] sm:$0xff]
      %v441 = vld [vmem:[%s203 + $0x168] sm:$0xff]
      %v442 = vld [vmem:[%s203 + $0x170] sm:$0xff]
      %v443 = vld [vmem:[%s203 + $0x1] sm:$0xff]
      %v444 = vld [vmem:[%s203 + $0x9] sm:$0xff]
      %v445 = vld [vmem:[%s203 + $0x19] sm:$0xff]
      %v446 = vld [vmem:[%s203 + $0x21] sm:$0xff]
      %v447 = vld [vmem:[%s203 + $0x31] sm:$0xff]
      %v448 = vld [vmem:[%s203 + $0x39] sm:$0xff]
      %v449 = vld [vmem:[%s203 + $0x49] sm:$0xff]
      %v450 = vld [vmem:[%s203 + $0x51] sm:$0xff]
      %v451 = vld [vmem:[%s203 + $0x61] sm:$0xff]
      %v452 = vld [vmem:[%s203 + $0x69] sm:$0xff]
      %v453 = vld [vmem:[%s203 + $0x79] sm:$0xff]
      %v454 = vld [vmem:[%s203 + $0x81] sm:$0xff]
      %v455 = vld [vmem:[%s203 + $0x91] sm:$0xff]
      %v456 = vld [vmem:[%s203 + $0x99] sm:$0xff]
      %v457 = vld [vmem:[%s203 + $0xa9] sm:$0xff]
      %v458 = vld [vmem:[%s203 + $0xb1] sm:$0xff]
      %v459 = vld [vmem:[%s203 + $0xc1] sm:$0xff]
      %v460 = vld [vmem:[%s203 + $0xc9] sm:$0xff]
      %v461 = vld [vmem:[%s203 + $0xd9] sm:$0xff]
      %v462 = vld [vmem:[%s203 + $0xe1] sm:$0xff]
      %v463 = vld [vmem:[%s203 + $0xf1] sm:$0xff]
      %v464 = vld [vmem:[%s203 + $0xf9] sm:$0xff]
      %v465 = vld [vmem:[%s203 + $0x109] sm:$0xff]
      %v466 = vld [vmem:[%s203 + $0x111] sm:$0xff]
      %v467 = vld [vmem:[%s203 + $0x121] sm:$0xff]
      %v468 = vld [vmem:[%s203 + $0x129] sm:$0xff]
      %v469 = vld [vmem:[%s203 + $0x139] sm:$0xff]
      %v470 = vld [vmem:[%s203 + $0x141] sm:$0xff]
      %v471 = vld [vmem:[%s203 + $0x151] sm:$0xff]
      %v472 = vld [vmem:[%s203 + $0x159] sm:$0xff]
      %v473 = vld [vmem:[%s203 + $0x169] sm:$0xff]
      %v474 = vld [vmem:[%s203 + $0x171] sm:$0xff]
      %v475 = vld [vmem:[%s203 + $0x2] sm:$0xff]
      %v476 = vld [vmem:[%s203 + $0xa] sm:$0xff]
      %v477 = vld [vmem:[%s203 + $0x1a] sm:$0xff]
      %v478 = vld [vmem:[%s203 + $0x22] sm:$0xff]
      %v479 = vld [vmem:[%s203 + $0x32] sm:$0xff]
      %v480 = vld [vmem:[%s203 + $0x3a] sm:$0xff]
      %v481 = vld [vmem:[%s203 + $0x4a] sm:$0xff]
      %v482 = vld [vmem:[%s203 + $0x52] sm:$0xff]
      %v483 = vld [vmem:[%s203 + $0x62] sm:$0xff]
      %v484 = vld [vmem:[%s203 + $0x6a] sm:$0xff]
      %v485 = vld [vmem:[%s203 + $0x7a] sm:$0xff]
      %v486 = vld [vmem:[%s203 + $0x82] sm:$0xff]
      %v487 = vld [vmem:[%s203 + $0x92] sm:$0xff]
      %v488 = vld [vmem:[%s203 + $0x9a] sm:$0xff]
      %v489 = vld [vmem:[%s203 + $0xaa] sm:$0xff]
      %v490 = vld [vmem:[%s203 + $0xb2] sm:$0xff]
      %v491 = vld [vmem:[%s203 + $0xc2] sm:$0xff]
      %v492 = vld [vmem:[%s203 + $0xca] sm:$0xff]
      %v493 = vld [vmem:[%s203 + $0xda] sm:$0xff]
      %v494 = vld [vmem:[%s203 + $0xe2] sm:$0xff]
      %v495 = vld [vmem:[%s203 + $0xf2] sm:$0xff]
      %v496 = vld [vmem:[%s203 + $0xfa] sm:$0xff]
      %v497 = vld [vmem:[%s203 + $0x10a] sm:$0xff]
      %v498 = vld [vmem:[%s203 + $0x112] sm:$0xff]
      %v499 = vld [vmem:[%s203 + $0x122] sm:$0xff]
      %v500 = vld [vmem:[%s203 + $0x12a] sm:$0xff]
      %v501 = vld [vmem:[%s203 + $0x13a] sm:$0xff]
      %v502 = vld [vmem:[%s203 + $0x142] sm:$0xff]
      %v503 = vld [vmem:[%s203 + $0x152] sm:$0xff]
      %v504 = vld [vmem:[%s203 + $0x15a] sm:$0xff]
      %v505 = vld [vmem:[%s203 + $0x16a] sm:$0xff]
      %v506 = vld [vmem:[%s203 + $0x172] sm:$0xff]
      %s507 = scalar_lea.vmem [#allocation2], 48
      %v508 = vld [vmem:[%s507] sm:$0xff]
      %v509 = vld [vmem:[%s507 + $0x8] sm:$0xff]
      %v510 = vld [vmem:[%s507 + $0x18] sm:$0xff]
      %v511 = vld [vmem:[%s507 + $0x20] sm:$0xff]
      %v512 = vld [vmem:[%s507 + $0x30] sm:$0xff]
      %v513 = vld [vmem:[%s507 + $0x38] sm:$0xff]
      %v514 = vld [vmem:[%s507 + $0x48] sm:$0xff]
      %v515 = vld [vmem:[%s507 + $0x50] sm:$0xff]
      %v516 = vld [vmem:[%s507 + $0x60] sm:$0xff]
      %v517 = vld [vmem:[%s507 + $0x68] sm:$0xff]
      %v518 = vld [vmem:[%s507 + $0x78] sm:$0xff]
      %v519 = vld [vmem:[%s507 + $0x80] sm:$0xff]
      %v520 = vld [vmem:[%s507 + $0x90] sm:$0xff]
      %v521 = vld [vmem:[%s507 + $0x98] sm:$0xff]
      %v522 = vld [vmem:[%s507 + $0xa8] sm:$0xff]
      %v523 = vld [vmem:[%s507 + $0xb0] sm:$0xff]
      %v524 = vld [vmem:[%s507 + $0xc0] sm:$0xff]
      %v525 = vld [vmem:[%s507 + $0xc8] sm:$0xff]
      %v526 = vld [vmem:[%s507 + $0xd8] sm:$0xff]
      %v527 = vld [vmem:[%s507 + $0xe0] sm:$0xff]
      %v528 = vld [vmem:[%s507 + $0xf0] sm:$0xff]
      %v529 = vld [vmem:[%s507 + $0xf8] sm:$0xff]
      %v530 = vld [vmem:[%s507 + $0x108] sm:$0xff]
      %v531 = vld [vmem:[%s507 + $0x110] sm:$0xff]
      %v532 = vld [vmem:[%s507 + $0x120] sm:$0xff]
      %v533 = vld [vmem:[%s507 + $0x128] sm:$0xff]
      %v534 = vld [vmem:[%s507 + $0x138] sm:$0xff]
      %v535 = vld [vmem:[%s507 + $0x140] sm:$0xff]
      %v536 = vld [vmem:[%s507 + $0x150] sm:$0xff]
      %v537 = vld [vmem:[%s507 + $0x158] sm:$0xff]
      %v538 = vld [vmem:[%s507 + $0x168] sm:$0xff]
      %v539 = vld [vmem:[%s507 + $0x170] sm:$0xff]
      %v540 = vld [vmem:[%s507 + $0x1] sm:$0xff]
      %v541 = vld [vmem:[%s507 + $0x9] sm:$0xff]
      %v542 = vld [vmem:[%s507 + $0x19] sm:$0xff]
      %v543 = vld [vmem:[%s507 + $0x21] sm:$0xff]
      %v544 = vld [vmem:[%s507 + $0x31] sm:$0xff]
      %v545 = vld [vmem:[%s507 + $0x39] sm:$0xff]
      %v546 = vld [vmem:[%s507 + $0x49] sm:$0xff]
      %v547 = vld [vmem:[%s507 + $0x51] sm:$0xff]
      %v548 = vld [vmem:[%s507 + $0x61] sm:$0xff]
      %v549 = vld [vmem:[%s507 + $0x69] sm:$0xff]
      %v550 = vld [vmem:[%s507 + $0x79] sm:$0xff]
      %v551 = vld [vmem:[%s507 + $0x81] sm:$0xff]
      %v552 = vld [vmem:[%s507 + $0x91] sm:$0xff]
      %v553 = vld [vmem:[%s507 + $0x99] sm:$0xff]
      %v554 = vld [vmem:[%s507 + $0xa9] sm:$0xff]
      %v555 = vld [vmem:[%s507 + $0xb1] sm:$0xff]
      %v556 = vld [vmem:[%s507 + $0xc1] sm:$0xff]
      %v557 = vld [vmem:[%s507 + $0xc9] sm:$0xff]
      %v558 = vld [vmem:[%s507 + $0xd9] sm:$0xff]
      %v559 = vld [vmem:[%s507 + $0xe1] sm:$0xff]
      %v560 = vld [vmem:[%s507 + $0xf1] sm:$0xff]
      %v561 = vld [vmem:[%s507 + $0xf9] sm:$0xff]
      %v562 = vld [vmem:[%s507 + $0x109] sm:$0xff]
      %v563 = vld [vmem:[%s507 + $0x111] sm:$0xff]
      %v564 = vld [vmem:[%s507 + $0x121] sm:$0xff]
      %v565 = vld [vmem:[%s507 + $0x129] sm:$0xff]
      %v566 = vld [vmem:[%s507 + $0x139] sm:$0xff]
      %v567 = vld [vmem:[%s507 + $0x141] sm:$0xff]
      %v568 = vld [vmem:[%s507 + $0x151] sm:$0xff]
      %v569 = vld [vmem:[%s507 + $0x159] sm:$0xff]
      %v570 = vld [vmem:[%s507 + $0x169] sm:$0xff]
      %v571 = vld [vmem:[%s507 + $0x171] sm:$0xff]
      %v572 = vld [vmem:[%s507 + $0x2] sm:$0xff]
      %v573 = vld [vmem:[%s507 + $0xa] sm:$0xff]
      %v574 = vld [vmem:[%s507 + $0x1a] sm:$0xff]
      %v575 = vld [vmem:[%s507 + $0x22] sm:$0xff]
      %v576 = vld [vmem:[%s507 + $0x32] sm:$0xff]
      %v577 = vld [vmem:[%s507 + $0x3a] sm:$0xff]
      %v578 = vld [vmem:[%s507 + $0x4a] sm:$0xff]
      %v579 = vld [vmem:[%s507 + $0x52] sm:$0xff]
      %v580 = vld [vmem:[%s507 + $0x62] sm:$0xff]
      %v581 = vld [vmem:[%s507 + $0x6a] sm:$0xff]
      %v582 = vld [vmem:[%s507 + $0x7a] sm:$0xff]
      %v583 = vld [vmem:[%s507 + $0x82] sm:$0xff]
      %v584 = vld [vmem:[%s507 + $0x92] sm:$0xff]
      %v585 = vld [vmem:[%s507 + $0x9a] sm:$0xff]
      %v586 = vld [vmem:[%s507 + $0xaa] sm:$0xff]
      %v587 = vld [vmem:[%s507 + $0xb2] sm:$0xff]
      %v588 = vld [vmem:[%s507 + $0xc2] sm:$0xff]
      %v589 = vld [vmem:[%s507 + $0xca] sm:$0xff]
      %v590 = vld [vmem:[%s507 + $0xda] sm:$0xff]
      %v591 = vld [vmem:[%s507 + $0xe2] sm:$0xff]
      %v592 = vld [vmem:[%s507 + $0xf2] sm:$0xff]
      %v593 = vld [vmem:[%s507 + $0xfa] sm:$0xff]
      %v594 = vld [vmem:[%s507 + $0x10a] sm:$0xff]
      %v595 = vld [vmem:[%s507 + $0x112] sm:$0xff]
      %v596 = vld [vmem:[%s507 + $0x122] sm:$0xff]
      %v597 = vld [vmem:[%s507 + $0x12a] sm:$0xff]
      %v598 = vld [vmem:[%s507 + $0x13a] sm:$0xff]
      %v599 = vld [vmem:[%s507 + $0x142] sm:$0xff]
      %v600 = vld [vmem:[%s507 + $0x152] sm:$0xff]
      %v601 = vld [vmem:[%s507 + $0x15a] sm:$0xff]
      %v602 = vld [vmem:[%s507 + $0x16a] sm:$0xff]
      %v603 = vld [vmem:[%s507 + $0x172] sm:$0xff]
      %636 = vrot.lane.b32.xlu0 %v347, 4
      %v637 = vpop.permute.xlu0 %636
      %638 = vrot.lane.b32.xlu0 %v348, 4
      %v639 = vpop.permute.xlu0 %638
      %640 = vrot.lane.b32.xlu0 %v349, 4
      %v641 = vpop.permute.xlu0 %640
      %642 = vrot.lane.b32.xlu0 %v350, 4
      %v643 = vpop.permute.xlu0 %642
      %644 = vrot.lane.b32.xlu0 %v351, 4
      %v645 = vpop.permute.xlu0 %644
      %646 = vrot.lane.b32.xlu0 %v352, 4
      %v647 = vpop.permute.xlu0 %646
      %648 = vrot.lane.b32.xlu0 %v353, 4
      %v649 = vpop.permute.xlu0 %648
      %650 = vrot.lane.b32.xlu0 %v354, 4
      %v651 = vpop.permute.xlu0 %650
      %652 = vrot.lane.b32.xlu0 %v355, 4
      %v653 = vpop.permute.xlu0 %652
      %654 = vrot.lane.b32.xlu0 %v356, 4
      %v655 = vpop.permute.xlu0 %654
      %656 = vrot.lane.b32.xlu0 %v357, 4
      %v657 = vpop.permute.xlu0 %656
      %658 = vrot.lane.b32.xlu0 %v358, 4
      %v659 = vpop.permute.xlu0 %658
      %660 = vrot.lane.b32.xlu0 %v359, 4
      %v661 = vpop.permute.xlu0 %660
      %662 = vrot.lane.b32.xlu0 %v360, 4
      %v663 = vpop.permute.xlu0 %662
      %664 = vrot.lane.b32.xlu0 %v361, 4
      %v665 = vpop.permute.xlu0 %664
      %666 = vrot.lane.b32.xlu0 %v362, 4
      %v667 = vpop.permute.xlu0 %666
      %668 = vrot.lane.b32.xlu0 %v363, 4
      %v669 = vpop.permute.xlu0 %668
      %670 = vrot.lane.b32.xlu0 %v364, 4
      %v671 = vpop.permute.xlu0 %670
      %672 = vrot.lane.b32.xlu0 %v365, 4
      %v673 = vpop.permute.xlu0 %672
      %674 = vrot.lane.b32.xlu0 %v366, 4
      %v675 = vpop.permute.xlu0 %674
      %676 = vrot.lane.b32.xlu0 %v367, 4
      %v677 = vpop.permute.xlu0 %676
      %678 = vrot.lane.b32.xlu0 %v368, 4
      %v679 = vpop.permute.xlu0 %678
      %680 = vrot.lane.b32.xlu0 %v369, 4
      %v681 = vpop.permute.xlu0 %680
      %682 = vrot.lane.b32.xlu0 %v370, 4
      %v683 = vpop.permute.xlu0 %682
      %684 = vrot.lane.b32.xlu0 %v371, 4
      %v685 = vpop.permute.xlu0 %684
      %686 = vrot.lane.b32.xlu0 %v372, 4
      %v687 = vpop.permute.xlu0 %686
      %688 = vrot.lane.b32.xlu0 %v373, 4
      %v689 = vpop.permute.xlu0 %688
      %690 = vrot.lane.b32.xlu0 %v374, 4
      %v691 = vpop.permute.xlu0 %690
      %692 = vrot.lane.b32.xlu0 %v375, 4
      %v693 = vpop.permute.xlu0 %692
      %694 = vrot.lane.b32.xlu0 %v376, 4
      %v695 = vpop.permute.xlu0 %694
      %696 = vrot.lane.b32.xlu0 %v377, 4
      %v697 = vpop.permute.xlu0 %696
      %698 = vrot.lane.b32.xlu0 %v378, 4
      %v699 = vpop.permute.xlu0 %698
      %764 = vrot.lane.b32.xlu0 %v379, 8
      %v765 = vpop.permute.xlu0 %764
      %766 = vrot.lane.b32.xlu0 %v380, 8
      %v767 = vpop.permute.xlu0 %766
      %768 = vrot.lane.b32.xlu0 %v381, 8
      %v769 = vpop.permute.xlu0 %768
      %770 = vrot.lane.b32.xlu0 %v382, 8
      %v771 = vpop.permute.xlu0 %770
      %772 = vrot.lane.b32.xlu0 %v383, 8
      %v773 = vpop.permute.xlu0 %772
      %774 = vrot.lane.b32.xlu0 %v384, 8
      %v775 = vpop.permute.xlu0 %774
      %776 = vrot.lane.b32.xlu0 %v385, 8
      %v777 = vpop.permute.xlu0 %776
      %778 = vrot.lane.b32.xlu0 %v386, 8
      %v779 = vpop.permute.xlu0 %778
      %780 = vrot.lane.b32.xlu0 %v387, 8
      %v781 = vpop.permute.xlu0 %780
      %782 = vrot.lane.b32.xlu0 %v388, 8
      %v783 = vpop.permute.xlu0 %782
      %784 = vrot.lane.b32.xlu0 %v389, 8
      %v785 = vpop.permute.xlu0 %784
      %786 = vrot.lane.b32.xlu0 %v390, 8
      %v787 = vpop.permute.xlu0 %786
      %788 = vrot.lane.b32.xlu0 %v391, 8
      %v789 = vpop.permute.xlu0 %788
      %790 = vrot.lane.b32.xlu0 %v392, 8
      %v791 = vpop.permute.xlu0 %790
      %792 = vrot.lane.b32.xlu0 %v393, 8
      %v793 = vpop.permute.xlu0 %792
      %794 = vrot.lane.b32.xlu0 %v394, 8
      %v795 = vpop.permute.xlu0 %794
      %796 = vrot.lane.b32.xlu0 %v395, 8
      %v797 = vpop.permute.xlu0 %796
      %798 = vrot.lane.b32.xlu0 %v396, 8
      %v799 = vpop.permute.xlu0 %798
      %800 = vrot.lane.b32.xlu0 %v397, 8
      %v801 = vpop.permute.xlu0 %800
      %802 = vrot.lane.b32.xlu0 %v398, 8
      %v803 = vpop.permute.xlu0 %802
      %804 = vrot.lane.b32.xlu0 %v399, 8
      %v805 = vpop.permute.xlu0 %804
      %806 = vrot.lane.b32.xlu0 %v400, 8
      %v807 = vpop.permute.xlu0 %806
      %808 = vrot.lane.b32.xlu0 %v401, 8
      %v809 = vpop.permute.xlu0 %808
      %810 = vrot.lane.b32.xlu0 %v402, 8
      %v811 = vpop.permute.xlu0 %810
      %812 = vrot.lane.b32.xlu0 %v403, 8
      %v813 = vpop.permute.xlu0 %812
      %814 = vrot.lane.b32.xlu0 %v404, 8
      %v815 = vpop.permute.xlu0 %814
      %816 = vrot.lane.b32.xlu0 %v405, 8
      %v817 = vpop.permute.xlu0 %816
      %818 = vrot.lane.b32.xlu0 %v406, 8
      %v819 = vpop.permute.xlu0 %818
      %820 = vrot.lane.b32.xlu0 %v407, 8
      %v821 = vpop.permute.xlu0 %820
      %822 = vrot.lane.b32.xlu0 %v408, 8
      %v823 = vpop.permute.xlu0 %822
      %824 = vrot.lane.b32.xlu0 %v409, 8
      %v825 = vpop.permute.xlu0 %824
      %826 = vrot.lane.b32.xlu0 %v410, 8
      %v827 = vpop.permute.xlu0 %826
      %892 = vrot.lane.b32.xlu0 %v411, 12
      %v893 = vpop.permute.xlu0 %892
      %894 = vrot.lane.b32.xlu0 %v412, 12
      %v895 = vpop.permute.xlu0 %894
      %896 = vrot.lane.b32.xlu0 %v413, 12
      %v897 = vpop.permute.xlu0 %896
      %898 = vrot.lane.b32.xlu0 %v414, 12
      %v899 = vpop.permute.xlu0 %898
      %900 = vrot.lane.b32.xlu0 %v415, 12
      %v901 = vpop.permute.xlu0 %900
      %902 = vrot.lane.b32.xlu0 %v416, 12
      %v903 = vpop.permute.xlu0 %902
      %904 = vrot.lane.b32.xlu0 %v417, 12
      %v905 = vpop.permute.xlu0 %904
      %906 = vrot.lane.b32.xlu0 %v418, 12
      %v907 = vpop.permute.xlu0 %906
      %908 = vrot.lane.b32.xlu0 %v419, 12
      %v909 = vpop.permute.xlu0 %908
      %910 = vrot.lane.b32.xlu0 %v420, 12
      %v911 = vpop.permute.xlu0 %910
      %912 = vrot.lane.b32.xlu0 %v421, 12
      %v913 = vpop.permute.xlu0 %912
      %914 = vrot.lane.b32.xlu0 %v422, 12
      %v915 = vpop.permute.xlu0 %914
      %916 = vrot.lane.b32.xlu0 %v423, 12
      %v917 = vpop.permute.xlu0 %916
      %918 = vrot.lane.b32.xlu0 %v424, 12
      %v919 = vpop.permute.xlu0 %918
      %920 = vrot.lane.b32.xlu0 %v425, 12
      %v921 = vpop.permute.xlu0 %920
      %922 = vrot.lane.b32.xlu0 %v426, 12
      %v923 = vpop.permute.xlu0 %922
      %924 = vrot.lane.b32.xlu0 %v427, 12
      %v925 = vpop.permute.xlu0 %924
      %926 = vrot.lane.b32.xlu0 %v428, 12
      %v927 = vpop.permute.xlu0 %926
      %928 = vrot.lane.b32.xlu0 %v429, 12
      %v929 = vpop.permute.xlu0 %928
      %930 = vrot.lane.b32.xlu0 %v430, 12
      %v931 = vpop.permute.xlu0 %930
      %932 = vrot.lane.b32.xlu0 %v431, 12
      %v933 = vpop.permute.xlu0 %932
      %934 = vrot.lane.b32.xlu0 %v432, 12
      %v935 = vpop.permute.xlu0 %934
      %936 = vrot.lane.b32.xlu0 %v433, 12
      %v937 = vpop.permute.xlu0 %936
      %938 = vrot.lane.b32.xlu0 %v434, 12
      %v939 = vpop.permute.xlu0 %938
      %940 = vrot.lane.b32.xlu0 %v435, 12
      %v941 = vpop.permute.xlu0 %940
      %942 = vrot.lane.b32.xlu0 %v436, 12
      %v943 = vpop.permute.xlu0 %942
      %944 = vrot.lane.b32.xlu0 %v437, 12
      %v945 = vpop.permute.xlu0 %944
      %946 = vrot.lane.b32.xlu0 %v438, 12
      %v947 = vpop.permute.xlu0 %946
      %948 = vrot.lane.b32.xlu0 %v439, 12
      %v949 = vpop.permute.xlu0 %948
      %950 = vrot.lane.b32.xlu0 %v440, 12
      %v951 = vpop.permute.xlu0 %950
      %952 = vrot.lane.b32.xlu0 %v441, 12
      %v953 = vpop.permute.xlu0 %952
      %954 = vrot.lane.b32.xlu0 %v442, 12
      %v955 = vpop.permute.xlu0 %954
      %1020 = vrot.lane.b32.xlu0 %v443, 16
      %v1021 = vpop.permute.xlu0 %1020
      %1022 = vrot.lane.b32.xlu0 %v444, 16
      %v1023 = vpop.permute.xlu0 %1022
      %1024 = vrot.lane.b32.xlu0 %v445, 16
      %v1025 = vpop.permute.xlu0 %1024
      %1026 = vrot.lane.b32.xlu0 %v446, 16
      %v1027 = vpop.permute.xlu0 %1026
      %1028 = vrot.lane.b32.xlu0 %v447, 16
      %v1029 = vpop.permute.xlu0 %1028
      %1030 = vrot.lane.b32.xlu0 %v448, 16
      %v1031 = vpop.permute.xlu0 %1030
      %1032 = vrot.lane.b32.xlu0 %v449, 16
      %v1033 = vpop.permute.xlu0 %1032
      %1034 = vrot.lane.b32.xlu0 %v450, 16
      %v1035 = vpop.permute.xlu0 %1034
      %1036 = vrot.lane.b32.xlu0 %v451, 16
      %v1037 = vpop.permute.xlu0 %1036
      %1038 = vrot.lane.b32.xlu0 %v452, 16
      %v1039 = vpop.permute.xlu0 %1038
      %1040 = vrot.lane.b32.xlu0 %v453, 16
      %v1041 = vpop.permute.xlu0 %1040
      %1042 = vrot.lane.b32.xlu0 %v454, 16
      %v1043 = vpop.permute.xlu0 %1042
      %1044 = vrot.lane.b32.xlu0 %v455, 16
      %v1045 = vpop.permute.xlu0 %1044
      %1046 = vrot.lane.b32.xlu0 %v456, 16
      %v1047 = vpop.permute.xlu0 %1046
      %1048 = vrot.lane.b32.xlu0 %v457, 16
      %v1049 = vpop.permute.xlu0 %1048
      %1050 = vrot.lane.b32.xlu0 %v458, 16
      %v1051 = vpop.permute.xlu0 %1050
      %1052 = vrot.lane.b32.xlu0 %v459, 16
      %v1053 = vpop.permute.xlu0 %1052
      %1054 = vrot.lane.b32.xlu0 %v460, 16
      %v1055 = vpop.permute.xlu0 %1054
      %1056 = vrot.lane.b32.xlu0 %v461, 16
      %v1057 = vpop.permute.xlu0 %1056
      %1058 = vrot.lane.b32.xlu0 %v462, 16
      %v1059 = vpop.permute.xlu0 %1058
      %1060 = vrot.lane.b32.xlu0 %v463, 16
      %v1061 = vpop.permute.xlu0 %1060
      %1062 = vrot.lane.b32.xlu0 %v464, 16
      %v1063 = vpop.permute.xlu0 %1062
      %1064 = vrot.lane.b32.xlu0 %v465, 16
      %v1065 = vpop.permute.xlu0 %1064
      %1066 = vrot.lane.b32.xlu0 %v466, 16
      %v1067 = vpop.permute.xlu0 %1066
      %1068 = vrot.lane.b32.xlu0 %v467, 16
      %v1069 = vpop.permute.xlu0 %1068
      %1070 = vrot.lane.b32.xlu0 %v468, 16
      %v1071 = vpop.permute.xlu0 %1070
      %1072 = vrot.lane.b32.xlu0 %v469, 16
      %v1073 = vpop.permute.xlu0 %1072
      %1074 = vrot.lane.b32.xlu0 %v470, 16
      %v1075 = vpop.permute.xlu0 %1074
      %1076 = vrot.lane.b32.xlu0 %v471, 16
      %v1077 = vpop.permute.xlu0 %1076
      %1078 = vrot.lane.b32.xlu0 %v472, 16
      %v1079 = vpop.permute.xlu0 %1078
      %1080 = vrot.lane.b32.xlu0 %v473, 16
      %v1081 = vpop.permute.xlu0 %1080
      %1082 = vrot.lane.b32.xlu0 %v474, 16
      %v1083 = vpop.permute.xlu0 %1082
      %1148 = vrot.lane.b32.xlu0 %v475, 20
      %v1149 = vpop.permute.xlu0 %1148
      %1150 = vrot.lane.b32.xlu0 %v476, 20
      %v1151 = vpop.permute.xlu0 %1150
      %1152 = vrot.lane.b32.xlu0 %v477, 20
      %v1153 = vpop.permute.xlu0 %1152
      %1154 = vrot.lane.b32.xlu0 %v478, 20
      %v1155 = vpop.permute.xlu0 %1154
      %1156 = vrot.lane.b32.xlu0 %v479, 20
      %v1157 = vpop.permute.xlu0 %1156
      %1158 = vrot.lane.b32.xlu0 %v480, 20
      %v1159 = vpop.permute.xlu0 %1158
      %1160 = vrot.lane.b32.xlu0 %v481, 20
      %v1161 = vpop.permute.xlu0 %1160
      %1162 = vrot.lane.b32.xlu0 %v482, 20
      %v1163 = vpop.permute.xlu0 %1162
      %1164 = vrot.lane.b32.xlu0 %v483, 20
      %v1165 = vpop.permute.xlu0 %1164
      %1166 = vrot.lane.b32.xlu0 %v484, 20
      %v1167 = vpop.permute.xlu0 %1166
      %1168 = vrot.lane.b32.xlu0 %v485, 20
      %v1169 = vpop.permute.xlu0 %1168
      %1170 = vrot.lane.b32.xlu0 %v486, 20
      %v1171 = vpop.permute.xlu0 %1170
      %1172 = vrot.lane.b32.xlu0 %v487, 20
      %v1173 = vpop.permute.xlu0 %1172
      %1174 = vrot.lane.b32.xlu0 %v488, 20
      %v1175 = vpop.permute.xlu0 %1174
      %1176 = vrot.lane.b32.xlu0 %v489, 20
      %v1177 = vpop.permute.xlu0 %1176
      %1178 = vrot.lane.b32.xlu0 %v490, 20
      %v1179 = vpop.permute.xlu0 %1178
      %1180 = vrot.lane.b32.xlu0 %v491, 20
      %v1181 = vpop.permute.xlu0 %1180
      %1182 = vrot.lane.b32.xlu0 %v492, 20
      %v1183 = vpop.permute.xlu0 %1182
      %1184 = vrot.lane.b32.xlu0 %v493, 20
      %v1185 = vpop.permute.xlu0 %1184
      %1186 = vrot.lane.b32.xlu0 %v494, 20
      %v1187 = vpop.permute.xlu0 %1186
      %1188 = vrot.lane.b32.xlu0 %v495, 20
      %v1189 = vpop.permute.xlu0 %1188
      %1190 = vrot.lane.b32.xlu0 %v496, 20
      %v1191 = vpop.permute.xlu0 %1190
      %1192 = vrot.lane.b32.xlu0 %v497, 20
      %v1193 = vpop.permute.xlu0 %1192
      %1194 = vrot.lane.b32.xlu0 %v498, 20
      %v1195 = vpop.permute.xlu0 %1194
      %1196 = vrot.lane.b32.xlu0 %v499, 20
      %v1197 = vpop.permute.xlu0 %1196
      %1198 = vrot.lane.b32.xlu0 %v500, 20
      %v1199 = vpop.permute.xlu0 %1198
      %1200 = vrot.lane.b32.xlu0 %v501, 20
      %v1201 = vpop.permute.xlu0 %1200
      %1202 = vrot.lane.b32.xlu0 %v502, 20
      %v1203 = vpop.permute.xlu0 %1202
      %1204 = vrot.lane.b32.xlu0 %v503, 20
      %v1205 = vpop.permute.xlu0 %1204
      %1206 = vrot.lane.b32.xlu0 %v504, 20
      %v1207 = vpop.permute.xlu0 %1206
      %1208 = vrot.lane.b32.xlu0 %v505, 20
      %v1209 = vpop.permute.xlu0 %1208
      %1210 = vrot.lane.b32.xlu0 %v506, 20
      %v1211 = vpop.permute.xlu0 %1210
      %1276 = vrot.lane.b32.xlu0 %v508, 24
      %v1277 = vpop.permute.xlu0 %1276
      %1278 = vrot.lane.b32.xlu0 %v509, 24
      %v1279 = vpop.permute.xlu0 %1278
      %1280 = vrot.lane.b32.xlu0 %v510, 24
      %v1281 = vpop.permute.xlu0 %1280
      %1282 = vrot.lane.b32.xlu0 %v511, 24
      %v1283 = vpop.permute.xlu0 %1282
      %1284 = vrot.lane.b32.xlu0 %v512, 24
      %v1285 = vpop.permute.xlu0 %1284
      %1286 = vrot.lane.b32.xlu0 %v513, 24
      %v1287 = vpop.permute.xlu0 %1286
      %1288 = vrot.lane.b32.xlu0 %v514, 24
      %v1289 = vpop.permute.xlu0 %1288
      %1290 = vrot.lane.b32.xlu0 %v515, 24
      %v1291 = vpop.permute.xlu0 %1290
      %1292 = vrot.lane.b32.xlu0 %v516, 24
      %v1293 = vpop.permute.xlu0 %1292
      %1294 = vrot.lane.b32.xlu0 %v517, 24
      %v1295 = vpop.permute.xlu0 %1294
      %1296 = vrot.lane.b32.xlu0 %v518, 24
      %v1297 = vpop.permute.xlu0 %1296
      %1298 = vrot.lane.b32.xlu0 %v519, 24
      %v1299 = vpop.permute.xlu0 %1298
      %1300 = vrot.lane.b32.xlu0 %v520, 24
      %v1301 = vpop.permute.xlu0 %1300
      %1302 = vrot.lane.b32.xlu0 %v521, 24
      %v1303 = vpop.permute.xlu0 %1302
      %1304 = vrot.lane.b32.xlu0 %v522, 24
      %v1305 = vpop.permute.xlu0 %1304
      %1306 = vrot.lane.b32.xlu0 %v523, 24
      %v1307 = vpop.permute.xlu0 %1306
      %1308 = vrot.lane.b32.xlu0 %v524, 24
      %v1309 = vpop.permute.xlu0 %1308
      %1310 = vrot.lane.b32.xlu0 %v525, 24
      %v1311 = vpop.permute.xlu0 %1310
      %1312 = vrot.lane.b32.xlu0 %v526, 24
      %v1313 = vpop.permute.xlu0 %1312
      %1314 = vrot.lane.b32.xlu0 %v527, 24
      %v1315 = vpop.permute.xlu0 %1314
      %1316 = vrot.lane.b32.xlu0 %v528, 24
      %v1317 = vpop.permute.xlu0 %1316
      %1318 = vrot.lane.b32.xlu0 %v529, 24
      %v1319 = vpop.permute.xlu0 %1318
      %1320 = vrot.lane.b32.xlu0 %v530, 24
      %v1321 = vpop.permute.xlu0 %1320
      %1322 = vrot.lane.b32.xlu0 %v531, 24
      %v1323 = vpop.permute.xlu0 %1322
      %1324 = vrot.lane.b32.xlu0 %v532, 24
      %v1325 = vpop.permute.xlu0 %1324
      %1326 = vrot.lane.b32.xlu0 %v533, 24
      %v1327 = vpop.permute.xlu0 %1326
      %1328 = vrot.lane.b32.xlu0 %v534, 24
      %v1329 = vpop.permute.xlu0 %1328
      %1330 = vrot.lane.b32.xlu0 %v535, 24
      %v1331 = vpop.permute.xlu0 %1330
      %1332 = vrot.lane.b32.xlu0 %v536, 24
      %v1333 = vpop.permute.xlu0 %1332
      %1334 = vrot.lane.b32.xlu0 %v537, 24
      %v1335 = vpop.permute.xlu0 %1334
      %1336 = vrot.lane.b32.xlu0 %v538, 24
      %v1337 = vpop.permute.xlu0 %1336
      %1338 = vrot.lane.b32.xlu0 %v539, 24
      %v1339 = vpop.permute.xlu0 %1338
      %1404 = vrot.lane.b32.xlu0 %v540, 28
      %v1405 = vpop.permute.xlu0 %1404
      %1406 = vrot.lane.b32.xlu0 %v541, 28
      %v1407 = vpop.permute.xlu0 %1406
      %1408 = vrot.lane.b32.xlu0 %v542, 28
      %v1409 = vpop.permute.xlu0 %1408
      %1410 = vrot.lane.b32.xlu0 %v543, 28
      %v1411 = vpop.permute.xlu0 %1410
      %1412 = vrot.lane.b32.xlu0 %v544, 28
      %v1413 = vpop.permute.xlu0 %1412
      %1414 = vrot.lane.b32.xlu0 %v545, 28
      %v1415 = vpop.permute.xlu0 %1414
      %1416 = vrot.lane.b32.xlu0 %v546, 28
      %v1417 = vpop.permute.xlu0 %1416
      %1418 = vrot.lane.b32.xlu0 %v547, 28
      %v1419 = vpop.permute.xlu0 %1418
      %1420 = vrot.lane.b32.xlu0 %v548, 28
      %v1421 = vpop.permute.xlu0 %1420
      %1422 = vrot.lane.b32.xlu0 %v549, 28
      %v1423 = vpop.permute.xlu0 %1422
      %1424 = vrot.lane.b32.xlu0 %v550, 28
      %v1425 = vpop.permute.xlu0 %1424
      %1426 = vrot.lane.b32.xlu0 %v551, 28
      %v1427 = vpop.permute.xlu0 %1426
      %1428 = vrot.lane.b32.xlu0 %v552, 28
      %v1429 = vpop.permute.xlu0 %1428
      %1430 = vrot.lane.b32.xlu0 %v553, 28
      %v1431 = vpop.permute.xlu0 %1430
      %1432 = vrot.lane.b32.xlu0 %v554, 28
      %v1433 = vpop.permute.xlu0 %1432
      %1434 = vrot.lane.b32.xlu0 %v555, 28
      %v1435 = vpop.permute.xlu0 %1434
      %1436 = vrot.lane.b32.xlu0 %v556, 28
      %v1437 = vpop.permute.xlu0 %1436
      %1438 = vrot.lane.b32.xlu0 %v557, 28
      %v1439 = vpop.permute.xlu0 %1438
      %1440 = vrot.lane.b32.xlu0 %v558, 28
      %v1441 = vpop.permute.xlu0 %1440
      %1442 = vrot.lane.b32.xlu0 %v559, 28
      %v1443 = vpop.permute.xlu0 %1442
      %1444 = vrot.lane.b32.xlu0 %v560, 28
      %v1445 = vpop.permute.xlu0 %1444
      %1446 = vrot.lane.b32.xlu0 %v561, 28
      %v1447 = vpop.permute.xlu0 %1446
      %1448 = vrot.lane.b32.xlu0 %v562, 28
      %v1449 = vpop.permute.xlu0 %1448
      %1450 = vrot.lane.b32.xlu0 %v563, 28
      %v1451 = vpop.permute.xlu0 %1450
      %1452 = vrot.lane.b32.xlu0 %v564, 28
      %v1453 = vpop.permute.xlu0 %1452
      %1454 = vrot.lane.b32.xlu0 %v565, 28
      %v1455 = vpop.permute.xlu0 %1454
      %1456 = vrot.lane.b32.xlu0 %v566, 28
      %v1457 = vpop.permute.xlu0 %1456
      %1458 = vrot.lane.b32.xlu0 %v567, 28
      %v1459 = vpop.permute.xlu0 %1458
      %1460 = vrot.lane.b32.xlu0 %v568, 28
      %v1461 = vpop.permute.xlu0 %1460
      %1462 = vrot.lane.b32.xlu0 %v569, 28
      %v1463 = vpop.permute.xlu0 %1462
      %1464 = vrot.lane.b32.xlu0 %v570, 28
      %v1465 = vpop.permute.xlu0 %1464
      %1466 = vrot.lane.b32.xlu0 %v571, 28
      %v1467 = vpop.permute.xlu0 %1466
      %1532 = vrot.lane.b32.xlu0 %v572, 32
      %v1533 = vpop.permute.xlu0 %1532
      %1534 = vrot.lane.b32.xlu0 %v573, 32
      %v1535 = vpop.permute.xlu0 %1534
      %1536 = vrot.lane.b32.xlu0 %v574, 32
      %v1537 = vpop.permute.xlu0 %1536
      %1538 = vrot.lane.b32.xlu0 %v575, 32
      %v1539 = vpop.permute.xlu0 %1538
      %1540 = vrot.lane.b32.xlu0 %v576, 32
      %v1541 = vpop.permute.xlu0 %1540
      %1542 = vrot.lane.b32.xlu0 %v577, 32
      %v1543 = vpop.permute.xlu0 %1542
      %1544 = vrot.lane.b32.xlu0 %v578, 32
      %v1545 = vpop.permute.xlu0 %1544
      %1546 = vrot.lane.b32.xlu0 %v579, 32
      %v1547 = vpop.permute.xlu0 %1546
      %1548 = vrot.lane.b32.xlu0 %v580, 32
      %v1549 = vpop.permute.xlu0 %1548
      %1550 = vrot.lane.b32.xlu0 %v581, 32
      %v1551 = vpop.permute.xlu0 %1550
      %1552 = vrot.lane.b32.xlu0 %v582, 32
      %v1553 = vpop.permute.xlu0 %1552
      %1554 = vrot.lane.b32.xlu0 %v583, 32
      %v1555 = vpop.permute.xlu0 %1554
      %1556 = vrot.lane.b32.xlu0 %v584, 32
      %v1557 = vpop.permute.xlu0 %1556
      %1558 = vrot.lane.b32.xlu0 %v585, 32
      %v1559 = vpop.permute.xlu0 %1558
      %1560 = vrot.lane.b32.xlu0 %v586, 32
      %v1561 = vpop.permute.xlu0 %1560
      %1562 = vrot.lane.b32.xlu0 %v587, 32
      %v1563 = vpop.permute.xlu0 %1562
      %1564 = vrot.lane.b32.xlu0 %v588, 32
      %v1565 = vpop.permute.xlu0 %1564
      %1566 = vrot.lane.b32.xlu0 %v589, 32
      %v1567 = vpop.permute.xlu0 %1566
      %1568 = vrot.lane.b32.xlu0 %v590, 32
      %v1569 = vpop.permute.xlu0 %1568
      %1570 = vrot.lane.b32.xlu0 %v591, 32
      %v1571 = vpop.permute.xlu0 %1570
      %1572 = vrot.lane.b32.xlu0 %v592, 32
      %v1573 = vpop.permute.xlu0 %1572
      %1574 = vrot.lane.b32.xlu0 %v593, 32
      %v1575 = vpop.permute.xlu0 %1574
      %1576 = vrot.lane.b32.xlu0 %v594, 32
      %v1577 = vpop.permute.xlu0 %1576
      %1578 = vrot.lane.b32.xlu0 %v595, 32
      %v1579 = vpop.permute.xlu0 %1578
      %1580 = vrot.lane.b32.xlu0 %v596, 32
      %v1581 = vpop.permute.xlu0 %1580
      %1582 = vrot.lane.b32.xlu0 %v597, 32
      %v1583 = vpop.permute.xlu0 %1582
      %1584 = vrot.lane.b32.xlu0 %v598, 32
      %v1585 = vpop.permute.xlu0 %1584
      %1586 = vrot.lane.b32.xlu0 %v599, 32
      %v1587 = vpop.permute.xlu0 %1586
      %1588 = vrot.lane.b32.xlu0 %v600, 32
      %v1589 = vpop.permute.xlu0 %1588
      %1590 = vrot.lane.b32.xlu0 %v601, 32
      %v1591 = vpop.permute.xlu0 %1590
      %1592 = vrot.lane.b32.xlu0 %v602, 32
      %v1593 = vpop.permute.xlu0 %1592
      %1594 = vrot.lane.b32.xlu0 %v603, 32
      %v1595 = vpop.permute.xlu0 %1594
      %v1628 = vsel %vm204, %v315, %v637
      %v1629 = vsel %vm204, %v316, %v639
      %v1630 = vsel %vm204, %v317, %v641
      %v1631 = vsel %vm204, %v318, %v643
      %v1632 = vsel %vm204, %v319, %v645
      %v1633 = vsel %vm204, %v320, %v647
      %v1634 = vsel %vm204, %v321, %v649
      %v1635 = vsel %vm204, %v322, %v651
      %v1636 = vsel %vm204, %v323, %v653
      %v1637 = vsel %vm204, %v324, %v655
      %v1638 = vsel %vm204, %v325, %v657
      %v1639 = vsel %vm204, %v326, %v659
      %v1640 = vsel %vm204, %v327, %v661
      %v1641 = vsel %vm204, %v328, %v663
      %v1642 = vsel %vm204, %v329, %v665
      %v1643 = vsel %vm204, %v330, %v667
      %v1644 = vsel %vm204, %v331, %v669
      %v1645 = vsel %vm204, %v332, %v671
      %v1646 = vsel %vm204, %v333, %v673
      %v1647 = vsel %vm204, %v334, %v675
      %v1648 = vsel %vm204, %v335, %v677
      %v1649 = vsel %vm204, %v336, %v679
      %v1650 = vsel %vm204, %v337, %v681
      %v1651 = vsel %vm204, %v338, %v683
      %v1652 = vsel %vm204, %v339, %v685
      %v1653 = vsel %vm204, %v340, %v687
      %v1654 = vsel %vm204, %v341, %v689
      %v1655 = vsel %vm204, %v342, %v691
      %v1656 = vsel %vm204, %v343, %v693
      %v1657 = vsel %vm204, %v344, %v695
      %v1658 = vsel %vm204, %v345, %v697
      %v1659 = vsel %vm204, %v346, %v699
      %vm1660 = vcmask 64512
      %v1661 = vsel %vm1660, %v1628, %v765
      %v1662 = vsel %vm1660, %v1629, %v767
      %v1663 = vsel %vm1660, %v1630, %v769
      %v1664 = vsel %vm1660, %v1631, %v771
      %v1665 = vsel %vm1660, %v1632, %v773
      %v1666 = vsel %vm1660, %v1633, %v775
      %v1667 = vsel %vm1660, %v1634, %v777
      %v1668 = vsel %vm1660, %v1635, %v779
      %v1669 = vsel %vm1660, %v1636, %v781
      %v1670 = vsel %vm1660, %v1637, %v783
      %v1671 = vsel %vm1660, %v1638, %v785
      %v1672 = vsel %vm1660, %v1639, %v787
      %v1673 = vsel %vm1660, %v1640, %v789
      %v1674 = vsel %vm1660, %v1641, %v791
      %v1675 = vsel %vm1660, %v1642, %v793
      %v1676 = vsel %vm1660, %v1643, %v795
      %v1677 = vsel %vm1660, %v1644, %v797
      %v1678 = vsel %vm1660, %v1645, %v799
      %v1679 = vsel %vm1660, %v1646, %v801
      %v1680 = vsel %vm1660, %v1647, %v803
      %v1681 = vsel %vm1660, %v1648, %v805
      %v1682 = vsel %vm1660, %v1649, %v807
      %v1683 = vsel %vm1660, %v1650, %v809
      %v1684 = vsel %vm1660, %v1651, %v811
      %v1685 = vsel %vm1660, %v1652, %v813
      %v1686 = vsel %vm1660, %v1653, %v815
      %v1687 = vsel %vm1660, %v1654, %v817
      %v1688 = vsel %vm1660, %v1655, %v819
      %v1689 = vsel %vm1660, %v1656, %v821
      %v1690 = vsel %vm1660, %v1657, %v823
      %v1691 = vsel %vm1660, %v1658, %v825
      %v1692 = vsel %vm1660, %v1659, %v827
      %vm1693 = vcmask 97280
      %v1694 = vsel %vm1693, %v1661, %v893
      %v1695 = vsel %vm1693, %v1662, %v895
      %v1696 = vsel %vm1693, %v1663, %v897
      %v1697 = vsel %vm1693, %v1664, %v899
      %v1698 = vsel %vm1693, %v1665, %v901
      %v1699 = vsel %vm1693, %v1666, %v903
      %v1700 = vsel %vm1693, %v1667, %v905
      %v1701 = vsel %vm1693, %v1668, %v907
      %v1702 = vsel %vm1693, %v1669, %v909
      %v1703 = vsel %vm1693, %v1670, %v911
      %v1704 = vsel %vm1693, %v1671, %v913
      %v1705 = vsel %vm1693, %v1672, %v915
      %v1706 = vsel %vm1693, %v1673, %v917
      %v1707 = vsel %vm1693, %v1674, %v919
      %v1708 = vsel %vm1693, %v1675, %v921
      %v1709 = vsel %vm1693, %v1676, %v923
      %v1710 = vsel %vm1693, %v1677, %v925
      %v1711 = vsel %vm1693, %v1678, %v927
      %v1712 = vsel %vm1693, %v1679, %v929
      %v1713 = vsel %vm1693, %v1680, %v931
      %v1714 = vsel %vm1693, %v1681, %v933
      %v1715 = vsel %vm1693, %v1682, %v935
      %v1716 = vsel %vm1693, %v1683, %v937
      %v1717 = vsel %vm1693, %v1684, %v939
      %v1718 = vsel %vm1693, %v1685, %v941
      %v1719 = vsel %vm1693, %v1686, %v943
      %v1720 = vsel %vm1693, %v1687, %v945
      %v1721 = vsel %vm1693, %v1688, %v947
      %v1722 = vsel %vm1693, %v1689, %v949
      %v1723 = vsel %vm1693, %v1690, %v951
      %v1724 = vsel %vm1693, %v1691, %v953
      %v1725 = vsel %vm1693, %v1692, %v955
      %vm1726 = vcmask 130048
      %v1727 = vsel %vm1726, %v1694, %v1021
      %v1728 = vsel %vm1726, %v1695, %v1023
      %v1729 = vsel %vm1726, %v1696, %v1025
      %v1730 = vsel %vm1726, %v1697, %v1027
      %v1731 = vsel %vm1726, %v1698, %v1029
      %v1732 = vsel %vm1726, %v1699, %v1031
      %v1733 = vsel %vm1726, %v1700, %v1033
      %v1734 = vsel %vm1726, %v1701, %v1035
      %v1735 = vsel %vm1726, %v1702, %v1037
      %v1736 = vsel %vm1726, %v1703, %v1039
      %v1737 = vsel %vm1726, %v1704, %v1041
      %v1738 = vsel %vm1726, %v1705, %v1043
      %v1739 = vsel %vm1726, %v1706, %v1045
      %v1740 = vsel %vm1726, %v1707, %v1047
      %v1741 = vsel %vm1726, %v1708, %v1049
      %v1742 = vsel %vm1726, %v1709, %v1051
      %v1743 = vsel %vm1726, %v1710, %v1053
      %v1744 = vsel %vm1726, %v1711, %v1055
      %v1745 = vsel %vm1726, %v1712, %v1057
      %v1746 = vsel %vm1726, %v1713, %v1059
      %v1747 = vsel %vm1726, %v1714, %v1061
      %v1748 = vsel %vm1726, %v1715, %v1063
      %v1749 = vsel %vm1726, %v1716, %v1065
      %v1750 = vsel %vm1726, %v1717, %v1067
      %v1751 = vsel %vm1726, %v1718, %v1069
      %v1752 = vsel %vm1726, %v1719, %v1071
      %v1753 = vsel %vm1726, %v1720, %v1073
      %v1754 = vsel %vm1726, %v1721, %v1075
      %v1755 = vsel %vm1726, %v1722, %v1077
      %v1756 = vsel %vm1726, %v1723, %v1079
      %v1757 = vsel %vm1726, %v1724, %v1081
      %v1758 = vsel %vm1726, %v1725, %v1083
      %vm1759 = vcmask 162816
      %v1760 = vsel %vm1759, %v1727, %v1149
      %v1761 = vsel %vm1759, %v1728, %v1151
      %v1762 = vsel %vm1759, %v1729, %v1153
      %v1763 = vsel %vm1759, %v1730, %v1155
      %v1764 = vsel %vm1759, %v1731, %v1157
      %v1765 = vsel %vm1759, %v1732, %v1159
      %v1766 = vsel %vm1759, %v1733, %v1161
      %v1767 = vsel %vm1759, %v1734, %v1163
      %v1768 = vsel %vm1759, %v1735, %v1165
      %v1769 = vsel %vm1759, %v1736, %v1167
      %v1770 = vsel %vm1759, %v1737, %v1169
      %v1771 = vsel %vm1759, %v1738, %v1171
      %v1772 = vsel %vm1759, %v1739, %v1173
      %v1773 = vsel %vm1759, %v1740, %v1175
      %v1774 = vsel %vm1759, %v1741, %v1177
      %v1775 = vsel %vm1759, %v1742, %v1179
      %v1776 = vsel %vm1759, %v1743, %v1181
      %v1777 = vsel %vm1759, %v1744, %v1183
      %v1778 = vsel %vm1759, %v1745, %v1185
      %v1779 = vsel %vm1759, %v1746, %v1187
      %v1780 = vsel %vm1759, %v1747, %v1189
      %v1781 = vsel %vm1759, %v1748, %v1191
      %v1782 = vsel %vm1759, %v1749, %v1193
      %v1783 = vsel %vm1759, %v1750, %v1195
      %v1784 = vsel %vm1759, %v1751, %v1197
      %v1785 = vsel %vm1759, %v1752, %v1199
      %v1786 = vsel %vm1759, %v1753, %v1201
      %v1787 = vsel %vm1759, %v1754, %v1203
      %v1788 = vsel %vm1759, %v1755, %v1205
      %v1789 = vsel %vm1759, %v1756, %v1207
      %v1790 = vsel %vm1759, %v1757, %v1209
      %v1791 = vsel %vm1759, %v1758, %v1211
      %vm1792 = vcmask 195584
      %v1793 = vsel %vm1792, %v1760, %v1277
      %v1794 = vsel %vm1792, %v1761, %v1279
      %v1795 = vsel %vm1792, %v1762, %v1281
      %v1796 = vsel %vm1792, %v1763, %v1283
      %v1797 = vsel %vm1792, %v1764, %v1285
      %v1798 = vsel %vm1792, %v1765, %v1287
      %v1799 = vsel %vm1792, %v1766, %v1289
      %v1800 = vsel %vm1792, %v1767, %v1291
      %v1801 = vsel %vm1792, %v1768, %v1293
      %v1802 = vsel %vm1792, %v1769, %v1295
      %v1803 = vsel %vm1792, %v1770, %v1297
      %v1804 = vsel %vm1792, %v1771, %v1299
      %v1805 = vsel %vm1792, %v1772, %v1301
      %v1806 = vsel %vm1792, %v1773, %v1303
      %v1807 = vsel %vm1792, %v1774, %v1305
      %v1808 = vsel %vm1792, %v1775, %v1307
      %v1809 = vsel %vm1792, %v1776, %v1309
      %v1810 = vsel %vm1792, %v1777, %v1311
      %v1811 = vsel %vm1792, %v1778, %v1313
      %v1812 = vsel %vm1792, %v1779, %v1315
      %v1813 = vsel %vm1792, %v1780, %v1317
      %v1814 = vsel %vm1792, %v1781, %v1319
      %v1815 = vsel %vm1792, %v1782, %v1321
      %v1816 = vsel %vm1792, %v1783, %v1323
      %v1817 = vsel %vm1792, %v1784, %v1325
      %v1818 = vsel %vm1792, %v1785, %v1327
      %v1819 = vsel %vm1792, %v1786, %v1329
      %v1820 = vsel %vm1792, %v1787, %v1331
      %v1821 = vsel %vm1792, %v1788, %v1333
      %v1822 = vsel %vm1792, %v1789, %v1335
      %v1823 = vsel %vm1792, %v1790, %v1337
      %v1824 = vsel %vm1792, %v1791, %v1339
      %vm1825 = vcmask 228352
      %v1826 = vsel %vm1825, %v1793, %v1405
      %v1827 = vsel %vm1825, %v1794, %v1407
      %v1828 = vsel %vm1825, %v1795, %v1409
      %v1829 = vsel %vm1825, %v1796, %v1411
      %v1830 = vsel %vm1825, %v1797, %v1413
      %v1831 = vsel %vm1825, %v1798, %v1415
      %v1832 = vsel %vm1825, %v1799, %v1417
      %v1833 = vsel %vm1825, %v1800, %v1419
      %v1834 = vsel %vm1825, %v1801, %v1421
      %v1835 = vsel %vm1825, %v1802, %v1423
      %v1836 = vsel %vm1825, %v1803, %v1425
      %v1837 = vsel %vm1825, %v1804, %v1427
      %v1838 = vsel %vm1825, %v1805, %v1429
      %v1839 = vsel %vm1825, %v1806, %v1431
      %v1840 = vsel %vm1825, %v1807, %v1433
      %v1841 = vsel %vm1825, %v1808, %v1435
      %v1842 = vsel %vm1825, %v1809, %v1437
      %v1843 = vsel %vm1825, %v1810, %v1439
      %v1844 = vsel %vm1825, %v1811, %v1441
      %v1845 = vsel %vm1825, %v1812, %v1443
      %v1846 = vsel %vm1825, %v1813, %v1445
      %v1847 = vsel %vm1825, %v1814, %v1447
      %v1848 = vsel %vm1825, %v1815, %v1449
      %v1849 = vsel %vm1825, %v1816, %v1451
      %v1850 = vsel %vm1825, %v1817, %v1453
      %v1851 = vsel %vm1825, %v1818, %v1455
      %v1852 = vsel %vm1825, %v1819, %v1457
      %v1853 = vsel %vm1825, %v1820, %v1459
      %v1854 = vsel %vm1825, %v1821, %v1461
      %v1855 = vsel %vm1825, %v1822, %v1463
      %v1856 = vsel %vm1825, %v1823, %v1465
      %v1857 = vsel %vm1825, %v1824, %v1467
      %vm1858 = vcmask 261120
      %v1859 = vsel %vm1858, %v1826, %v1533
      %v1860 = vsel %vm1858, %v1827, %v1535
      %v1861 = vsel %vm1858, %v1828, %v1537
      %v1862 = vsel %vm1858, %v1829, %v1539
      %v1863 = vsel %vm1858, %v1830, %v1541
      %v1864 = vsel %vm1858, %v1831, %v1543
      %v1865 = vsel %vm1858, %v1832, %v1545
      %v1866 = vsel %vm1858, %v1833, %v1547
      %v1867 = vsel %vm1858, %v1834, %v1549
      %v1868 = vsel %vm1858, %v1835, %v1551
      %v1869 = vsel %vm1858, %v1836, %v1553
      %v1870 = vsel %vm1858, %v1837, %v1555
      %v1871 = vsel %vm1858, %v1838, %v1557
      %v1872 = vsel %vm1858, %v1839, %v1559
      %v1873 = vsel %vm1858, %v1840, %v1561
      %v1874 = vsel %vm1858, %v1841, %v1563
      %v1875 = vsel %vm1858, %v1842, %v1565
      %v1876 = vsel %vm1858, %v1843, %v1567
      %v1877 = vsel %vm1858, %v1844, %v1569
      %v1878 = vsel %vm1858, %v1845, %v1571
      %v1879 = vsel %vm1858, %v1846, %v1573
      %v1880 = vsel %vm1858, %v1847, %v1575
      %v1881 = vsel %vm1858, %v1848, %v1577
      %v1882 = vsel %vm1858, %v1849, %v1579
      %v1883 = vsel %vm1858, %v1850, %v1581
      %v1884 = vsel %vm1858, %v1851, %v1583
      %v1885 = vsel %vm1858, %v1852, %v1585
      %v1886 = vsel %vm1858, %v1853, %v1587
      %v1887 = vsel %vm1858, %v1854, %v1589
      %v1888 = vsel %vm1858, %v1855, %v1591
      %v1889 = vsel %vm1858, %v1856, %v1593
      %v1890 = vsel %vm1858, %v1857, %v1595
      %v1891 = vld [vmem:[%s1] sm:$0xff]
      %v1892 = vld [vmem:[%s1 + $0x8] sm:$0xff]
      %v1893 = vld [vmem:[%s1 + $0x10] sm:$0xff]
      %v1894 = vld [vmem:[%s1 + $0x18] sm:$0xff]
      %v1895 = vld [vmem:[%s1 + $0x20] sm:$0xf]
      %vm1896 = vcmask 293888
      %v1898 = vsel %vm1896, %v1859, 0
      %v1901 = vsel %vm1896, %v1860, 0
      %v1904 = vsel %vm1896, %v1861, 0
      %v1907 = vsel %vm1896, %v1862, 0
      %v1910 = vsel %vm1896, %v1863, 0
      %v1913 = vsel %vm1896, %v1864, 0
      %v1916 = vsel %vm1896, %v1865, 0
      %v1919 = vsel %vm1896, %v1866, 0
      %v1922 = vsel %vm1896, %v1867, 0
      %v1925 = vsel %vm1896, %v1868, 0
      %v1928 = vsel %vm1896, %v1869, 0
      %v1931 = vsel %vm1896, %v1870, 0
      %v1934 = vsel %vm1896, %v1871, 0
      %v1937 = vsel %vm1896, %v1872, 0
      %v1940 = vsel %vm1896, %v1873, 0
      %v1943 = vsel %vm1896, %v1874, 0
      %v1946 = vsel %vm1896, %v1875, 0
      %v1949 = vsel %vm1896, %v1876, 0
      %v1952 = vsel %vm1896, %v1877, 0
      %v1955 = vsel %vm1896, %v1878, 0
      %v1958 = vsel %vm1896, %v1879, 0
      %v1961 = vsel %vm1896, %v1880, 0
      %v1964 = vsel %vm1896, %v1881, 0
      %v1967 = vsel %vm1896, %v1882, 0
      %v1970 = vsel %vm1896, %v1883, 0
      %v1973 = vsel %vm1896, %v1884, 0
      %v1976 = vsel %vm1896, %v1885, 0
      %v1979 = vsel %vm1896, %v1886, 0
      %v1982 = vsel %vm1896, %v1887, 0
      %v1985 = vsel %vm1896, %v1888, 0
      %v1988 = vsel %vm1896, %v1889, 0
      %v1991 = vsel %vm1896, %v1890, 0
      %vm1993 = vcmask 1043456
      %v1995 = vsel %vm1993, %v1895, 0
      %1997 = vmatprep.subr.mxu0 0.0
      %1998 = vmatpush1.msra.mxu0 0.0
      %1999 = vmatprep.subr.mxu0 0.0
      %2000 = vmatpush1.msra.mxu0 0.0
      %2001 = vmatprep.subr.mxu0 0.0
      %2002 = vmatpush1.msra.mxu0 0.0
      %2003 = vmatprep.subr.mxu0 0.0
      %2004 = vmatpush1.msra.mxu0 0.0
      %2005 = vmatprep.subr.mxu0 0.0
      %2006 = vmatpush1.msra.mxu0 0.0
      %2007 = vmatprep.subr.mxu0 0.0
      %2008 = vmatpush1.msra.mxu0 0.0
      %2009 = vmatprep.subr.mxu0 0.0
      %2010 = vmatpush1.msra.mxu0 0.0
      %2011 = vmatprep.subr.mxu0 0.0
      %2012 = vmatpush1.msra.mxu0 0.0
      %2013 = vmatprep.subr.mxu0 0.0
      %2014 = vmatpush1.msra.mxu0 0.0
      %2015 = vmatprep.subr.mxu0 0.0
      %2016 = vmatpush1.msra.mxu0 0.0
      %2017 = vmatprep.subr.mxu0 0.0
      %2018 = vmatpush1.msra.mxu0 0.0
      %2019 = vmatprep.subr.mxu0 0.0
      %2020 = vmatpush1.msra.mxu0 %v1995
      %2021 = vmatprep.subr.mxu0 0.0
      %2022 = vmatpush1.msra.mxu0 %v1894
      %2023 = vmatprep.subr.mxu0 0.0
      %2024 = vmatpush1.msra.mxu0 %v1893
      %2025 = vmatprep.subr.mxu0 0.0
      %2026 = vmatpush1.msra.mxu0 %v1892
      %2027 = vmatprep.subr.mxu0 0.0
      %2028 = vmatpush1.msra.mxu0 %v1891
      %2029 = vmatprep.subr.mxu0 0.0
      %2030 = vmatpush2.msra.mxu0 0.0
      %2031 = vmatprep.subr.mxu0 0.0
      %2032 = vmatpush2.msra.mxu0 0.0
      %2033 = vmatprep.subr.mxu0 0.0
      %2034 = vmatpush2.msra.mxu0 0.0
      %2035 = vmatprep.subr.mxu0 0.0
      %2036 = vmatpush2.msra.mxu0 0.0
      %2037 = vmatprep.subr.mxu0 0.0
      %2038 = vmatpush2.msra.mxu0 0.0
      %2039 = vmatprep.subr.mxu0 0.0
      %2040 = vmatpush2.msra.mxu0 0.0
      %2041 = vmatprep.subr.mxu0 0.0
      %2042 = vmatpush2.msra.mxu0 0.0
      %2043 = vmatprep.subr.mxu0 0.0
      %2044 = vmatpush2.msra.mxu0 0.0
      %2045 = vmatprep.subr.mxu0 0.0
      %2046 = vmatpush2.msra.mxu0 0.0
      %2047 = vmatprep.subr.mxu0 0.0
      %2048 = vmatpush2.msra.mxu0 0.0
      %2049 = vmatprep.subr.mxu0 0.0
      %2050 = vmatpush2.msra.mxu0 0.0
      %2051 = vmatprep.subr.mxu0 0.0
      %2052 = vmatpush2.msra.mxu0 0.0
      %2053 = vmatprep.subr.mxu0 0.0
      %2054 = vmatpush2.msra.mxu0 0.0
      %2055 = vmatprep.subr.mxu0 0.0
      %2056 = vmatpush2.msra.mxu0 0.0
      %2057 = vmatprep.subr.mxu0 0.0
      %2058 = vmatpush2.msra.mxu0 0.0
      %2059 = vmatprep.subr.mxu0 0.0
      %2060 = vmatpush2.msra.mxu0 0.0
      %2061 = vmatprep.mubr.f32.mxu0 0.0
      %2062 = vmatmul.mubr.f32.gmra.mxu0 %v1898
      %v2063 = vpop.f32.mrf.mxu0
      %v2064 = vadd.f32 0.0, %v2063
      %v2065 = vpop.f32.mrf.mxu0
      %2066 = vmatprep.mubr.f32.mxu0 0.0
      %2067 = vmatmul.mubr.f32.gmra.mxu0 %v1901
      %v2068 = vpop.f32.mrf.mxu0
      %v2069 = vadd.f32 0.0, %v2068
      %v2070 = vpop.f32.mrf.mxu0
      %2071 = vmatprep.mubr.f32.mxu0 0.0
      %2072 = vmatmul.mubr.f32.gmra.mxu0 %v1904
      %v2073 = vpop.f32.mrf.mxu0
      %v2074 = vadd.f32 0.0, %v2073
      %v2075 = vpop.f32.mrf.mxu0
      %2076 = vmatprep.mubr.f32.mxu0 0.0
      %2077 = vmatmul.mubr.f32.gmra.mxu0 %v1907
      %v2078 = vpop.f32.mrf.mxu0
      %v2079 = vadd.f32 0.0, %v2078
      %v2080 = vpop.f32.mrf.mxu0
      %2081 = vmatprep.mubr.f32.mxu0 0.0
      %2082 = vmatmul.mubr.f32.gmra.mxu0 %v1910
      %v2083 = vpop.f32.mrf.mxu0
      %v2084 = vadd.f32 0.0, %v2083
      %v2085 = vpop.f32.mrf.mxu0
      %2086 = vmatprep.mubr.f32.mxu0 0.0
      %2087 = vmatmul.mubr.f32.gmra.mxu0 %v1913
      %v2088 = vpop.f32.mrf.mxu0
      %v2089 = vadd.f32 0.0, %v2088
      %v2090 = vpop.f32.mrf.mxu0
      %2091 = vmatprep.mubr.f32.mxu0 0.0
      %2092 = vmatmul.mubr.f32.gmra.mxu0 %v1916
      %v2093 = vpop.f32.mrf.mxu0
      %v2094 = vadd.f32 0.0, %v2093
      %v2095 = vpop.f32.mrf.mxu0
      %2096 = vmatprep.mubr.f32.mxu0 0.0
      %2097 = vmatmul.mubr.f32.gmra.mxu0 %v1919
      %v2098 = vpop.f32.mrf.mxu0
      %v2099 = vadd.f32 0.0, %v2098
      %v2100 = vpop.f32.mrf.mxu0
      %2101 = vmatprep.mubr.f32.mxu0 0.0
      %2102 = vmatmul.mubr.f32.gmra.mxu0 %v1922
      %v2103 = vpop.f32.mrf.mxu0
      %v2104 = vadd.f32 0.0, %v2103
      %v2105 = vpop.f32.mrf.mxu0
      %2106 = vmatprep.mubr.f32.mxu0 0.0
      %2107 = vmatmul.mubr.f32.gmra.mxu0 %v1925
      %v2108 = vpop.f32.mrf.mxu0
      %v2109 = vadd.f32 0.0, %v2108
      %v2110 = vpop.f32.mrf.mxu0
      %2111 = vmatprep.mubr.f32.mxu0 0.0
      %2112 = vmatmul.mubr.f32.gmra.mxu0 %v1928
      %v2113 = vpop.f32.mrf.mxu0
      %v2114 = vadd.f32 0.0, %v2113
      %v2115 = vpop.f32.mrf.mxu0
      %2116 = vmatprep.mubr.f32.mxu0 0.0
      %2117 = vmatmul.mubr.f32.gmra.mxu0 %v1931
      %v2118 = vpop.f32.mrf.mxu0
      %v2119 = vadd.f32 0.0, %v2118
      %v2120 = vpop.f32.mrf.mxu0
      %2121 = vmatprep.mubr.f32.mxu0 0.0
      %2122 = vmatmul.mubr.f32.gmra.mxu0 %v1934
      %v2123 = vpop.f32.mrf.mxu0
      %v2124 = vadd.f32 0.0, %v2123
      %v2125 = vpop.f32.mrf.mxu0
      %2126 = vmatprep.mubr.f32.mxu0 0.0
      %2127 = vmatmul.mubr.f32.gmra.mxu0 %v1937
      %v2128 = vpop.f32.mrf.mxu0
      %v2129 = vadd.f32 0.0, %v2128
      %v2130 = vpop.f32.mrf.mxu0
      %2131 = vmatprep.mubr.f32.mxu0 0.0
      %2132 = vmatmul.mubr.f32.gmra.mxu0 %v1940
      %v2133 = vpop.f32.mrf.mxu0
      %v2134 = vadd.f32 0.0, %v2133
      %v2135 = vpop.f32.mrf.mxu0
      %2136 = vmatprep.mubr.f32.mxu0 0.0
      %2137 = vmatmul.mubr.f32.gmra.mxu0 %v1943
      %v2138 = vpop.f32.mrf.mxu0
      %v2139 = vadd.f32 0.0, %v2138
      %v2140 = vpop.f32.mrf.mxu0
      %2141 = vmatprep.mubr.f32.mxu0 0.0
      %2142 = vmatmul.mubr.f32.gmra.mxu0 %v1946
      %v2143 = vpop.f32.mrf.mxu0
      %v2144 = vadd.f32 0.0, %v2143
      %v2145 = vpop.f32.mrf.mxu0
      %2146 = vmatprep.mubr.f32.mxu0 0.0
      %2147 = vmatmul.mubr.f32.gmra.mxu0 %v1949
      %v2148 = vpop.f32.mrf.mxu0
      %v2149 = vadd.f32 0.0, %v2148
      %v2150 = vpop.f32.mrf.mxu0
      %2151 = vmatprep.mubr.f32.mxu0 0.0
      %2152 = vmatmul.mubr.f32.gmra.mxu0 %v1952
      %v2153 = vpop.f32.mrf.mxu0
      %v2154 = vadd.f32 0.0, %v2153
      %v2155 = vpop.f32.mrf.mxu0
      %2156 = vmatprep.mubr.f32.mxu0 0.0
      %2157 = vmatmul.mubr.f32.gmra.mxu0 %v1955
      %v2158 = vpop.f32.mrf.mxu0
      %v2159 = vadd.f32 0.0, %v2158
      %v2160 = vpop.f32.mrf.mxu0
      %2161 = vmatprep.mubr.f32.mxu0 0.0
      %2162 = vmatmul.mubr.f32.gmra.mxu0 %v1958
      %v2163 = vpop.f32.mrf.mxu0
      %v2164 = vadd.f32 0.0, %v2163
      %v2165 = vpop.f32.mrf.mxu0
      %2166 = vmatprep.mubr.f32.mxu0 0.0
      %2167 = vmatmul.mubr.f32.gmra.mxu0 %v1961
      %v2168 = vpop.f32.mrf.mxu0
      %v2169 = vadd.f32 0.0, %v2168
      %v2170 = vpop.f32.mrf.mxu0
      %2171 = vmatprep.mubr.f32.mxu0 0.0
      %2172 = vmatmul.mubr.f32.gmra.mxu0 %v1964
      %v2173 = vpop.f32.mrf.mxu0
      %v2174 = vadd.f32 0.0, %v2173
      %v2175 = vpop.f32.mrf.mxu0
      %2176 = vmatprep.mubr.f32.mxu0 0.0
      %2177 = vmatmul.mubr.f32.gmra.mxu0 %v1967
      %v2178 = vpop.f32.mrf.mxu0
      %v2179 = vadd.f32 0.0, %v2178
      %v2180 = vpop.f32.mrf.mxu0
      %2181 = vmatprep.mubr.f32.mxu0 0.0
      %2182 = vmatmul.mubr.f32.gmra.mxu0 %v1970
      %v2183 = vpop.f32.mrf.mxu0
      %v2184 = vadd.f32 0.0, %v2183
      %v2185 = vpop.f32.mrf.mxu0
      %2186 = vmatprep.mubr.f32.mxu0 0.0
      %2187 = vmatmul.mubr.f32.gmra.mxu0 %v1973
      %v2188 = vpop.f32.mrf.mxu0
      %v2189 = vadd.f32 0.0, %v2188
      %v2190 = vpop.f32.mrf.mxu0
      %2191 = vmatprep.mubr.f32.mxu0 0.0
      %2192 = vmatmul.mubr.f32.gmra.mxu0 %v1976
      %v2193 = vpop.f32.mrf.mxu0
      %v2194 = vadd.f32 0.0, %v2193
      %v2195 = vpop.f32.mrf.mxu0
      %2196 = vmatprep.mubr.f32.mxu0 0.0
      %2197 = vmatmul.mubr.f32.gmra.mxu0 %v1979
      %v2198 = vpop.f32.mrf.mxu0
      %v2199 = vadd.f32 0.0, %v2198
      %v2200 = vpop.f32.mrf.mxu0
      %2201 = vmatprep.mubr.f32.mxu0 0.0
      %2202 = vmatmul.mubr.f32.gmra.mxu0 %v1982
      %v2203 = vpop.f32.mrf.mxu0
      %v2204 = vadd.f32 0.0, %v2203
      %v2205 = vpop.f32.mrf.mxu0
      %2206 = vmatprep.mubr.f32.mxu0 0.0
      %2207 = vmatmul.mubr.f32.gmra.mxu0 %v1985
      %v2208 = vpop.f32.mrf.mxu0
      %v2209 = vadd.f32 0.0, %v2208
      %v2210 = vpop.f32.mrf.mxu0
      %2211 = vmatprep.mubr.f32.mxu0 0.0
      %2212 = vmatmul.mubr.f32.gmra.mxu0 %v1988
      %v2213 = vpop.f32.mrf.mxu0
      %v2214 = vadd.f32 0.0, %v2213
      %v2215 = vpop.f32.mrf.mxu0
      %2216 = vmatprep.mubr.f32.mxu0 0.0
      %2217 = vmatmul.mubr.f32.gmra.mxu0 %v1991
      %v2218 = vpop.f32.mrf.mxu0
      %v2219 = vadd.f32 0.0, %v2218
      %v2220 = vpop.f32.mrf.mxu0
      %2221 = vdwg.mxu0
      %v2222 = vsel %vm204, %v2064, 0.0
      %v2223 = vsel %vm204, %v2069, 0.0
      %v2224 = vadd.f32 %v2222, %v2223
      %v2225 = vsel %vm204, %v2074, 0.0
      %v2226 = vadd.f32 %v2224, %v2225
      %v2227 = vsel %vm204, %v2079, 0.0
      %v2228 = vadd.f32 %v2226, %v2227
      %v2229 = vsel %vm204, %v2084, 0.0
      %v2230 = vadd.f32 %v2228, %v2229
      %v2231 = vsel %vm204, %v2089, 0.0
      %v2232 = vadd.f32 %v2230, %v2231
      %v2233 = vsel %vm204, %v2094, 0.0
      %v2234 = vadd.f32 %v2232, %v2233
      %v2235 = vsel %vm204, %v2099, 0.0
      %v2236 = vadd.f32 %v2234, %v2235
      %v2237 = vsel %vm204, %v2104, 0.0
      %v2238 = vadd.f32 %v2236, %v2237
      %v2239 = vsel %vm204, %v2109, 0.0
      %v2240 = vadd.f32 %v2238, %v2239
      %v2241 = vsel %vm204, %v2114, 0.0
      %v2242 = vadd.f32 %v2240, %v2241
      %v2243 = vsel %vm204, %v2119, 0.0
      %v2244 = vadd.f32 %v2242, %v2243
      %v2245 = vsel %vm204, %v2124, 0.0
      %v2246 = vadd.f32 %v2244, %v2245
      %v2247 = vsel %vm204, %v2129, 0.0
      %v2248 = vadd.f32 %v2246, %v2247
      %v2249 = vsel %vm204, %v2134, 0.0
      %v2250 = vadd.f32 %v2248, %v2249
      %v2251 = vsel %vm204, %v2139, 0.0
      %v2252 = vadd.f32 %v2250, %v2251
      %v2253 = vsel %vm204, %v2144, 0.0
      %v2254 = vadd.f32 %v2252, %v2253
      %v2255 = vsel %vm204, %v2149, 0.0
      %v2256 = vadd.f32 %v2254, %v2255
      %v2257 = vsel %vm204, %v2154, 0.0
      %v2258 = vadd.f32 %v2256, %v2257
      %v2259 = vsel %vm204, %v2159, 0.0
      %v2260 = vadd.f32 %v2258, %v2259
      %v2261 = vsel %vm204, %v2164, 0.0
      %v2262 = vadd.f32 %v2260, %v2261
      %v2263 = vsel %vm204, %v2169, 0.0
      %v2264 = vadd.f32 %v2262, %v2263
      %v2265 = vsel %vm204, %v2174, 0.0
      %v2266 = vadd.f32 %v2264, %v2265
      %v2267 = vsel %vm204, %v2179, 0.0
      %v2268 = vadd.f32 %v2266, %v2267
      %v2269 = vsel %vm204, %v2184, 0.0
      %v2270 = vadd.f32 %v2268, %v2269
      %v2271 = vsel %vm204, %v2189, 0.0
      %v2272 = vadd.f32 %v2270, %v2271
      %v2273 = vsel %vm204, %v2194, 0.0
      %v2274 = vadd.f32 %v2272, %v2273
      %v2275 = vsel %vm204, %v2199, 0.0
      %v2276 = vadd.f32 %v2274, %v2275
      %v2277 = vsel %vm204, %v2204, 0.0
      %v2278 = vadd.f32 %v2276, %v2277
      %v2279 = vsel %vm204, %v2209, 0.0
      %v2280 = vadd.f32 %v2278, %v2279
      %v2281 = vsel %vm204, %v2214, 0.0
      %v2282 = vadd.f32 %v2280, %v2281
      %v2283 = vsel %vm204, %v2219, 0.0
      %v2284 = vadd.f32 %v2282, %v2283
      %v2285 = vrot.slane %v2284, 4
      %v2286 = vadd.f32 %v2284, %v2285
      %v2287 = vrot.slane %v2286, 2
      %v2288 = vadd.f32 %v2286, %v2287
      %v2289 = vrot.slane %v2288, 1
      %v2290 = vadd.f32 %v2288, %v2289
      %v2291 = vmul.f32 %v2290, 0.00390625
      %v2292 = vsub.f32 %v2064, %v2291
      %v2293 = vsub.f32 %v2069, %v2291
      %v2294 = vsub.f32 %v2074, %v2291
      %v2295 = vsub.f32 %v2079, %v2291
      %v2296 = vsub.f32 %v2084, %v2291
      %v2297 = vsub.f32 %v2089, %v2291
      %v2298 = vsub.f32 %v2094, %v2291
      %v2299 = vsub.f32 %v2099, %v2291
      %v2300 = vsub.f32 %v2104, %v2291
      %v2301 = vsub.f32 %v2109, %v2291
      %v2302 = vsub.f32 %v2114, %v2291
      %v2303 = vsub.f32 %v2119, %v2291
      %v2304 = vsub.f32 %v2124, %v2291
      %v2305 = vsub.f32 %v2129, %v2291
      %v2306 = vsub.f32 %v2134, %v2291
      %v2307 = vsub.f32 %v2139, %v2291
      %v2308 = vsub.f32 %v2144, %v2291
      %v2309 = vsub.f32 %v2149, %v2291
      %v2310 = vsub.f32 %v2154, %v2291
      %v2311 = vsub.f32 %v2159, %v2291
      %v2312 = vsub.f32 %v2164, %v2291
      %v2313 = vsub.f32 %v2169, %v2291
      %v2314 = vsub.f32 %v2174, %v2291
      %v2315 = vsub.f32 %v2179, %v2291
      %v2316 = vsub.f32 %v2184, %v2291
      %v2317 = vsub.f32 %v2189, %v2291
      %v2318 = vsub.f32 %v2194, %v2291
      %v2319 = vsub.f32 %v2199, %v2291
      %v2320 = vsub.f32 %v2204, %v2291
      %v2321 = vsub.f32 %v2209, %v2291
      %v2322 = vsub.f32 %v2214, %v2291
      %v2323 = vsub.f32 %v2219, %v2291
      %v2324 = vmul.f32 %v2292, %v2292
      %v2325 = vmul.f32 %v2293, %v2293
      %v2326 = vmul.f32 %v2294, %v2294
      %v2327 = vmul.f32 %v2295, %v2295
      %v2328 = vmul.f32 %v2296, %v2296
      %v2329 = vmul.f32 %v2297, %v2297
      %v2330 = vmul.f32 %v2298, %v2298
      %v2331 = vmul.f32 %v2299, %v2299
      %v2332 = vmul.f32 %v2300, %v2300
      %v2333 = vmul.f32 %v2301, %v2301
      %v2334 = vmul.f32 %v2302, %v2302
      %v2335 = vmul.f32 %v2303, %v2303
      %v2336 = vmul.f32 %v2304, %v2304
      %v2337 = vmul.f32 %v2305, %v2305
      %v2338 = vmul.f32 %v2306, %v2306
      %v2339 = vmul.f32 %v2307, %v2307
      %v2340 = vmul.f32 %v2308, %v2308
      %v2341 = vmul.f32 %v2309, %v2309
      %v2342 = vmul.f32 %v2310, %v2310
      %v2343 = vmul.f32 %v2311, %v2311
      %v2344 = vmul.f32 %v2312, %v2312
      %v2345 = vmul.f32 %v2313, %v2313
      %v2346 = vmul.f32 %v2314, %v2314
      %v2347 = vmul.f32 %v2315, %v2315
      %v2348 = vmul.f32 %v2316, %v2316
      %v2349 = vmul.f32 %v2317, %v2317
      %v2350 = vmul.f32 %v2318, %v2318
      %v2351 = vmul.f32 %v2319, %v2319
      %v2352 = vmul.f32 %v2320, %v2320
      %v2353 = vmul.f32 %v2321, %v2321
      %v2354 = vmul.f32 %v2322, %v2322
      %v2355 = vmul.f32 %v2323, %v2323
      %v2356 = vsel %vm204, %v2324, 0.0
      %v2357 = vsel %vm204, %v2325, 0.0
      %v2358 = vadd.f32 %v2356, %v2357
      %v2359 = vsel %vm204, %v2326, 0.0
      %v2360 = vadd.f32 %v2358, %v2359
      %v2361 = vsel %vm204, %v2327, 0.0
      %v2362 = vadd.f32 %v2360, %v2361
      %v2363 = vsel %vm204, %v2328, 0.0
      %v2364 = vadd.f32 %v2362, %v2363
      %v2365 = vsel %vm204, %v2329, 0.0
      %v2366 = vadd.f32 %v2364, %v2365
      %v2367 = vsel %vm204, %v2330, 0.0
      %v2368 = vadd.f32 %v2366, %v2367
      %v2369 = vsel %vm204, %v2331, 0.0
      %v2370 = vadd.f32 %v2368, %v2369
      %v2371 = vsel %vm204, %v2332, 0.0
      %v2372 = vadd.f32 %v2370, %v2371
      %v2373 = vsel %vm204, %v2333, 0.0
      %v2374 = vadd.f32 %v2372, %v2373
      %v2375 = vsel %vm204, %v2334, 0.0
      %v2376 = vadd.f32 %v2374, %v2375
      %v2377 = vsel %vm204, %v2335, 0.0
      %v2378 = vadd.f32 %v2376, %v2377
      %v2379 = vsel %vm204, %v2336, 0.0
      %v2380 = vadd.f32 %v2378, %v2379
      %v2381 = vsel %vm204, %v2337, 0.0
      %v2382 = vadd.f32 %v2380, %v2381
      %v2383 = vsel %vm204, %v2338, 0.0
      %v2384 = vadd.f32 %v2382, %v2383
      %v2385 = vsel %vm204, %v2339, 0.0
      %v2386 = vadd.f32 %v2384, %v2385
      %v2387 = vsel %vm204, %v2340, 0.0
      %v2388 = vadd.f32 %v2386, %v2387
      %v2389 = vsel %vm204, %v2341, 0.0
      %v2390 = vadd.f32 %v2388, %v2389
      %v2391 = vsel %vm204, %v2342, 0.0
      %v2392 = vadd.f32 %v2390, %v2391
      %v2393 = vsel %vm204, %v2343, 0.0
      %v2394 = vadd.f32 %v2392, %v2393
      %v2395 = vsel %vm204, %v2344, 0.0
      %v2396 = vadd.f32 %v2394, %v2395
      %v2397 = vsel %vm204, %v2345, 0.0
      %v2398 = vadd.f32 %v2396, %v2397
      %v2399 = vsel %vm204, %v2346, 0.0
      %v2400 = vadd.f32 %v2398, %v2399
      %v2401 = vsel %vm204, %v2347, 0.0
      %v2402 = vadd.f32 %v2400, %v2401
      %v2403 = vsel %vm204, %v2348, 0.0
      %v2404 = vadd.f32 %v2402, %v2403
      %v2405 = vsel %vm204, %v2349, 0.0
      %v2406 = vadd.f32 %v2404, %v2405
      %v2407 = vsel %vm204, %v2350, 0.0
      %v2408 = vadd.f32 %v2406, %v2407
      %v2409 = vsel %vm204, %v2351, 0.0
      %v2410 = vadd.f32 %v2408, %v2409
      %v2411 = vsel %vm204, %v2352, 0.0
      %v2412 = vadd.f32 %v2410, %v2411
      %v2413 = vsel %vm204, %v2353, 0.0
      %v2414 = vadd.f32 %v2412, %v2413
      %v2415 = vsel %vm204, %v2354, 0.0
      %v2416 = vadd.f32 %v2414, %v2415
      %v2417 = vsel %vm204, %v2355, 0.0
      %v2418 = vadd.f32 %v2416, %v2417
      %v2419 = vrot.slane %v2418, 4
      %v2420 = vadd.f32 %v2418, %v2419
      %v2421 = vrot.slane %v2420, 2
      %v2422 = vadd.f32 %v2420, %v2421
      %v2423 = vrot.slane %v2422, 1
      %v2424 = vadd.f32 %v2422, %v2423
      %v2425 = vmul.f32 %v2424, 0.00390625
      %v2426 = vadd.f32 %v2425, 1e-05
      %v2427 = vrsqrt.pop %v2426
      %v2428 = vmul.f32 %v2292, %v2427
      %v2429 = vmul.f32 %v2293, %v2427
      %v2430 = vmul.f32 %v2294, %v2427
      %v2431 = vmul.f32 %v2295, %v2427
      %v2432 = vmul.f32 %v2296, %v2427
      %v2433 = vmul.f32 %v2297, %v2427
      %v2434 = vmul.f32 %v2298, %v2427
      %v2435 = vmul.f32 %v2299, %v2427
      %v2436 = vmul.f32 %v2300, %v2427
      %v2437 = vmul.f32 %v2301, %v2427
      %v2438 = vmul.f32 %v2302, %v2427
      %v2439 = vmul.f32 %v2303, %v2427
      %v2440 = vmul.f32 %v2304, %v2427
      %v2441 = vmul.f32 %v2305, %v2427
      %v2442 = vmul.f32 %v2306, %v2427
      %v2443 = vmul.f32 %v2307, %v2427
      %v2444 = vmul.f32 %v2308, %v2427
      %v2445 = vmul.f32 %v2309, %v2427
      %v2446 = vmul.f32 %v2310, %v2427
      %v2447 = vmul.f32 %v2311, %v2427
      %v2448 = vmul.f32 %v2312, %v2427
      %v2449 = vmul.f32 %v2313, %v2427
      %v2450 = vmul.f32 %v2314, %v2427
      %v2451 = vmul.f32 %v2315, %v2427
      %v2452 = vmul.f32 %v2316, %v2427
      %v2453 = vmul.f32 %v2317, %v2427
      %v2454 = vmul.f32 %v2318, %v2427
      %v2455 = vmul.f32 %v2319, %v2427
      %v2456 = vmul.f32 %v2320, %v2427
      %v2457 = vmul.f32 %v2321, %v2427
      %v2458 = vmul.f32 %v2322, %v2427
      %v2459 = vmul.f32 %v2323, %v2427
      %v2460 = vmax.f32 %v2428, 0.0
      %v2461 = vmax.f32 %v2429, 0.0
      %v2462 = vmax.f32 %v2430, 0.0
      %v2463 = vmax.f32 %v2431, 0.0
      %v2464 = vmax.f32 %v2432, 0.0
      %v2465 = vmax.f32 %v2433, 0.0
      %v2466 = vmax.f32 %v2434, 0.0
      %v2467 = vmax.f32 %v2435, 0.0
      %v2468 = vmax.f32 %v2436, 0.0
      %v2469 = vmax.f32 %v2437, 0.0
      %v2470 = vmax.f32 %v2438, 0.0
      %v2471 = vmax.f32 %v2439, 0.0
      %v2472 = vmax.f32 %v2440, 0.0
      %v2473 = vmax.f32 %v2441, 0.0
      %v2474 = vmax.f32 %v2442, 0.0
      %v2475 = vmax.f32 %v2443, 0.0
      %v2476 = vmax.f32 %v2444, 0.0
      %v2477 = vmax.f32 %v2445, 0.0
      %v2478 = vmax.f32 %v2446, 0.0
      %v2479 = vmax.f32 %v2447, 0.0
      %v2480 = vmax.f32 %v2448, 0.0
      %v2481 = vmax.f32 %v2449, 0.0
      %v2482 = vmax.f32 %v2450, 0.0
      %v2483 = vmax.f32 %v2451, 0.0
      %v2484 = vmax.f32 %v2452, 0.0
      %v2485 = vmax.f32 %v2453, 0.0
      %v2486 = vmax.f32 %v2454, 0.0
      %v2487 = vmax.f32 %v2455, 0.0
      %v2488 = vmax.f32 %v2456, 0.0
      %v2489 = vmax.f32 %v2457, 0.0
      %v2490 = vmax.f32 %v2458, 0.0
      %v2491 = vmax.f32 %v2459, 0.0
      %2492 = vst.msk [vmem:[%s203 + $0x1] sm:$0xff] %vm204, %v2460
      %2493 = vst.msk [vmem:[%s203 + $0x9] sm:$0xff] %vm204, %v2461
      %2494 = vst.msk [vmem:[%s203 + $0x19] sm:$0xff] %vm204, %v2462
      %2495 = vst.msk [vmem:[%s203 + $0x21] sm:$0xff] %vm204, %v2463
      %2496 = vst.msk [vmem:[%s203 + $0x31] sm:$0xff] %vm204, %v2464
      %2497 = vst.msk [vmem:[%s203 + $0x39] sm:$0xff] %vm204, %v2465
      %2498 = vst.msk [vmem:[%s203 + $0x49] sm:$0xff] %vm204, %v2466
      %2499 = vst.msk [vmem:[%s203 + $0x51] sm:$0xff] %vm204, %v2467
      %2500 = vst.msk [vmem:[%s203 + $0x61] sm:$0xff] %vm204, %v2468
      %2501 = vst.msk [vmem:[%s203 + $0x69] sm:$0xff] %vm204, %v2469
      %2502 = vst.msk [vmem:[%s203 + $0x79] sm:$0xff] %vm204, %v2470
      %2503 = vst.msk [vmem:[%s203 + $0x81] sm:$0xff] %vm204, %v2471
      %2504 = vst.msk [vmem:[%s203 + $0x91] sm:$0xff] %vm204, %v2472
      %2505 = vst.msk [vmem:[%s203 + $0x99] sm:$0xff] %vm204, %v2473
      %2506 = vst.msk [vmem:[%s203 + $0xa9] sm:$0xff] %vm204, %v2474
      %2507 = vst.msk [vmem:[%s203 + $0xb1] sm:$0xff] %vm204, %v2475
      %2508 = vst.msk [vmem:[%s203 + $0xc1] sm:$0xff] %vm204, %v2476
      %2509 = vst.msk [vmem:[%s203 + $0xc9] sm:$0xff] %vm204, %v2477
      %2510 = vst.msk [vmem:[%s203 + $0xd9] sm:$0xff] %vm204, %v2478
      %2511 = vst.msk [vmem:[%s203 + $0xe1] sm:$0xff] %vm204, %v2479
      %2512 = vst.msk [vmem:[%s203 + $0xf1] sm:$0xff] %vm204, %v2480
      %2513 = vst.msk [vmem:[%s203 + $0xf9] sm:$0xff] %vm204, %v2481
      %2514 = vst.msk [vmem:[%s203 + $0x109] sm:$0xff] %vm204, %v2482
      %2515 = vst.msk [vmem:[%s203 + $0x111] sm:$0xff] %vm204, %v2483
      %2516 = vst.msk [vmem:[%s203 + $0x121] sm:$0xff] %vm204, %v2484
      %2517 = vst.msk [vmem:[%s203 + $0x129] sm:$0xff] %vm204, %v2485
      %2518 = vst.msk [vmem:[%s203 + $0x139] sm:$0xff] %vm204, %v2486
      %2519 = vst.msk [vmem:[%s203 + $0x141] sm:$0xff] %vm204, %v2487
      %2520 = vst.msk [vmem:[%s203 + $0x151] sm:$0xff] %vm204, %v2488
      %2521 = vst.msk [vmem:[%s203 + $0x159] sm:$0xff] %vm204, %v2489
      %2522 = vst.msk [vmem:[%s203 + $0x169] sm:$0xff] %vm204, %v2490
      %2523 = vst.msk [vmem:[%s203 + $0x171] sm:$0xff] %vm204, %v2491
      %2524 = vst.msk [vmem:[#allocation2 + $0x1] sm:$0xff] %vm204, %v2462
      %2525 = vst.msk [vmem:[#allocation2 + $0x9] sm:$0xff] %vm204, %v2463
      %2526 = vst.msk [vmem:[%s239 + $0x1] sm:$0xff] %vm204, %v2488
      %2527 = vst.msk [vmem:[%s239 + $0x9] sm:$0xff] %vm204, %v2489
      %v2528 = vld [vmem:[#allocation2 + $0x2] sm:$0x1]
      %v2529 = vld [vmem:[#allocation2 + $0x1a] sm:$0x1]
      %v2530 = vld [vmem:[#allocation2 + $0x32] sm:$0x1]
      %v2531 = vld [vmem:[#allocation2 + $0x4a] sm:$0x1]
      %v2532 = vld [vmem:[#allocation2 + $0x62] sm:$0x1]
      %v2533 = vld [vmem:[#allocation2 + $0x7a] sm:$0x1]
      %v2534 = vld [vmem:[#allocation2 + $0x92] sm:$0x1]
      %v2535 = vld [vmem:[#allocation2 + $0xaa] sm:$0x1]
      %v2536 = vld [vmem:[#allocation2 + $0xc2] sm:$0x1]
      %v2537 = vld [vmem:[#allocation2 + $0xda] sm:$0x1]
      %v2538 = vld [vmem:[#allocation2 + $0xf2] sm:$0x1]
      %v2539 = vld [vmem:[#allocation2 + $0x10a] sm:$0x1]
      %v2540 = vld [vmem:[#allocation2 + $0x122] sm:$0x1]
      %v2541 = vld [vmem:[#allocation2 + $0x13a] sm:$0x1]
      %v2542 = vld [vmem:[#allocation2 + $0x152] sm:$0x1]
      %v2543 = vld [vmem:[#allocation2 + $0x16a] sm:$0x1]
      %v2544 = vld [vmem:[#allocation2 + $0x182] sm:$0x1]
      %v2545 = vld [vmem:[#allocation2 + $0x19a] sm:$0x1]
      %2546 = vst.msk [vmem:[#allocation2] sm:$0x1] %vm260, %v2528
      %2547 = vst.msk [vmem:[#allocation2 + $0x18] sm:$0x1] %vm260, %v2529
      %2548 = vst.msk [vmem:[#allocation2 + $0x30] sm:$0x1] %vm260, %v2530
      %2549 = vst.msk [vmem:[#allocation2 + $0x48] sm:$0x1] %vm260, %v2531
      %2550 = vst.msk [vmem:[#allocation2 + $0x60] sm:$0x1] %vm260, %v2532
      %2551 = vst.msk [vmem:[#allocation2 + $0x78] sm:$0x1] %vm260, %v2533
      %2552 = vst.msk [vmem:[#allocation2 + $0x90] sm:$0x1] %vm260, %v2534
      %2553 = vst.msk [vmem:[#allocation2 + $0xa8] sm:$0x1] %vm260, %v2535
      %2554 = vst.msk [vmem:[#allocation2 + $0xc0] sm:$0x1] %vm260, %v2536
      %2555 = vst.msk [vmem:[#allocation2 + $0xd8] sm:$0x1] %vm260, %v2537
      %2556 = vst.msk [vmem:[#allocation2 + $0xf0] sm:$0x1] %vm260, %v2538
      %2557 = vst.msk [vmem:[#allocation2 + $0x108] sm:$0x1] %vm260, %v2539
      %2558 = vst.msk [vmem:[#allocation2 + $0x120] sm:$0x1] %vm260, %v2540
      %2559 = vst.msk [vmem:[#allocation2 + $0x138] sm:$0x1] %vm260, %v2541
      %2560 = vst.msk [vmem:[#allocation2 + $0x150] sm:$0x1] %vm260, %v2542
      %2561 = vst.msk [vmem:[#allocation2 + $0x168] sm:$0x1] %vm260, %v2543
      %2562 = vst.msk [vmem:[#allocation2 + $0x180] sm:$0x1] %vm260, %v2544
      %2563 = vst.msk [vmem:[#allocation2 + $0x198] sm:$0x1] %vm260, %v2545
      %v2564 = vld [vmem:[#allocation2 + $0xf] sm:$0x1]
      %v2565 = vld [vmem:[#allocation2 + $0x27] sm:$0x1]
      %v2566 = vld [vmem:[#allocation2 + $0x3f] sm:$0x1]
      %v2567 = vld [vmem:[#allocation2 + $0x57] sm:$0x1]
      %v2568 = vld [vmem:[#allocation2 + $0x6f] sm:$0x1]
      %v2569 = vld [vmem:[#allocation2 + $0x87] sm:$0x1]
      %v2570 = vld [vmem:[#allocation2 + $0x9f] sm:$0x1]
      %v2571 = vld [vmem:[#allocation2 + $0xb7] sm:$0x1]
      %v2572 = vld [vmem:[#allocation2 + $0xcf] sm:$0x1]
      %v2573 = vld [vmem:[#allocation2 + $0xe7] sm:$0x1]
      %v2574 = vld [vmem:[#allocation2 + $0xff] sm:$0x1]
      %v2575 = vld [vmem:[#allocation2 + $0x117] sm:$0x1]
      %v2576 = vld [vmem:[#allocation2 + $0x12f] sm:$0x1]
      %v2577 = vld [vmem:[#allocation2 + $0x147] sm:$0x1]
      %v2578 = vld [vmem:[#allocation2 + $0x15f] sm:$0x1]
      %v2579 = vld [vmem:[#allocation2 + $0x177] sm:$0x1]
      %v2580 = vld [vmem:[#allocation2 + $0x18f] sm:$0x1]
      %v2581 = vld [vmem:[#allocation2 + $0x1a7] sm:$0x1]
      %2582 = vst.msk [vmem:[#allocation2 + $0x11] sm:$0x1] %vm260, %v2564
      %2583 = vst.msk [vmem:[#allocation2 + $0x29] sm:$0x1] %vm260, %v2565
      %2584 = vst.msk [vmem:[#allocation2 + $0x41] sm:$0x1] %vm260, %v2566
      %2585 = vst.msk [vmem:[#allocation2 + $0x59] sm:$0x1] %vm260, %v2567
      %2586 = vst.msk [vmem:[#allocation2 + $0x71] sm:$0x1] %vm260, %v2568
      %2587 = vst.msk [vmem:[#allocation2 + $0x89] sm:$0x1] %vm260, %v2569
      %2588 = vst.msk [vmem:[#allocation2 + $0xa1] sm:$0x1] %vm260, %v2570
      %2589 = vst.msk [vmem:[#allocation2 + $0xb9] sm:$0x1] %vm260, %v2571
      %2590 = vst.msk [vmem:[#allocation2 + $0xd1] sm:$0x1] %vm260, %v2572
      %2591 = vst.msk [vmem:[#allocation2 + $0xe9] sm:$0x1] %vm260, %v2573
      %2592 = vst.msk [vmem:[#allocation2 + $0x101] sm:$0x1] %vm260, %v2574
      %2593 = vst.msk [vmem:[#allocation2 + $0x119] sm:$0x1] %vm260, %v2575
      %2594 = vst.msk [vmem:[#allocation2 + $0x131] sm:$0x1] %vm260, %v2576
      %2595 = vst.msk [vmem:[#allocation2 + $0x149] sm:$0x1] %vm260, %v2577
      %2596 = vst.msk [vmem:[#allocation2 + $0x161] sm:$0x1] %vm260, %v2578
      %2597 = vst.msk [vmem:[#allocation2 + $0x179] sm:$0x1] %vm260, %v2579
      %2598 = vst.msk [vmem:[#allocation2 + $0x191] sm:$0x1] %vm260, %v2580
      %2599 = vst.msk [vmem:[#allocation2 + $0x1a9] sm:$0x1] %vm260, %v2581
      %v2600 = vld [vmem:[#allocation2] sm:$0xff]
      %v2601 = vld [vmem:[#allocation2 + $0x8] sm:$0xff]
      %v2602 = vld [vmem:[#allocation2 + $0x18] sm:$0xff]
      %v2603 = vld [vmem:[#allocation2 + $0x20] sm:$0xff]
      %v2604 = vld [vmem:[#allocation2 + $0x30] sm:$0xff]
      %v2605 = vld [vmem:[#allocation2 + $0x38] sm:$0xff]
      %v2606 = vld [vmem:[#allocation2 + $0x48] sm:$0xff]
      %v2607 = vld [vmem:[#allocation2 + $0x50] sm:$0xff]
      %v2608 = vld [vmem:[#allocation2 + $0x60] sm:$0xff]
      %v2609 = vld [vmem:[#allocation2 + $0x68] sm:$0xff]
      %v2610 = vld [vmem:[#allocation2 + $0x78] sm:$0xff]
      %v2611 = vld [vmem:[#allocation2 + $0x80] sm:$0xff]
      %v2612 = vld [vmem:[#allocation2 + $0x90] sm:$0xff]
      %v2613 = vld [vmem:[#allocation2 + $0x98] sm:$0xff]
      %v2614 = vld [vmem:[#allocation2 + $0xa8] sm:$0xff]
      %v2615 = vld [vmem:[#allocation2 + $0xb0] sm:$0xff]
      %v2616 = vld [vmem:[#allocation2 + $0xc0] sm:$0xff]
      %v2617 = vld [vmem:[#allocation2 + $0xc8] sm:$0xff]
      %v2618 = vld [vmem:[#allocation2 + $0xd8] sm:$0xff]
      %v2619 = vld [vmem:[#allocation2 + $0xe0] sm:$0xff]
      %v2620 = vld [vmem:[#allocation2 + $0xf0] sm:$0xff]
      %v2621 = vld [vmem:[#allocation2 + $0xf8] sm:$0xff]
      %v2622 = vld [vmem:[#allocation2 + $0x108] sm:$0xff]
      %v2623 = vld [vmem:[#allocation2 + $0x110] sm:$0xff]
      %v2624 = vld [vmem:[#allocation2 + $0x120] sm:$0xff]
      %v2625 = vld [vmem:[#allocation2 + $0x128] sm:$0xff]
      %v2626 = vld [vmem:[#allocation2 + $0x138] sm:$0xff]
      %v2627 = vld [vmem:[#allocation2 + $0x140] sm:$0xff]
      %v2628 = vld [vmem:[#allocation2 + $0x150] sm:$0xff]
      %v2629 = vld [vmem:[#allocation2 + $0x158] sm:$0xff]
      %v2630 = vld [vmem:[#allocation2 + $0x168] sm:$0xff]
      %v2631 = vld [vmem:[#allocation2 + $0x170] sm:$0xff]
      %v2632 = vld [vmem:[#allocation2 + $0x1] sm:$0xff]
      %v2633 = vld [vmem:[#allocation2 + $0x9] sm:$0xff]
      %v2634 = vld [vmem:[#allocation2 + $0x19] sm:$0xff]
      %v2635 = vld [vmem:[#allocation2 + $0x21] sm:$0xff]
      %v2636 = vld [vmem:[#allocation2 + $0x31] sm:$0xff]
      %v2637 = vld [vmem:[#allocation2 + $0x39] sm:$0xff]
      %v2638 = vld [vmem:[#allocation2 + $0x49] sm:$0xff]
      %v2639 = vld [vmem:[#allocation2 + $0x51] sm:$0xff]
      %v2640 = vld [vmem:[#allocation2 + $0x61] sm:$0xff]
      %v2641 = vld [vmem:[#allocation2 + $0x69] sm:$0xff]
      %v2642 = vld [vmem:[#allocation2 + $0x79] sm:$0xff]
      %v2643 = vld [vmem:[#allocation2 + $0x81] sm:$0xff]
      %v2644 = vld [vmem:[#allocation2 + $0x91] sm:$0xff]
      %v2645 = vld [vmem:[#allocation2 + $0x99] sm:$0xff]
      %v2646 = vld [vmem:[#allocation2 + $0xa9] sm:$0xff]
      %v2647 = vld [vmem:[#allocation2 + $0xb1] sm:$0xff]
      %v2648 = vld [vmem:[#allocation2 + $0xc1] sm:$0xff]
      %v2649 = vld [vmem:[#allocation2 + $0xc9] sm:$0xff]
      %v2650 = vld [vmem:[#allocation2 + $0xd9] sm:$0xff]
      %v2651 = vld [vmem:[#allocation2 + $0xe1] sm:$0xff]
      %v2652 = vld [vmem:[#allocation2 + $0xf1] sm:$0xff]
      %v2653 = vld [vmem:[#allocation2 + $0xf9] sm:$0xff]
      %v2654 = vld [vmem:[#allocation2 + $0x109] sm:$0xff]
      %v2655 = vld [vmem:[#allocation2 + $0x111] sm:$0xff]
      %v2656 = vld [vmem:[#allocation2 + $0x121] sm:$0xff]
      %v2657 = vld [vmem:[#allocation2 + $0x129] sm:$0xff]
      %v2658 = vld [vmem:[#allocation2 + $0x139] sm:$0xff]
      %v2659 = vld [vmem:[#allocation2 + $0x141] sm:$0xff]
      %v2660 = vld [vmem:[#allocation2 + $0x151] sm:$0xff]
      %v2661 = vld [vmem:[#allocation2 + $0x159] sm:$0xff]
      %v2662 = vld [vmem:[#allocation2 + $0x169] sm:$0xff]
      %v2663 = vld [vmem:[#allocation2 + $0x171] sm:$0xff]
      %v2664 = vld [vmem:[#allocation2 + $0x2] sm:$0xff]
      %v2665 = vld [vmem:[#allocation2 + $0xa] sm:$0xff]
      %v2666 = vld [vmem:[#allocation2 + $0x1a] sm:$0xff]
      %v2667 = vld [vmem:[#allocation2 + $0x22] sm:$0xff]
      %v2668 = vld [vmem:[#allocation2 + $0x32] sm:$0xff]
      %v2669 = vld [vmem:[#allocation2 + $0x3a] sm:$0xff]
      %v2670 = vld [vmem:[#allocation2 + $0x4a] sm:$0xff]
      %v2671 = vld [vmem:[#allocation2 + $0x52] sm:$0xff]
      %v2672 = vld [vmem:[#allocation2 + $0x62] sm:$0xff]
      %v2673 = vld [vmem:[#allocation2 + $0x6a] sm:$0xff]
      %v2674 = vld [vmem:[#allocation2 + $0x7a] sm:$0xff]
      %v2675 = vld [vmem:[#allocation2 + $0x82] sm:$0xff]
      %v2676 = vld [vmem:[#allocation2 + $0x92] sm:$0xff]
      %v2677 = vld [vmem:[#allocation2 + $0x9a] sm:$0xff]
      %v2678 = vld [vmem:[#allocation2 + $0xaa] sm:$0xff]
      %v2679 = vld [vmem:[#allocation2 + $0xb2] sm:$0xff]
      %v2680 = vld [vmem:[#allocation2 + $0xc2] sm:$0xff]
      %v2681 = vld [vmem:[#allocation2 + $0xca] sm:$0xff]
      %v2682 = vld [vmem:[#allocation2 + $0xda] sm:$0xff]
      %v2683 = vld [vmem:[#allocation2 + $0xe2] sm:$0xff]
      %v2684 = vld [vmem:[#allocation2 + $0xf2] sm:$0xff]
      %v2685 = vld [vmem:[#allocation2 + $0xfa] sm:$0xff]
      %v2686 = vld [vmem:[#allocation2 + $0x10a] sm:$0xff]
      %v2687 = vld [vmem:[#allocation2 + $0x112] sm:$0xff]
      %v2688 = vld [vmem:[#allocation2 + $0x122] sm:$0xff]
      %v2689 = vld [vmem:[#allocation2 + $0x12a] sm:$0xff]
      %v2690 = vld [vmem:[#allocation2 + $0x13a] sm:$0xff]
      %v2691 = vld [vmem:[#allocation2 + $0x142] sm:$0xff]
      %v2692 = vld [vmem:[#allocation2 + $0x152] sm:$0xff]
      %v2693 = vld [vmem:[#allocation2 + $0x15a] sm:$0xff]
      %v2694 = vld [vmem:[#allocation2 + $0x16a] sm:$0xff]
      %v2695 = vld [vmem:[#allocation2 + $0x172] sm:$0xff]
      %v2696 = vld [vmem:[%s203] sm:$0xff]
      %v2697 = vld [vmem:[%s203 + $0x8] sm:$0xff]
      %v2698 = vld [vmem:[%s203 + $0x18] sm:$0xff]
      %v2699 = vld [vmem:[%s203 + $0x20] sm:$0xff]
      %v2700 = vld [vmem:[%s203 + $0x30] sm:$0xff]
      %v2701 = vld [vmem:[%s203 + $0x38] sm:$0xff]
      %v2702 = vld [vmem:[%s203 + $0x48] sm:$0xff]
      %v2703 = vld [vmem:[%s203 + $0x50] sm:$0xff]
      %v2704 = vld [vmem:[%s203 + $0x60] sm:$0xff]
      %v2705 = vld [vmem:[%s203 + $0x68] sm:$0xff]
      %v2706 = vld [vmem:[%s203 + $0x78] sm:$0xff]
      %v2707 = vld [vmem:[%s203 + $0x80] sm:$0xff]
      %v2708 = vld [vmem:[%s203 + $0x90] sm:$0xff]
      %v2709 = vld [vmem:[%s203 + $0x98] sm:$0xff]
      %v2710 = vld [vmem:[%s203 + $0xa8] sm:$0xff]
      %v2711 = vld [vmem:[%s203 + $0xb0] sm:$0xff]
      %v2712 = vld [vmem:[%s203 + $0xc0] sm:$0xff]
      %v2713 = vld [vmem:[%s203 + $0xc8] sm:$0xff]
      %v2714 = vld [vmem:[%s203 + $0xd8] sm:$0xff]
      %v2715 = vld [vmem:[%s203 + $0xe0] sm:$0xff]
      %v2716 = vld [vmem:[%s203 + $0xf0] sm:$0xff]
      %v2717 = vld [vmem:[%s203 + $0xf8] sm:$0xff]
      %v2718 = vld [vmem:[%s203 + $0x108] sm:$0xff]
      %v2719 = vld [vmem:[%s203 + $0x110] sm:$0xff]
      %v2720 = vld [vmem:[%s203 + $0x120] sm:$0xff]
      %v2721 = vld [vmem:[%s203 + $0x128] sm:$0xff]
      %v2722 = vld [vmem:[%s203 + $0x138] sm:$0xff]
      %v2723 = vld [vmem:[%s203 + $0x140] sm:$0xff]
      %v2724 = vld [vmem:[%s203 + $0x150] sm:$0xff]
      %v2725 = vld [vmem:[%s203 + $0x158] sm:$0xff]
      %v2726 = vld [vmem:[%s203 + $0x168] sm:$0xff]
      %v2727 = vld [vmem:[%s203 + $0x170] sm:$0xff]
      %v2728 = vld [vmem:[%s203 + $0x1] sm:$0xff]
      %v2729 = vld [vmem:[%s203 + $0x9] sm:$0xff]
      %v2730 = vld [vmem:[%s203 + $0x19] sm:$0xff]
      %v2731 = vld [vmem:[%s203 + $0x21] sm:$0xff]
      %v2732 = vld [vmem:[%s203 + $0x31] sm:$0xff]
      %v2733 = vld [vmem:[%s203 + $0x39] sm:$0xff]
      %v2734 = vld [vmem:[%s203 + $0x49] sm:$0xff]
      %v2735 = vld [vmem:[%s203 + $0x51] sm:$0xff]
      %v2736 = vld [vmem:[%s203 + $0x61] sm:$0xff]
      %v2737 = vld [vmem:[%s203 + $0x69] sm:$0xff]
      %v2738 = vld [vmem:[%s203 + $0x79] sm:$0xff]
      %v2739 = vld [vmem:[%s203 + $0x81] sm:$0xff]
      %v2740 = vld [vmem:[%s203 + $0x91] sm:$0xff]
      %v2741 = vld [vmem:[%s203 + $0x99] sm:$0xff]
      %v2742 = vld [vmem:[%s203 + $0xa9] sm:$0xff]
      %v2743 = vld [vmem:[%s203 + $0xb1] sm:$0xff]
      %v2744 = vld [vmem:[%s203 + $0xc1] sm:$0xff]
      %v2745 = vld [vmem:[%s203 + $0xc9] sm:$0xff]
      %v2746 = vld [vmem:[%s203 + $0xd9] sm:$0xff]
      %v2747 = vld [vmem:[%s203 + $0xe1] sm:$0xff]
      %v2748 = vld [vmem:[%s203 + $0xf1] sm:$0xff]
      %v2749 = vld [vmem:[%s203 + $0xf9] sm:$0xff]
      %v2750 = vld [vmem:[%s203 + $0x109] sm:$0xff]
      %v2751 = vld [vmem:[%s203 + $0x111] sm:$0xff]
      %v2752 = vld [vmem:[%s203 + $0x121] sm:$0xff]
      %v2753 = vld [vmem:[%s203 + $0x129] sm:$0xff]
      %v2754 = vld [vmem:[%s203 + $0x139] sm:$0xff]
      %v2755 = vld [vmem:[%s203 + $0x141] sm:$0xff]
      %v2756 = vld [vmem:[%s203 + $0x151] sm:$0xff]
      %v2757 = vld [vmem:[%s203 + $0x159] sm:$0xff]
      %v2758 = vld [vmem:[%s203 + $0x169] sm:$0xff]
      %v2759 = vld [vmem:[%s203 + $0x171] sm:$0xff]
      %v2760 = vld [vmem:[%s203 + $0x2] sm:$0xff]
      %v2761 = vld [vmem:[%s203 + $0xa] sm:$0xff]
      %v2762 = vld [vmem:[%s203 + $0x1a] sm:$0xff]
      %v2763 = vld [vmem:[%s203 + $0x22] sm:$0xff]
      %v2764 = vld [vmem:[%s203 + $0x32] sm:$0xff]
      %v2765 = vld [vmem:[%s203 + $0x3a] sm:$0xff]
      %v2766 = vld [vmem:[%s203 + $0x4a] sm:$0xff]
      %v2767 = vld [vmem:[%s203 + $0x52] sm:$0xff]
      %v2768 = vld [vmem:[%s203 + $0x62] sm:$0xff]
      %v2769 = vld [vmem:[%s203 + $0x6a] sm:$0xff]
      %v2770 = vld [vmem:[%s203 + $0x7a] sm:$0xff]
      %v2771 = vld [vmem:[%s203 + $0x82] sm:$0xff]
      %v2772 = vld [vmem:[%s203 + $0x92] sm:$0xff]
      %v2773 = vld [vmem:[%s203 + $0x9a] sm:$0xff]
      %v2774 = vld [vmem:[%s203 + $0xaa] sm:$0xff]
      %v2775 = vld [vmem:[%s203 + $0xb2] sm:$0xff]
      %v2776 = vld [vmem:[%s203 + $0xc2] sm:$0xff]
      %v2777 = vld [vmem:[%s203 + $0xca] sm:$0xff]
      %v2778 = vld [vmem:[%s203 + $0xda] sm:$0xff]
      %v2779 = vld [vmem:[%s203 + $0xe2] sm:$0xff]
      %v2780 = vld [vmem:[%s203 + $0xf2] sm:$0xff]
      %v2781 = vld [vmem:[%s203 + $0xfa] sm:$0xff]
      %v2782 = vld [vmem:[%s203 + $0x10a] sm:$0xff]
      %v2783 = vld [vmem:[%s203 + $0x112] sm:$0xff]
      %v2784 = vld [vmem:[%s203 + $0x122] sm:$0xff]
      %v2785 = vld [vmem:[%s203 + $0x12a] sm:$0xff]
      %v2786 = vld [vmem:[%s203 + $0x13a] sm:$0xff]
      %v2787 = vld [vmem:[%s203 + $0x142] sm:$0xff]
      %v2788 = vld [vmem:[%s203 + $0x152] sm:$0xff]
      %v2789 = vld [vmem:[%s203 + $0x15a] sm:$0xff]
      %v2790 = vld [vmem:[%s203 + $0x16a] sm:$0xff]
      %v2791 = vld [vmem:[%s203 + $0x172] sm:$0xff]
      %v2792 = vld [vmem:[%s507] sm:$0xff]
      %v2793 = vld [vmem:[%s507 + $0x8] sm:$0xff]
      %v2794 = vld [vmem:[%s507 + $0x18] sm:$0xff]
      %v2795 = vld [vmem:[%s507 + $0x20] sm:$0xff]
      %v2796 = vld [vmem:[%s507 + $0x30] sm:$0xff]
      %v2797 = vld [vmem:[%s507 + $0x38] sm:$0xff]
      %v2798 = vld [vmem:[%s507 + $0x48] sm:$0xff]
      %v2799 = vld [vmem:[%s507 + $0x50] sm:$0xff]
      %v2800 = vld [vmem:[%s507 + $0x60] sm:$0xff]
      %v2801 = vld [vmem:[%s507 + $0x68] sm:$0xff]
      %v2802 = vld [vmem:[%s507 + $0x78] sm:$0xff]
      %v2803 = vld [vmem:[%s507 + $0x80] sm:$0xff]
      %v2804 = vld [vmem:[%s507 + $0x90] sm:$0xff]
      %v2805 = vld [vmem:[%s507 + $0x98] sm:$0xff]
      %v2806 = vld [vmem:[%s507 + $0xa8] sm:$0xff]
      %v2807 = vld [vmem:[%s507 + $0xb0] sm:$0xff]
      %v2808 = vld [vmem:[%s507 + $0xc0] sm:$0xff]
      %v2809 = vld [vmem:[%s507 + $0xc8] sm:$0xff]
      %v2810 = vld [vmem:[%s507 + $0xd8] sm:$0xff]
      %v2811 = vld [vmem:[%s507 + $0xe0] sm:$0xff]
      %v2812 = vld [vmem:[%s507 + $0xf0] sm:$0xff]
      %v2813 = vld [vmem:[%s507 + $0xf8] sm:$0xff]
      %v2814 = vld [vmem:[%s507 + $0x108] sm:$0xff]
      %v2815 = vld [vmem:[%s507 + $0x110] sm:$0xff]
      %v2816 = vld [vmem:[%s507 + $0x120] sm:$0xff]
      %v2817 = vld [vmem:[%s507 + $0x128] sm:$0xff]
      %v2818 = vld [vmem:[%s507 + $0x138] sm:$0xff]
      %v2819 = vld [vmem:[%s507 + $0x140] sm:$0xff]
      %v2820 = vld [vmem:[%s507 + $0x150] sm:$0xff]
      %v2821 = vld [vmem:[%s507 + $0x158] sm:$0xff]
      %v2822 = vld [vmem:[%s507 + $0x168] sm:$0xff]
      %v2823 = vld [vmem:[%s507 + $0x170] sm:$0xff]
      %v2824 = vld [vmem:[%s507 + $0x1] sm:$0xff]
      %v2825 = vld [vmem:[%s507 + $0x9] sm:$0xff]
      %v2826 = vld [vmem:[%s507 + $0x19] sm:$0xff]
      %v2827 = vld [vmem:[%s507 + $0x21] sm:$0xff]
      %v2828 = vld [vmem:[%s507 + $0x31] sm:$0xff]
      %v2829 = vld [vmem:[%s507 + $0x39] sm:$0xff]
      %v2830 = vld [vmem:[%s507 + $0x49] sm:$0xff]
      %v2831 = vld [vmem:[%s507 + $0x51] sm:$0xff]
      %v2832 = vld [vmem:[%s507 + $0x61] sm:$0xff]
      %v2833 = vld [vmem:[%s507 + $0x69] sm:$0xff]
      %v2834 = vld [vmem:[%s507 + $0x79] sm:$0xff]
      %v2835 = vld [vmem:[%s507 + $0x81] sm:$0xff]
      %v2836 = vld [vmem:[%s507 + $0x91] sm:$0xff]
      %v2837 = vld [vmem:[%s507 + $0x99] sm:$0xff]
      %v2838 = vld [vmem:[%s507 + $0xa9] sm:$0xff]
      %v2839 = vld [vmem:[%s507 + $0xb1] sm:$0xff]
      %v2840 = vld [vmem:[%s507 + $0xc1] sm:$0xff]
      %v2841 = vld [vmem:[%s507 + $0xc9] sm:$0xff]
      %v2842 = vld [vmem:[%s507 + $0xd9] sm:$0xff]
      %v2843 = vld [vmem:[%s507 + $0xe1] sm:$0xff]
      %v2844 = vld [vmem:[%s507 + $0xf1] sm:$0xff]
      %v2845 = vld [vmem:[%s507 + $0xf9] sm:$0xff]
      %v2846 = vld [vmem:[%s507 + $0x109] sm:$0xff]
      %v2847 = vld [vmem:[%s507 + $0x111] sm:$0xff]
      %v2848 = vld [vmem:[%s507 + $0x121] sm:$0xff]
      %v2849 = vld [vmem:[%s507 + $0x129] sm:$0xff]
      %v2850 = vld [vmem:[%s507 + $0x139] sm:$0xff]
      %v2851 = vld [vmem:[%s507 + $0x141] sm:$0xff]
      %v2852 = vld [vmem:[%s507 + $0x151] sm:$0xff]
      %v2853 = vld [vmem:[%s507 + $0x159] sm:$0xff]
      %v2854 = vld [vmem:[%s507 + $0x169] sm:$0xff]
      %v2855 = vld [vmem:[%s507 + $0x171] sm:$0xff]
      %v2856 = vld [vmem:[%s507 + $0x2] sm:$0xff]
      %v2857 = vld [vmem:[%s507 + $0xa] sm:$0xff]
      %v2858 = vld [vmem:[%s507 + $0x1a] sm:$0xff]
      %v2859 = vld [vmem:[%s507 + $0x22] sm:$0xff]
      %v2860 = vld [vmem:[%s507 + $0x32] sm:$0xff]
      %v2861 = vld [vmem:[%s507 + $0x3a] sm:$0xff]
      %v2862 = vld [vmem:[%s507 + $0x4a] sm:$0xff]
      %v2863 = vld [vmem:[%s507 + $0x52] sm:$0xff]
      %v2864 = vld [vmem:[%s507 + $0x62] sm:$0xff]
      %v2865 = vld [vmem:[%s507 + $0x6a] sm:$0xff]
      %v2866 = vld [vmem:[%s507 + $0x7a] sm:$0xff]
      %v2867 = vld [vmem:[%s507 + $0x82] sm:$0xff]
      %v2868 = vld [vmem:[%s507 + $0x92] sm:$0xff]
      %v2869 = vld [vmem:[%s507 + $0x9a] sm:$0xff]
      %v2870 = vld [vmem:[%s507 + $0xaa] sm:$0xff]
      %v2871 = vld [vmem:[%s507 + $0xb2] sm:$0xff]
      %v2872 = vld [vmem:[%s507 + $0xc2] sm:$0xff]
      %v2873 = vld [vmem:[%s507 + $0xca] sm:$0xff]
      %v2874 = vld [vmem:[%s507 + $0xda] sm:$0xff]
      %v2875 = vld [vmem:[%s507 + $0xe2] sm:$0xff]
      %v2876 = vld [vmem:[%s507 + $0xf2] sm:$0xff]
      %v2877 = vld [vmem:[%s507 + $0xfa] sm:$0xff]
      %v2878 = vld [vmem:[%s507 + $0x10a] sm:$0xff]
      %v2879 = vld [vmem:[%s507 + $0x112] sm:$0xff]
      %v2880 = vld [vmem:[%s507 + $0x122] sm:$0xff]
      %v2881 = vld [vmem:[%s507 + $0x12a] sm:$0xff]
      %v2882 = vld [vmem:[%s507 + $0x13a] sm:$0xff]
      %v2883 = vld [vmem:[%s507 + $0x142] sm:$0xff]
      %v2884 = vld [vmem:[%s507 + $0x152] sm:$0xff]
      %v2885 = vld [vmem:[%s507 + $0x15a] sm:$0xff]
      %v2886 = vld [vmem:[%s507 + $0x16a] sm:$0xff]
      %v2887 = vld [vmem:[%s507 + $0x172] sm:$0xff]
      %2920 = vrot.lane.b32.xlu0 %v2632, 4
      %v2921 = vpop.permute.xlu0 %2920
      %2922 = vrot.lane.b32.xlu0 %v2633, 4
      %v2923 = vpop.permute.xlu0 %2922
      %2924 = vrot.lane.b32.xlu0 %v2634, 4
      %v2925 = vpop.permute.xlu0 %2924
      %2926 = vrot.lane.b32.xlu0 %v2635, 4
      %v2927 = vpop.permute.xlu0 %2926
      %2928 = vrot.lane.b32.xlu0 %v2636, 4
      %v2929 = vpop.permute.xlu0 %2928
      %2930 = vrot.lane.b32.xlu0 %v2637, 4
      %v2931 = vpop.permute.xlu0 %2930
      %2932 = vrot.lane.b32.xlu0 %v2638, 4
      %v2933 = vpop.permute.xlu0 %2932
      %2934 = vrot.lane.b32.xlu0 %v2639, 4
      %v2935 = vpop.permute.xlu0 %2934
      %2936 = vrot.lane.b32.xlu0 %v2640, 4
      %v2937 = vpop.permute.xlu0 %2936
      %2938 = vrot.lane.b32.xlu0 %v2641, 4
      %v2939 = vpop.permute.xlu0 %2938
      %2940 = vrot.lane.b32.xlu0 %v2642, 4
      %v2941 = vpop.permute.xlu0 %2940
      %2942 = vrot.lane.b32.xlu0 %v2643, 4
      %v2943 = vpop.permute.xlu0 %2942
      %2944 = vrot.lane.b32.xlu0 %v2644, 4
      %v2945 = vpop.permute.xlu0 %2944
      %2946 = vrot.lane.b32.xlu0 %v2645, 4
      %v2947 = vpop.permute.xlu0 %2946
      %2948 = vrot.lane.b32.xlu0 %v2646, 4
      %v2949 = vpop.permute.xlu0 %2948
      %2950 = vrot.lane.b32.xlu0 %v2647, 4
      %v2951 = vpop.permute.xlu0 %2950
      %2952 = vrot.lane.b32.xlu0 %v2648, 4
      %v2953 = vpop.permute.xlu0 %2952
      %2954 = vrot.lane.b32.xlu0 %v2649, 4
      %v2955 = vpop.permute.xlu0 %2954
      %2956 = vrot.lane.b32.xlu0 %v2650, 4
      %v2957 = vpop.permute.xlu0 %2956
      %2958 = vrot.lane.b32.xlu0 %v2651, 4
      %v2959 = vpop.permute.xlu0 %2958
      %2960 = vrot.lane.b32.xlu0 %v2652, 4
      %v2961 = vpop.permute.xlu0 %2960
      %2962 = vrot.lane.b32.xlu0 %v2653, 4
      %v2963 = vpop.permute.xlu0 %2962
      %2964 = vrot.lane.b32.xlu0 %v2654, 4
      %v2965 = vpop.permute.xlu0 %2964
      %2966 = vrot.lane.b32.xlu0 %v2655, 4
      %v2967 = vpop.permute.xlu0 %2966
      %2968 = vrot.lane.b32.xlu0 %v2656, 4
      %v2969 = vpop.permute.xlu0 %2968
      %2970 = vrot.lane.b32.xlu0 %v2657, 4
      %v2971 = vpop.permute.xlu0 %2970
      %2972 = vrot.lane.b32.xlu0 %v2658, 4
      %v2973 = vpop.permute.xlu0 %2972
      %2974 = vrot.lane.b32.xlu0 %v2659, 4
      %v2975 = vpop.permute.xlu0 %2974
      %2976 = vrot.lane.b32.xlu0 %v2660, 4
      %v2977 = vpop.permute.xlu0 %2976
      %2978 = vrot.lane.b32.xlu0 %v2661, 4
      %v2979 = vpop.permute.xlu0 %2978
      %2980 = vrot.lane.b32.xlu0 %v2662, 4
      %v2981 = vpop.permute.xlu0 %2980
      %2982 = vrot.lane.b32.xlu0 %v2663, 4
      %v2983 = vpop.permute.xlu0 %2982
      %3048 = vrot.lane.b32.xlu0 %v2664, 8
      %v3049 = vpop.permute.xlu0 %3048
      %3050 = vrot.lane.b32.xlu0 %v2665, 8
      %v3051 = vpop.permute.xlu0 %3050
      %3052 = vrot.lane.b32.xlu0 %v2666, 8
      %v3053 = vpop.permute.xlu0 %3052
      %3054 = vrot.lane.b32.xlu0 %v2667, 8
      %v3055 = vpop.permute.xlu0 %3054
      %3056 = vrot.lane.b32.xlu0 %v2668, 8
      %v3057 = vpop.permute.xlu0 %3056
      %3058 = vrot.lane.b32.xlu0 %v2669, 8
      %v3059 = vpop.permute.xlu0 %3058
      %3060 = vrot.lane.b32.xlu0 %v2670, 8
      %v3061 = vpop.permute.xlu0 %3060
      %3062 = vrot.lane.b32.xlu0 %v2671, 8
      %v3063 = vpop.permute.xlu0 %3062
      %3064 = vrot.lane.b32.xlu0 %v2672, 8
      %v3065 = vpop.permute.xlu0 %3064
      %3066 = vrot.lane.b32.xlu0 %v2673, 8
      %v3067 = vpop.permute.xlu0 %3066
      %3068 = vrot.lane.b32.xlu0 %v2674, 8
      %v3069 = vpop.permute.xlu0 %3068
      %3070 = vrot.lane.b32.xlu0 %v2675, 8
      %v3071 = vpop.permute.xlu0 %3070
      %3072 = vrot.lane.b32.xlu0 %v2676, 8
      %v3073 = vpop.permute.xlu0 %3072
      %3074 = vrot.lane.b32.xlu0 %v2677, 8
      %v3075 = vpop.permute.xlu0 %3074
      %3076 = vrot.lane.b32.xlu0 %v2678, 8
      %v3077 = vpop.permute.xlu0 %3076
      %3078 = vrot.lane.b32.xlu0 %v2679, 8
      %v3079 = vpop.permute.xlu0 %3078
      %3080 = vrot.lane.b32.xlu0 %v2680, 8
      %v3081 = vpop.permute.xlu0 %3080
      %3082 = vrot.lane.b32.xlu0 %v2681, 8
      %v3083 = vpop.permute.xlu0 %3082
      %3084 = vrot.lane.b32.xlu0 %v2682, 8
      %v3085 = vpop.permute.xlu0 %3084
      %3086 = vrot.lane.b32.xlu0 %v2683, 8
      %v3087 = vpop.permute.xlu0 %3086
      %3088 = vrot.lane.b32.xlu0 %v2684, 8
      %v3089 = vpop.permute.xlu0 %3088
      %3090 = vrot.lane.b32.xlu0 %v2685, 8
      %v3091 = vpop.permute.xlu0 %3090
      %3092 = vrot.lane.b32.xlu0 %v2686, 8
      %v3093 = vpop.permute.xlu0 %3092
      %3094 = vrot.lane.b32.xlu0 %v2687, 8
      %v3095 = vpop.permute.xlu0 %3094
      %3096 = vrot.lane.b32.xlu0 %v2688, 8
      %v3097 = vpop.permute.xlu0 %3096
      %3098 = vrot.lane.b32.xlu0 %v2689, 8
      %v3099 = vpop.permute.xlu0 %3098
      %3100 = vrot.lane.b32.xlu0 %v2690, 8
      %v3101 = vpop.permute.xlu0 %3100
      %3102 = vrot.lane.b32.xlu0 %v2691, 8
      %v3103 = vpop.permute.xlu0 %3102
      %3104 = vrot.lane.b32.xlu0 %v2692, 8
      %v3105 = vpop.permute.xlu0 %3104
      %3106 = vrot.lane.b32.xlu0 %v2693, 8
      %v3107 = vpop.permute.xlu0 %3106
      %3108 = vrot.lane.b32.xlu0 %v2694, 8
      %v3109 = vpop.permute.xlu0 %3108
      %3110 = vrot.lane.b32.xlu0 %v2695, 8
      %v3111 = vpop.permute.xlu0 %3110
      %3176 = vrot.lane.b32.xlu0 %v2696, 12
      %v3177 = vpop.permute.xlu0 %3176
      %3178 = vrot.lane.b32.xlu0 %v2697, 12
      %v3179 = vpop.permute.xlu0 %3178
      %3180 = vrot.lane.b32.xlu0 %v2698, 12
      %v3181 = vpop.permute.xlu0 %3180
      %3182 = vrot.lane.b32.xlu0 %v2699, 12
      %v3183 = vpop.permute.xlu0 %3182
      %3184 = vrot.lane.b32.xlu0 %v2700, 12
      %v3185 = vpop.permute.xlu0 %3184
      %3186 = vrot.lane.b32.xlu0 %v2701, 12
      %v3187 = vpop.permute.xlu0 %3186
      %3188 = vrot.lane.b32.xlu0 %v2702, 12
      %v3189 = vpop.permute.xlu0 %3188
      %3190 = vrot.lane.b32.xlu0 %v2703, 12
      %v3191 = vpop.permute.xlu0 %3190
      %3192 = vrot.lane.b32.xlu0 %v2704, 12
      %v3193 = vpop.permute.xlu0 %3192
      %3194 = vrot.lane.b32.xlu0 %v2705, 12
      %v3195 = vpop.permute.xlu0 %3194
      %3196 = vrot.lane.b32.xlu0 %v2706, 12
      %v3197 = vpop.permute.xlu0 %3196
      %3198 = vrot.lane.b32.xlu0 %v2707, 12
      %v3199 = vpop.permute.xlu0 %3198
      %3200 = vrot.lane.b32.xlu0 %v2708, 12
      %v3201 = vpop.permute.xlu0 %3200
      %3202 = vrot.lane.b32.xlu0 %v2709, 12
      %v3203 = vpop.permute.xlu0 %3202
      %3204 = vrot.lane.b32.xlu0 %v2710, 12
      %v3205 = vpop.permute.xlu0 %3204
      %3206 = vrot.lane.b32.xlu0 %v2711, 12
      %v3207 = vpop.permute.xlu0 %3206
      %3208 = vrot.lane.b32.xlu0 %v2712, 12
      %v3209 = vpop.permute.xlu0 %3208
      %3210 = vrot.lane.b32.xlu0 %v2713, 12
      %v3211 = vpop.permute.xlu0 %3210
      %3212 = vrot.lane.b32.xlu0 %v2714, 12
      %v3213 = vpop.permute.xlu0 %3212
      %3214 = vrot.lane.b32.xlu0 %v2715, 12
      %v3215 = vpop.permute.xlu0 %3214
      %3216 = vrot.lane.b32.xlu0 %v2716, 12
      %v3217 = vpop.permute.xlu0 %3216
      %3218 = vrot.lane.b32.xlu0 %v2717, 12
      %v3219 = vpop.permute.xlu0 %3218
      %3220 = vrot.lane.b32.xlu0 %v2718, 12
      %v3221 = vpop.permute.xlu0 %3220
      %3222 = vrot.lane.b32.xlu0 %v2719, 12
      %v3223 = vpop.permute.xlu0 %3222
      %3224 = vrot.lane.b32.xlu0 %v2720, 12
      %v3225 = vpop.permute.xlu0 %3224
      %3226 = vrot.lane.b32.xlu0 %v2721, 12
      %v3227 = vpop.permute.xlu0 %3226
      %3228 = vrot.lane.b32.xlu0 %v2722, 12
      %v3229 = vpop.permute.xlu0 %3228
      %3230 = vrot.lane.b32.xlu0 %v2723, 12
      %v3231 = vpop.permute.xlu0 %3230
      %3232 = vrot.lane.b32.xlu0 %v2724, 12
      %v3233 = vpop.permute.xlu0 %3232
      %3234 = vrot.lane.b32.xlu0 %v2725, 12
      %v3235 = vpop.permute.xlu0 %3234
      %3236 = vrot.lane.b32.xlu0 %v2726, 12
      %v3237 = vpop.permute.xlu0 %3236
      %3238 = vrot.lane.b32.xlu0 %v2727, 12
      %v3239 = vpop.permute.xlu0 %3238
      %3304 = vrot.lane.b32.xlu0 %v2728, 16
      %v3305 = vpop.permute.xlu0 %3304
      %3306 = vrot.lane.b32.xlu0 %v2729, 16
      %v3307 = vpop.permute.xlu0 %3306
      %3308 = vrot.lane.b32.xlu0 %v2730, 16
      %v3309 = vpop.permute.xlu0 %3308
      %3310 = vrot.lane.b32.xlu0 %v2731, 16
      %v3311 = vpop.permute.xlu0 %3310
      %3312 = vrot.lane.b32.xlu0 %v2732, 16
      %v3313 = vpop.permute.xlu0 %3312
      %3314 = vrot.lane.b32.xlu0 %v2733, 16
      %v3315 = vpop.permute.xlu0 %3314
      %3316 = vrot.lane.b32.xlu0 %v2734, 16
      %v3317 = vpop.permute.xlu0 %3316
      %3318 = vrot.lane.b32.xlu0 %v2735, 16
      %v3319 = vpop.permute.xlu0 %3318
      %3320 = vrot.lane.b32.xlu0 %v2736, 16
      %v3321 = vpop.permute.xlu0 %3320
      %3322 = vrot.lane.b32.xlu0 %v2737, 16
      %v3323 = vpop.permute.xlu0 %3322
      %3324 = vrot.lane.b32.xlu0 %v2738, 16
      %v3325 = vpop.permute.xlu0 %3324
      %3326 = vrot.lane.b32.xlu0 %v2739, 16
      %v3327 = vpop.permute.xlu0 %3326
      %3328 = vrot.lane.b32.xlu0 %v2740, 16
      %v3329 = vpop.permute.xlu0 %3328
      %3330 = vrot.lane.b32.xlu0 %v2741, 16
      %v3331 = vpop.permute.xlu0 %3330
      %3332 = vrot.lane.b32.xlu0 %v2742, 16
      %v3333 = vpop.permute.xlu0 %3332
      %3334 = vrot.lane.b32.xlu0 %v2743, 16
      %v3335 = vpop.permute.xlu0 %3334
      %3336 = vrot.lane.b32.xlu0 %v2744, 16
      %v3337 = vpop.permute.xlu0 %3336
      %3338 = vrot.lane.b32.xlu0 %v2745, 16
      %v3339 = vpop.permute.xlu0 %3338
      %3340 = vrot.lane.b32.xlu0 %v2746, 16
      %v3341 = vpop.permute.xlu0 %3340
      %3342 = vrot.lane.b32.xlu0 %v2747, 16
      %v3343 = vpop.permute.xlu0 %3342
      %3344 = vrot.lane.b32.xlu0 %v2748, 16
      %v3345 = vpop.permute.xlu0 %3344
      %3346 = vrot.lane.b32.xlu0 %v2749, 16
      %v3347 = vpop.permute.xlu0 %3346
      %3348 = vrot.lane.b32.xlu0 %v2750, 16
      %v3349 = vpop.permute.xlu0 %3348
      %3350 = vrot.lane.b32.xlu0 %v2751, 16
      %v3351 = vpop.permute.xlu0 %3350
      %3352 = vrot.lane.b32.xlu0 %v2752, 16
      %v3353 = vpop.permute.xlu0 %3352
      %3354 = vrot.lane.b32.xlu0 %v2753, 16
      %v3355 = vpop.permute.xlu0 %3354
      %3356 = vrot.lane.b32.xlu0 %v2754, 16
      %v3357 = vpop.permute.xlu0 %3356
      %3358 = vrot.lane.b32.xlu0 %v2755, 16
      %v3359 = vpop.permute.xlu0 %3358
      %3360 = vrot.lane.b32.xlu0 %v2756, 16
      %v3361 = vpop.permute.xlu0 %3360
      %3362 = vrot.lane.b32.xlu0 %v2757, 16
      %v3363 = vpop.permute.xlu0 %3362
      %3364 = vrot.lane.b32.xlu0 %v2758, 16
      %v3365 = vpop.permute.xlu0 %3364
      %3366 = vrot.lane.b32.xlu0 %v2759, 16
      %v3367 = vpop.permute.xlu0 %3366
      %3432 = vrot.lane.b32.xlu0 %v2760, 20
      %v3433 = vpop.permute.xlu0 %3432
      %3434 = vrot.lane.b32.xlu0 %v2761, 20
      %v3435 = vpop.permute.xlu0 %3434
      %3436 = vrot.lane.b32.xlu0 %v2762, 20
      %v3437 = vpop.permute.xlu0 %3436
      %3438 = vrot.lane.b32.xlu0 %v2763, 20
      %v3439 = vpop.permute.xlu0 %3438
      %3440 = vrot.lane.b32.xlu0 %v2764, 20
      %v3441 = vpop.permute.xlu0 %3440
      %3442 = vrot.lane.b32.xlu0 %v2765, 20
      %v3443 = vpop.permute.xlu0 %3442
      %3444 = vrot.lane.b32.xlu0 %v2766, 20
      %v3445 = vpop.permute.xlu0 %3444
      %3446 = vrot.lane.b32.xlu0 %v2767, 20
      %v3447 = vpop.permute.xlu0 %3446
      %3448 = vrot.lane.b32.xlu0 %v2768, 20
      %v3449 = vpop.permute.xlu0 %3448
      %3450 = vrot.lane.b32.xlu0 %v2769, 20
      %v3451 = vpop.permute.xlu0 %3450
      %3452 = vrot.lane.b32.xlu0 %v2770, 20
      %v3453 = vpop.permute.xlu0 %3452
      %3454 = vrot.lane.b32.xlu0 %v2771, 20
      %v3455 = vpop.permute.xlu0 %3454
      %3456 = vrot.lane.b32.xlu0 %v2772, 20
      %v3457 = vpop.permute.xlu0 %3456
      %3458 = vrot.lane.b32.xlu0 %v2773, 20
      %v3459 = vpop.permute.xlu0 %3458
      %3460 = vrot.lane.b32.xlu0 %v2774, 20
      %v3461 = vpop.permute.xlu0 %3460
      %3462 = vrot.lane.b32.xlu0 %v2775, 20
      %v3463 = vpop.permute.xlu0 %3462
      %3464 = vrot.lane.b32.xlu0 %v2776, 20
      %v3465 = vpop.permute.xlu0 %3464
      %3466 = vrot.lane.b32.xlu0 %v2777, 20
      %v3467 = vpop.permute.xlu0 %3466
      %3468 = vrot.lane.b32.xlu0 %v2778, 20
      %v3469 = vpop.permute.xlu0 %3468
      %3470 = vrot.lane.b32.xlu0 %v2779, 20
      %v3471 = vpop.permute.xlu0 %3470
      %3472 = vrot.lane.b32.xlu0 %v2780, 20
      %v3473 = vpop.permute.xlu0 %3472
      %3474 = vrot.lane.b32.xlu0 %v2781, 20
      %v3475 = vpop.permute.xlu0 %3474
      %3476 = vrot.lane.b32.xlu0 %v2782, 20
      %v3477 = vpop.permute.xlu0 %3476
      %3478 = vrot.lane.b32.xlu0 %v2783, 20
      %v3479 = vpop.permute.xlu0 %3478
      %3480 = vrot.lane.b32.xlu0 %v2784, 20
      %v3481 = vpop.permute.xlu0 %3480
      %3482 = vrot.lane.b32.xlu0 %v2785, 20
      %v3483 = vpop.permute.xlu0 %3482
      %3484 = vrot.lane.b32.xlu0 %v2786, 20
      %v3485 = vpop.permute.xlu0 %3484
      %3486 = vrot.lane.b32.xlu0 %v2787, 20
      %v3487 = vpop.permute.xlu0 %3486
      %3488 = vrot.lane.b32.xlu0 %v2788, 20
      %v3489 = vpop.permute.xlu0 %3488
      %3490 = vrot.lane.b32.xlu0 %v2789, 20
      %v3491 = vpop.permute.xlu0 %3490
      %3492 = vrot.lane.b32.xlu0 %v2790, 20
      %v3493 = vpop.permute.xlu0 %3492
      %3494 = vrot.lane.b32.xlu0 %v2791, 20
      %v3495 = vpop.permute.xlu0 %3494
      %3560 = vrot.lane.b32.xlu0 %v2792, 24
      %v3561 = vpop.permute.xlu0 %3560
      %3562 = vrot.lane.b32.xlu0 %v2793, 24
      %v3563 = vpop.permute.xlu0 %3562
      %3564 = vrot.lane.b32.xlu0 %v2794, 24
      %v3565 = vpop.permute.xlu0 %3564
      %3566 = vrot.lane.b32.xlu0 %v2795, 24
      %v3567 = vpop.permute.xlu0 %3566
      %3568 = vrot.lane.b32.xlu0 %v2796, 24
      %v3569 = vpop.permute.xlu0 %3568
      %3570 = vrot.lane.b32.xlu0 %v2797, 24
      %v3571 = vpop.permute.xlu0 %3570
      %3572 = vrot.lane.b32.xlu0 %v2798, 24
      %v3573 = vpop.permute.xlu0 %3572
      %3574 = vrot.lane.b32.xlu0 %v2799, 24
      %v3575 = vpop.permute.xlu0 %3574
      %3576 = vrot.lane.b32.xlu0 %v2800, 24
      %v3577 = vpop.permute.xlu0 %3576
      %3578 = vrot.lane.b32.xlu0 %v2801, 24
      %v3579 = vpop.permute.xlu0 %3578
      %3580 = vrot.lane.b32.xlu0 %v2802, 24
      %v3581 = vpop.permute.xlu0 %3580
      %3582 = vrot.lane.b32.xlu0 %v2803, 24
      %v3583 = vpop.permute.xlu0 %3582
      %3584 = vrot.lane.b32.xlu0 %v2804, 24
      %v3585 = vpop.permute.xlu0 %3584
      %3586 = vrot.lane.b32.xlu0 %v2805, 24
      %v3587 = vpop.permute.xlu0 %3586
      %3588 = vrot.lane.b32.xlu0 %v2806, 24
      %v3589 = vpop.permute.xlu0 %3588
      %3590 = vrot.lane.b32.xlu0 %v2807, 24
      %v3591 = vpop.permute.xlu0 %3590
      %3592 = vrot.lane.b32.xlu0 %v2808, 24
      %v3593 = vpop.permute.xlu0 %3592
      %3594 = vrot.lane.b32.xlu0 %v2809, 24
      %v3595 = vpop.permute.xlu0 %3594
      %3596 = vrot.lane.b32.xlu0 %v2810, 24
      %v3597 = vpop.permute.xlu0 %3596
      %3598 = vrot.lane.b32.xlu0 %v2811, 24
      %v3599 = vpop.permute.xlu0 %3598
      %3600 = vrot.lane.b32.xlu0 %v2812, 24
      %v3601 = vpop.permute.xlu0 %3600
      %3602 = vrot.lane.b32.xlu0 %v2813, 24
      %v3603 = vpop.permute.xlu0 %3602
      %3604 = vrot.lane.b32.xlu0 %v2814, 24
      %v3605 = vpop.permute.xlu0 %3604
      %3606 = vrot.lane.b32.xlu0 %v2815, 24
      %v3607 = vpop.permute.xlu0 %3606
      %3608 = vrot.lane.b32.xlu0 %v2816, 24
      %v3609 = vpop.permute.xlu0 %3608
      %3610 = vrot.lane.b32.xlu0 %v2817, 24
      %v3611 = vpop.permute.xlu0 %3610
      %3612 = vrot.lane.b32.xlu0 %v2818, 24
      %v3613 = vpop.permute.xlu0 %3612
      %3614 = vrot.lane.b32.xlu0 %v2819, 24
      %v3615 = vpop.permute.xlu0 %3614
      %3616 = vrot.lane.b32.xlu0 %v2820, 24
      %v3617 = vpop.permute.xlu0 %3616
      %3618 = vrot.lane.b32.xlu0 %v2821, 24
      %v3619 = vpop.permute.xlu0 %3618
      %3620 = vrot.lane.b32.xlu0 %v2822, 24
      %v3621 = vpop.permute.xlu0 %3620
      %3622 = vrot.lane.b32.xlu0 %v2823, 24
      %v3623 = vpop.permute.xlu0 %3622
      %3688 = vrot.lane.b32.xlu0 %v2824, 28
      %v3689 = vpop.permute.xlu0 %3688
      %3690 = vrot.lane.b32.xlu0 %v2825, 28
      %v3691 = vpop.permute.xlu0 %3690
      %3692 = vrot.lane.b32.xlu0 %v2826, 28
      %v3693 = vpop.permute.xlu0 %3692
      %3694 = vrot.lane.b32.xlu0 %v2827, 28
      %v3695 = vpop.permute.xlu0 %3694
      %3696 = vrot.lane.b32.xlu0 %v2828, 28
      %v3697 = vpop.permute.xlu0 %3696
      %3698 = vrot.lane.b32.xlu0 %v2829, 28
      %v3699 = vpop.permute.xlu0 %3698
      %3700 = vrot.lane.b32.xlu0 %v2830, 28
      %v3701 = vpop.permute.xlu0 %3700
      %3702 = vrot.lane.b32.xlu0 %v2831, 28
      %v3703 = vpop.permute.xlu0 %3702
      %3704 = vrot.lane.b32.xlu0 %v2832, 28
      %v3705 = vpop.permute.xlu0 %3704
      %3706 = vrot.lane.b32.xlu0 %v2833, 28
      %v3707 = vpop.permute.xlu0 %3706
      %3708 = vrot.lane.b32.xlu0 %v2834, 28
      %v3709 = vpop.permute.xlu0 %3708
      %3710 = vrot.lane.b32.xlu0 %v2835, 28
      %v3711 = vpop.permute.xlu0 %3710
      %3712 = vrot.lane.b32.xlu0 %v2836, 28
      %v3713 = vpop.permute.xlu0 %3712
      %3714 = vrot.lane.b32.xlu0 %v2837, 28
      %v3715 = vpop.permute.xlu0 %3714
      %3716 = vrot.lane.b32.xlu0 %v2838, 28
      %v3717 = vpop.permute.xlu0 %3716
      %3718 = vrot.lane.b32.xlu0 %v2839, 28
      %v3719 = vpop.permute.xlu0 %3718
      %3720 = vrot.lane.b32.xlu0 %v2840, 28
      %v3721 = vpop.permute.xlu0 %3720
      %3722 = vrot.lane.b32.xlu0 %v2841, 28
      %v3723 = vpop.permute.xlu0 %3722
      %3724 = vrot.lane.b32.xlu0 %v2842, 28
      %v3725 = vpop.permute.xlu0 %3724
      %3726 = vrot.lane.b32.xlu0 %v2843, 28
      %v3727 = vpop.permute.xlu0 %3726
      %3728 = vrot.lane.b32.xlu0 %v2844, 28
      %v3729 = vpop.permute.xlu0 %3728
      %3730 = vrot.lane.b32.xlu0 %v2845, 28
      %v3731 = vpop.permute.xlu0 %3730
      %3732 = vrot.lane.b32.xlu0 %v2846, 28
      %v3733 = vpop.permute.xlu0 %3732
      %3734 = vrot.lane.b32.xlu0 %v2847, 28
      %v3735 = vpop.permute.xlu0 %3734
      %3736 = vrot.lane.b32.xlu0 %v2848, 28
      %v3737 = vpop.permute.xlu0 %3736
      %3738 = vrot.lane.b32.xlu0 %v2849, 28
      %v3739 = vpop.permute.xlu0 %3738
      %3740 = vrot.lane.b32.xlu0 %v2850, 28
      %v3741 = vpop.permute.xlu0 %3740
      %3742 = vrot.lane.b32.xlu0 %v2851, 28
      %v3743 = vpop.permute.xlu0 %3742
      %3744 = vrot.lane.b32.xlu0 %v2852, 28
      %v3745 = vpop.permute.xlu0 %3744
      %3746 = vrot.lane.b32.xlu0 %v2853, 28
      %v3747 = vpop.permute.xlu0 %3746
      %3748 = vrot.lane.b32.xlu0 %v2854, 28
      %v3749 = vpop.permute.xlu0 %3748
      %3750 = vrot.lane.b32.xlu0 %v2855, 28
      %v3751 = vpop.permute.xlu0 %3750
      %3816 = vrot.lane.b32.xlu0 %v2856, 32
      %v3817 = vpop.permute.xlu0 %3816
      %3818 = vrot.lane.b32.xlu0 %v2857, 32
      %v3819 = vpop.permute.xlu0 %3818
      %3820 = vrot.lane.b32.xlu0 %v2858, 32
      %v3821 = vpop.permute.xlu0 %3820
      %3822 = vrot.lane.b32.xlu0 %v2859, 32
      %v3823 = vpop.permute.xlu0 %3822
      %3824 = vrot.lane.b32.xlu0 %v2860, 32
      %v3825 = vpop.permute.xlu0 %3824
      %3826 = vrot.lane.b32.xlu0 %v2861, 32
      %v3827 = vpop.permute.xlu0 %3826
      %3828 = vrot.lane.b32.xlu0 %v2862, 32
      %v3829 = vpop.permute.xlu0 %3828
      %3830 = vrot.lane.b32.xlu0 %v2863, 32
      %v3831 = vpop.permute.xlu0 %3830
      %3832 = vrot.lane.b32.xlu0 %v2864, 32
      %v3833 = vpop.permute.xlu0 %3832
      %3834 = vrot.lane.b32.xlu0 %v2865, 32
      %v3835 = vpop.permute.xlu0 %3834
      %3836 = vrot.lane.b32.xlu0 %v2866, 32
      %v3837 = vpop.permute.xlu0 %3836
      %3838 = vrot.lane.b32.xlu0 %v2867, 32
      %v3839 = vpop.permute.xlu0 %3838
      %3840 = vrot.lane.b32.xlu0 %v2868, 32
      %v3841 = vpop.permute.xlu0 %3840
      %3842 = vrot.lane.b32.xlu0 %v2869, 32
      %v3843 = vpop.permute.xlu0 %3842
      %3844 = vrot.lane.b32.xlu0 %v2870, 32
      %v3845 = vpop.permute.xlu0 %3844
      %3846 = vrot.lane.b32.xlu0 %v2871, 32
      %v3847 = vpop.permute.xlu0 %3846
      %3848 = vrot.lane.b32.xlu0 %v2872, 32
      %v3849 = vpop.permute.xlu0 %3848
      %3850 = vrot.lane.b32.xlu0 %v2873, 32
      %v3851 = vpop.permute.xlu0 %3850
      %3852 = vrot.lane.b32.xlu0 %v2874, 32
      %v3853 = vpop.permute.xlu0 %3852
      %3854 = vrot.lane.b32.xlu0 %v2875, 32
      %v3855 = vpop.permute.xlu0 %3854
      %3856 = vrot.lane.b32.xlu0 %v2876, 32
      %v3857 = vpop.permute.xlu0 %3856
      %3858 = vrot.lane.b32.xlu0 %v2877, 32
      %v3859 = vpop.permute.xlu0 %3858
      %3860 = vrot.lane.b32.xlu0 %v2878, 32
      %v3861 = vpop.permute.xlu0 %3860
      %3862 = vrot.lane.b32.xlu0 %v2879, 32
      %v3863 = vpop.permute.xlu0 %3862
      %3864 = vrot.lane.b32.xlu0 %v2880, 32
      %v3865 = vpop.permute.xlu0 %3864
      %3866 = vrot.lane.b32.xlu0 %v2881, 32
      %v3867 = vpop.permute.xlu0 %3866
      %3868 = vrot.lane.b32.xlu0 %v2882, 32
      %v3869 = vpop.permute.xlu0 %3868
      %3870 = vrot.lane.b32.xlu0 %v2883, 32
      %v3871 = vpop.permute.xlu0 %3870
      %3872 = vrot.lane.b32.xlu0 %v2884, 32
      %v3873 = vpop.permute.xlu0 %3872
      %3874 = vrot.lane.b32.xlu0 %v2885, 32
      %v3875 = vpop.permute.xlu0 %3874
      %3876 = vrot.lane.b32.xlu0 %v2886, 32
      %v3877 = vpop.permute.xlu0 %3876
      %3878 = vrot.lane.b32.xlu0 %v2887, 32
      %v3879 = vpop.permute.xlu0 %3878
      %v3912 = vsel %vm204, %v2600, %v2921
      %v3913 = vsel %vm204, %v2601, %v2923
      %v3914 = vsel %vm204, %v2602, %v2925
      %v3915 = vsel %vm204, %v2603, %v2927
      %v3916 = vsel %vm204, %v2604, %v2929
      %v3917 = vsel %vm204, %v2605, %v2931
      %v3918 = vsel %vm204, %v2606, %v2933
      %v3919 = vsel %vm204, %v2607, %v2935
      %v3920 = vsel %vm204, %v2608, %v2937
      %v3921 = vsel %vm204, %v2609, %v2939
      %v3922 = vsel %vm204, %v2610, %v2941
      %v3923 = vsel %vm204, %v2611, %v2943
      %v3924 = vsel %vm204, %v2612, %v2945
      %v3925 = vsel %vm204, %v2613, %v2947
      %v3926 = vsel %vm204, %v2614, %v2949
      %v3927 = vsel %vm204, %v2615, %v2951
      %v3928 = vsel %vm204, %v2616, %v2953
      %v3929 = vsel %vm204, %v2617, %v2955
      %v3930 = vsel %vm204, %v2618, %v2957
      %v3931 = vsel %vm204, %v2619, %v2959
      %v3932 = vsel %vm204, %v2620, %v2961
      %v3933 = vsel %vm204, %v2621, %v2963
      %v3934 = vsel %vm204, %v2622, %v2965
      %v3935 = vsel %vm204, %v2623, %v2967
      %v3936 = vsel %vm204, %v2624, %v2969
      %v3937 = vsel %vm204, %v2625, %v2971
      %v3938 = vsel %vm204, %v2626, %v2973
      %v3939 = vsel %vm204, %v2627, %v2975
      %v3940 = vsel %vm204, %v2628, %v2977
      %v3941 = vsel %vm204, %v2629, %v2979
      %v3942 = vsel %vm204, %v2630, %v2981
      %v3943 = vsel %vm204, %v2631, %v2983
      %v3944 = vsel %vm1660, %v3912, %v3049
      %v3945 = vsel %vm1660, %v3913, %v3051
      %v3946 = vsel %vm1660, %v3914, %v3053
      %v3947 = vsel %vm1660, %v3915, %v3055
      %v3948 = vsel %vm1660, %v3916, %v3057
      %v3949 = vsel %vm1660, %v3917, %v3059
      %v3950 = vsel %vm1660, %v3918, %v3061
      %v3951 = vsel %vm1660, %v3919, %v3063
      %v3952 = vsel %vm1660, %v3920, %v3065
      %v3953 = vsel %vm1660, %v3921, %v3067
      %v3954 = vsel %vm1660, %v3922, %v3069
      %v3955 = vsel %vm1660, %v3923, %v3071
      %v3956 = vsel %vm1660, %v3924, %v3073
      %v3957 = vsel %vm1660, %v3925, %v3075
      %v3958 = vsel %vm1660, %v3926, %v3077
      %v3959 = vsel %vm1660, %v3927, %v3079
      %v3960 = vsel %vm1660, %v3928, %v3081
      %v3961 = vsel %vm1660, %v3929, %v3083
      %v3962 = vsel %vm1660, %v3930, %v3085
      %v3963 = vsel %vm1660, %v3931, %v3087
      %v3964 = vsel %vm1660, %v3932, %v3089
      %v3965 = vsel %vm1660, %v3933, %v3091
      %v3966 = vsel %vm1660, %v3934, %v3093
      %v3967 = vsel %vm1660, %v3935, %v3095
      %v3968 = vsel %vm1660, %v3936, %v3097
      %v3969 = vsel %vm1660, %v3937, %v3099
      %v3970 = vsel %vm1660, %v3938, %v3101
      %v3971 = vsel %vm1660, %v3939, %v3103
      %v3972 = vsel %vm1660, %v3940, %v3105
      %v3973 = vsel %vm1660, %v3941, %v3107
      %v3974 = vsel %vm1660, %v3942, %v3109
      %v3975 = vsel %vm1660, %v3943, %v3111
      %v3976 = vsel %vm1693, %v3944, %v3177
      %v3977 = vsel %vm1693, %v3945, %v3179
      %v3978 = vsel %vm1693, %v3946, %v3181
      %v3979 = vsel %vm1693, %v3947, %v3183
      %v3980 = vsel %vm1693, %v3948, %v3185
      %v3981 = vsel %vm1693, %v3949, %v3187
      %v3982 = vsel %vm1693, %v3950, %v3189
      %v3983 = vsel %vm1693, %v3951, %v3191
      %v3984 = vsel %vm1693, %v3952, %v3193
      %v3985 = vsel %vm1693, %v3953, %v3195
      %v3986 = vsel %vm1693, %v3954, %v3197
      %v3987 = vsel %vm1693, %v3955, %v3199
      %v3988 = vsel %vm1693, %v3956, %v3201
      %v3989 = vsel %vm1693, %v3957, %v3203
      %v3990 = vsel %vm1693, %v3958, %v3205
      %v3991 = vsel %vm1693, %v3959, %v3207
      %v3992 = vsel %vm1693, %v3960, %v3209
      %v3993 = vsel %vm1693, %v3961, %v3211
      %v3994 = vsel %vm1693, %v3962, %v3213
      %v3995 = vsel %vm1693, %v3963, %v3215
      %v3996 = vsel %vm1693, %v3964, %v3217
      %v3997 = vsel %vm1693, %v3965, %v3219
      %v3998 = vsel %vm1693, %v3966, %v3221
      %v3999 = vsel %vm1693, %v3967, %v3223
      %v4000 = vsel %vm1693, %v3968, %v3225
      %v4001 = vsel %vm1693, %v3969, %v3227
      %v4002 = vsel %vm1693, %v3970, %v3229
      %v4003 = vsel %vm1693, %v3971, %v3231
      %v4004 = vsel %vm1693, %v3972, %v3233
      %v4005 = vsel %vm1693, %v3973, %v3235
      %v4006 = vsel %vm1693, %v3974, %v3237
      %v4007 = vsel %vm1693, %v3975, %v3239
      %v4008 = vsel %vm1726, %v3976, %v3305
      %v4009 = vsel %vm1726, %v3977, %v3307
      %v4010 = vsel %vm1726, %v3978, %v3309
      %v4011 = vsel %vm1726, %v3979, %v3311
      %v4012 = vsel %vm1726, %v3980, %v3313
      %v4013 = vsel %vm1726, %v3981, %v3315
      %v4014 = vsel %vm1726, %v3982, %v3317
      %v4015 = vsel %vm1726, %v3983, %v3319
      %v4016 = vsel %vm1726, %v3984, %v3321
      %v4017 = vsel %vm1726, %v3985, %v3323
      %v4018 = vsel %vm1726, %v3986, %v3325
      %v4019 = vsel %vm1726, %v3987, %v3327
      %v4020 = vsel %vm1726, %v3988, %v3329
      %v4021 = vsel %vm1726, %v3989, %v3331
      %v4022 = vsel %vm1726, %v3990, %v3333
      %v4023 = vsel %vm1726, %v3991, %v3335
      %v4024 = vsel %vm1726, %v3992, %v3337
      %v4025 = vsel %vm1726, %v3993, %v3339
      %v4026 = vsel %vm1726, %v3994, %v3341
      %v4027 = vsel %vm1726, %v3995, %v3343
      %v4028 = vsel %vm1726, %v3996, %v3345
      %v4029 = vsel %vm1726, %v3997, %v3347
      %v4030 = vsel %vm1726, %v3998, %v3349
      %v4031 = vsel %vm1726, %v3999, %v3351
      %v4032 = vsel %vm1726, %v4000, %v3353
      %v4033 = vsel %vm1726, %v4001, %v3355
      %v4034 = vsel %vm1726, %v4002, %v3357
      %v4035 = vsel %vm1726, %v4003, %v3359
      %v4036 = vsel %vm1726, %v4004, %v3361
      %v4037 = vsel %vm1726, %v4005, %v3363
      %v4038 = vsel %vm1726, %v4006, %v3365
      %v4039 = vsel %vm1726, %v4007, %v3367
      %v4040 = vsel %vm1759, %v4008, %v3433
      %v4041 = vsel %vm1759, %v4009, %v3435
      %v4042 = vsel %vm1759, %v4010, %v3437
      %v4043 = vsel %vm1759, %v4011, %v3439
      %v4044 = vsel %vm1759, %v4012, %v3441
      %v4045 = vsel %vm1759, %v4013, %v3443
      %v4046 = vsel %vm1759, %v4014, %v3445
      %v4047 = vsel %vm1759, %v4015, %v3447
      %v4048 = vsel %vm1759, %v4016, %v3449
      %v4049 = vsel %vm1759, %v4017, %v3451
      %v4050 = vsel %vm1759, %v4018, %v3453
      %v4051 = vsel %vm1759, %v4019, %v3455
      %v4052 = vsel %vm1759, %v4020, %v3457
      %v4053 = vsel %vm1759, %v4021, %v3459
      %v4054 = vsel %vm1759, %v4022, %v3461
      %v4055 = vsel %vm1759, %v4023, %v3463
      %v4056 = vsel %vm1759, %v4024, %v3465
      %v4057 = vsel %vm1759, %v4025, %v3467
      %v4058 = vsel %vm1759, %v4026, %v3469
      %v4059 = vsel %vm1759, %v4027, %v3471
      %v4060 = vsel %vm1759, %v4028, %v3473
      %v4061 = vsel %vm1759, %v4029, %v3475
      %v4062 = vsel %vm1759, %v4030, %v3477
      %v4063 = vsel %vm1759, %v4031, %v3479
      %v4064 = vsel %vm1759, %v4032, %v3481
      %v4065 = vsel %vm1759, %v4033, %v3483
      %v4066 = vsel %vm1759, %v4034, %v3485
      %v4067 = vsel %vm1759, %v4035, %v3487
      %v4068 = vsel %vm1759, %v4036, %v3489
      %v4069 = vsel %vm1759, %v4037, %v3491
      %v4070 = vsel %vm1759, %v4038, %v3493
      %v4071 = vsel %vm1759, %v4039, %v3495
      %v4072 = vsel %vm1792, %v4040, %v3561
      %v4073 = vsel %vm1792, %v4041, %v3563
      %v4074 = vsel %vm1792, %v4042, %v3565
      %v4075 = vsel %vm1792, %v4043, %v3567
      %v4076 = vsel %vm1792, %v4044, %v3569
      %v4077 = vsel %vm1792, %v4045, %v3571
      %v4078 = vsel %vm1792, %v4046, %v3573
      %v4079 = vsel %vm1792, %v4047, %v3575
      %v4080 = vsel %vm1792, %v4048, %v3577
      %v4081 = vsel %vm1792, %v4049, %v3579
      %v4082 = vsel %vm1792, %v4050, %v3581
      %v4083 = vsel %vm1792, %v4051, %v3583
      %v4084 = vsel %vm1792, %v4052, %v3585
      %v4085 = vsel %vm1792, %v4053, %v3587
      %v4086 = vsel %vm1792, %v4054, %v3589
      %v4087 = vsel %vm1792, %v4055, %v3591
      %v4088 = vsel %vm1792, %v4056, %v3593
      %v4089 = vsel %vm1792, %v4057, %v3595
      %v4090 = vsel %vm1792, %v4058, %v3597
      %v4091 = vsel %vm1792, %v4059, %v3599
      %v4092 = vsel %vm1792, %v4060, %v3601
      %v4093 = vsel %vm1792, %v4061, %v3603
      %v4094 = vsel %vm1792, %v4062, %v3605
      %v4095 = vsel %vm1792, %v4063, %v3607
      %v4096 = vsel %vm1792, %v4064, %v3609
      %v4097 = vsel %vm1792, %v4065, %v3611
      %v4098 = vsel %vm1792, %v4066, %v3613
      %v4099 = vsel %vm1792, %v4067, %v3615
      %v4100 = vsel %vm1792, %v4068, %v3617
      %v4101 = vsel %vm1792, %v4069, %v3619
      %v4102 = vsel %vm1792, %v4070, %v3621
      %v4103 = vsel %vm1792, %v4071, %v3623
      %v4104 = vsel %vm1825, %v4072, %v3689
      %v4105 = vsel %vm1825, %v4073, %v3691
      %v4106 = vsel %vm1825, %v4074, %v3693
      %v4107 = vsel %vm1825, %v4075, %v3695
      %v4108 = vsel %vm1825, %v4076, %v3697
      %v4109 = vsel %vm1825, %v4077, %v3699
      %v4110 = vsel %vm1825, %v4078, %v3701
      %v4111 = vsel %vm1825, %v4079, %v3703
      %v4112 = vsel %vm1825, %v4080, %v3705
      %v4113 = vsel %vm1825, %v4081, %v3707
      %v4114 = vsel %vm1825, %v4082, %v3709
      %v4115 = vsel %vm1825, %v4083, %v3711
      %v4116 = vsel %vm1825, %v4084, %v3713
      %v4117 = vsel %vm1825, %v4085, %v3715
      %v4118 = vsel %vm1825, %v4086, %v3717
      %v4119 = vsel %vm1825, %v4087, %v3719
      %v4120 = vsel %vm1825, %v4088, %v3721
      %v4121 = vsel %vm1825, %v4089, %v3723
      %v4122 = vsel %vm1825, %v4090, %v3725
      %v4123 = vsel %vm1825, %v4091, %v3727
      %v4124 = vsel %vm1825, %v4092, %v3729
      %v4125 = vsel %vm1825, %v4093, %v3731
      %v4126 = vsel %vm1825, %v4094, %v3733
      %v4127 = vsel %vm1825, %v4095, %v3735
      %v4128 = vsel %vm1825, %v4096, %v3737
      %v4129 = vsel %vm1825, %v4097, %v3739
      %v4130 = vsel %vm1825, %v4098, %v3741
      %v4131 = vsel %vm1825, %v4099, %v3743
      %v4132 = vsel %vm1825, %v4100, %v3745
      %v4133 = vsel %vm1825, %v4101, %v3747
      %v4134 = vsel %vm1825, %v4102, %v3749
      %v4135 = vsel %vm1825, %v4103, %v3751
      %v4136 = vsel %vm1858, %v4104, %v3817
      %v4137 = vsel %vm1858, %v4105, %v3819
      %v4138 = vsel %vm1858, %v4106, %v3821
      %v4139 = vsel %vm1858, %v4107, %v3823
      %v4140 = vsel %vm1858, %v4108, %v3825
      %v4141 = vsel %vm1858, %v4109, %v3827
      %v4142 = vsel %vm1858, %v4110, %v3829
      %v4143 = vsel %vm1858, %v4111, %v3831
      %v4144 = vsel %vm1858, %v4112, %v3833
      %v4145 = vsel %vm1858, %v4113, %v3835
      %v4146 = vsel %vm1858, %v4114, %v3837
      %v4147 = vsel %vm1858, %v4115, %v3839
      %v4148 = vsel %vm1858, %v4116, %v3841
      %v4149 = vsel %vm1858, %v4117, %v3843
      %v4150 = vsel %vm1858, %v4118, %v3845
      %v4151 = vsel %vm1858, %v4119, %v3847
      %v4152 = vsel %vm1858, %v4120, %v3849
      %v4153 = vsel %vm1858, %v4121, %v3851
      %v4154 = vsel %vm1858, %v4122, %v3853
      %v4155 = vsel %vm1858, %v4123, %v3855
      %v4156 = vsel %vm1858, %v4124, %v3857
      %v4157 = vsel %vm1858, %v4125, %v3859
      %v4158 = vsel %vm1858, %v4126, %v3861
      %v4159 = vsel %vm1858, %v4127, %v3863
      %v4160 = vsel %vm1858, %v4128, %v3865
      %v4161 = vsel %vm1858, %v4129, %v3867
      %v4162 = vsel %vm1858, %v4130, %v3869
      %v4163 = vsel %vm1858, %v4131, %v3871
      %v4164 = vsel %vm1858, %v4132, %v3873
      %v4165 = vsel %vm1858, %v4133, %v3875
      %v4166 = vsel %vm1858, %v4134, %v3877
      %v4167 = vsel %vm1858, %v4135, %v3879
      %v4168 = vld [vmem:[%s2] sm:$0xff]
      %v4169 = vld [vmem:[%s2 + $0x8] sm:$0xff]
      %v4170 = vld [vmem:[%s2 + $0x10] sm:$0xff]
      %v4171 = vld [vmem:[%s2 + $0x18] sm:$0xff]
      %v4172 = vld [vmem:[%s2 + $0x20] sm:$0xf]
      %v4174 = vsel %vm1896, %v4136, 0
      %v4177 = vsel %vm1896, %v4137, 0
      %v4180 = vsel %vm1896, %v4138, 0
      %v4183 = vsel %vm1896, %v4139, 0
      %v4186 = vsel %vm1896, %v4140, 0
      %v4189 = vsel %vm1896, %v4141, 0
      %v4192 = vsel %vm1896, %v4142, 0
      %v4195 = vsel %vm1896, %v4143, 0
      %v4198 = vsel %vm1896, %v4144, 0
      %v4201 = vsel %vm1896, %v4145, 0
      %v4204 = vsel %vm1896, %v4146, 0
      %v4207 = vsel %vm1896, %v4147, 0
      %v4210 = vsel %vm1896, %v4148, 0
      %v4213 = vsel %vm1896, %v4149, 0
      %v4216 = vsel %vm1896, %v4150, 0
      %v4219 = vsel %vm1896, %v4151, 0
      %v4222 = vsel %vm1896, %v4152, 0
      %v4225 = vsel %vm1896, %v4153, 0
      %v4228 = vsel %vm1896, %v4154, 0
      %v4231 = vsel %vm1896, %v4155, 0
      %v4234 = vsel %vm1896, %v4156, 0
      %v4237 = vsel %vm1896, %v4157, 0
      %v4240 = vsel %vm1896, %v4158, 0
      %v4243 = vsel %vm1896, %v4159, 0
      %v4246 = vsel %vm1896, %v4160, 0
      %v4249 = vsel %vm1896, %v4161, 0
      %v4252 = vsel %vm1896, %v4162, 0
      %v4255 = vsel %vm1896, %v4163, 0
      %v4258 = vsel %vm1896, %v4164, 0
      %v4261 = vsel %vm1896, %v4165, 0
      %v4264 = vsel %vm1896, %v4166, 0
      %v4267 = vsel %vm1896, %v4167, 0
      %v4270 = vsel %vm1993, %v4172, 0
      %4272 = vmatprep.subr.mxu0 0.0
      %4273 = vmatpush1.msra.mxu0 0.0
      %4274 = vmatprep.subr.mxu0 0.0
      %4275 = vmatpush1.msra.mxu0 0.0
      %4276 = vmatprep.subr.mxu0 0.0
      %4277 = vmatpush1.msra.mxu0 0.0
      %4278 = vmatprep.subr.mxu0 0.0
      %4279 = vmatpush1.msra.mxu0 0.0
      %4280 = vmatprep.subr.mxu0 0.0
      %4281 = vmatpush1.msra.mxu0 0.0
      %4282 = vmatprep.subr.mxu0 0.0
      %4283 = vmatpush1.msra.mxu0 0.0
      %4284 = vmatprep.subr.mxu0 0.0
      %4285 = vmatpush1.msra.mxu0 0.0
      %4286 = vmatprep.subr.mxu0 0.0
      %4287 = vmatpush1.msra.mxu0 0.0
      %4288 = vmatprep.subr.mxu0 0.0
      %4289 = vmatpush1.msra.mxu0 0.0
      %4290 = vmatprep.subr.mxu0 0.0
      %4291 = vmatpush1.msra.mxu0 0.0
      %4292 = vmatprep.subr.mxu0 0.0
      %4293 = vmatpush1.msra.mxu0 0.0
      %4294 = vmatprep.subr.mxu0 0.0
      %4295 = vmatpush1.msra.mxu0 %v4270
      %4296 = vmatprep.subr.mxu0 0.0
      %4297 = vmatpush1.msra.mxu0 %v4171
      %4298 = vmatprep.subr.mxu0 0.0
      %4299 = vmatpush1.msra.mxu0 %v4170
      %4300 = vmatprep.subr.mxu0 0.0
      %4301 = vmatpush1.msra.mxu0 %v4169
      %4302 = vmatprep.subr.mxu0 0.0
      %4303 = vmatpush1.msra.mxu0 %v4168
      %4304 = vmatprep.subr.mxu0 0.0
      %4305 = vmatpush2.msra.mxu0 0.0
      %4306 = vmatprep.subr.mxu0 0.0
      %4307 = vmatpush2.msra.mxu0 0.0
      %4308 = vmatprep.subr.mxu0 0.0
      %4309 = vmatpush2.msra.mxu0 0.0
      %4310 = vmatprep.subr.mxu0 0.0
      %4311 = vmatpush2.msra.mxu0 0.0
      %4312 = vmatprep.subr.mxu0 0.0
      %4313 = vmatpush2.msra.mxu0 0.0
      %4314 = vmatprep.subr.mxu0 0.0
      %4315 = vmatpush2.msra.mxu0 0.0
      %4316 = vmatprep.subr.mxu0 0.0
      %4317 = vmatpush2.msra.mxu0 0.0
      %4318 = vmatprep.subr.mxu0 0.0
      %4319 = vmatpush2.msra.mxu0 0.0
      %4320 = vmatprep.subr.mxu0 0.0
      %4321 = vmatpush2.msra.mxu0 0.0
      %4322 = vmatprep.subr.mxu0 0.0
      %4323 = vmatpush2.msra.mxu0 0.0
      %4324 = vmatprep.subr.mxu0 0.0
      %4325 = vmatpush2.msra.mxu0 0.0
      %4326 = vmatprep.subr.mxu0 0.0
      %4327 = vmatpush2.msra.mxu0 0.0
      %4328 = vmatprep.subr.mxu0 0.0
      %4329 = vmatpush2.msra.mxu0 0.0
      %4330 = vmatprep.subr.mxu0 0.0
      %4331 = vmatpush2.msra.mxu0 0.0
      %4332 = vmatprep.subr.mxu0 0.0
      %4333 = vmatpush2.msra.mxu0 0.0
      %4334 = vmatprep.subr.mxu0 0.0
      %4335 = vmatpush2.msra.mxu0 0.0
      %4336 = vmatprep.mubr.f32.mxu0 0.0
      %4337 = vmatmul.mubr.f32.gmra.mxu0 %v4174
      %v4338 = vpop.f32.mrf.mxu0
      %v4339 = vadd.f32 0.0, %v4338
      %v4340 = vpop.f32.mrf.mxu0
      %4341 = vmatprep.mubr.f32.mxu0 0.0
      %4342 = vmatmul.mubr.f32.gmra.mxu0 %v4177
      %v4343 = vpop.f32.mrf.mxu0
      %v4344 = vadd.f32 0.0, %v4343
      %v4345 = vpop.f32.mrf.mxu0
      %4346 = vmatprep.mubr.f32.mxu0 0.0
      %4347 = vmatmul.mubr.f32.gmra.mxu0 %v4180
      %v4348 = vpop.f32.mrf.mxu0
      %v4349 = vadd.f32 0.0, %v4348
      %v4350 = vpop.f32.mrf.mxu0
      %4351 = vmatprep.mubr.f32.mxu0 0.0
      %4352 = vmatmul.mubr.f32.gmra.mxu0 %v4183
      %v4353 = vpop.f32.mrf.mxu0
      %v4354 = vadd.f32 0.0, %v4353
      %v4355 = vpop.f32.mrf.mxu0
      %4356 = vmatprep.mubr.f32.mxu0 0.0
      %4357 = vmatmul.mubr.f32.gmra.mxu0 %v4186
      %v4358 = vpop.f32.mrf.mxu0
      %v4359 = vadd.f32 0.0, %v4358
      %v4360 = vpop.f32.mrf.mxu0
      %4361 = vmatprep.mubr.f32.mxu0 0.0
      %4362 = vmatmul.mubr.f32.gmra.mxu0 %v4189
      %v4363 = vpop.f32.mrf.mxu0
      %v4364 = vadd.f32 0.0, %v4363
      %v4365 = vpop.f32.mrf.mxu0
      %4366 = vmatprep.mubr.f32.mxu0 0.0
      %4367 = vmatmul.mubr.f32.gmra.mxu0 %v4192
      %v4368 = vpop.f32.mrf.mxu0
      %v4369 = vadd.f32 0.0, %v4368
      %v4370 = vpop.f32.mrf.mxu0
      %4371 = vmatprep.mubr.f32.mxu0 0.0
      %4372 = vmatmul.mubr.f32.gmra.mxu0 %v4195
      %v4373 = vpop.f32.mrf.mxu0
      %v4374 = vadd.f32 0.0, %v4373
      %v4375 = vpop.f32.mrf.mxu0
      %4376 = vmatprep.mubr.f32.mxu0 0.0
      %4377 = vmatmul.mubr.f32.gmra.mxu0 %v4198
      %v4378 = vpop.f32.mrf.mxu0
      %v4379 = vadd.f32 0.0, %v4378
      %v4380 = vpop.f32.mrf.mxu0
      %4381 = vmatprep.mubr.f32.mxu0 0.0
      %4382 = vmatmul.mubr.f32.gmra.mxu0 %v4201
      %v4383 = vpop.f32.mrf.mxu0
      %v4384 = vadd.f32 0.0, %v4383
      %v4385 = vpop.f32.mrf.mxu0
      %4386 = vmatprep.mubr.f32.mxu0 0.0
      %4387 = vmatmul.mubr.f32.gmra.mxu0 %v4204
      %v4388 = vpop.f32.mrf.mxu0
      %v4389 = vadd.f32 0.0, %v4388
      %v4390 = vpop.f32.mrf.mxu0
      %4391 = vmatprep.mubr.f32.mxu0 0.0
      %4392 = vmatmul.mubr.f32.gmra.mxu0 %v4207
      %v4393 = vpop.f32.mrf.mxu0
      %v4394 = vadd.f32 0.0, %v4393
      %v4395 = vpop.f32.mrf.mxu0
      %4396 = vmatprep.mubr.f32.mxu0 0.0
      %4397 = vmatmul.mubr.f32.gmra.mxu0 %v4210
      %v4398 = vpop.f32.mrf.mxu0
      %v4399 = vadd.f32 0.0, %v4398
      %v4400 = vpop.f32.mrf.mxu0
      %4401 = vmatprep.mubr.f32.mxu0 0.0
      %4402 = vmatmul.mubr.f32.gmra.mxu0 %v4213
      %v4403 = vpop.f32.mrf.mxu0
      %v4404 = vadd.f32 0.0, %v4403
      %v4405 = vpop.f32.mrf.mxu0
      %4406 = vmatprep.mubr.f32.mxu0 0.0
      %4407 = vmatmul.mubr.f32.gmra.mxu0 %v4216
      %v4408 = vpop.f32.mrf.mxu0
      %v4409 = vadd.f32 0.0, %v4408
      %v4410 = vpop.f32.mrf.mxu0
      %4411 = vmatprep.mubr.f32.mxu0 0.0
      %4412 = vmatmul.mubr.f32.gmra.mxu0 %v4219
      %v4413 = vpop.f32.mrf.mxu0
      %v4414 = vadd.f32 0.0, %v4413
      %v4415 = vpop.f32.mrf.mxu0
      %4416 = vmatprep.mubr.f32.mxu0 0.0
      %4417 = vmatmul.mubr.f32.gmra.mxu0 %v4222
      %v4418 = vpop.f32.mrf.mxu0
      %v4419 = vadd.f32 0.0, %v4418
      %v4420 = vpop.f32.mrf.mxu0
      %4421 = vmatprep.mubr.f32.mxu0 0.0
      %4422 = vmatmul.mubr.f32.gmra.mxu0 %v4225
      %v4423 = vpop.f32.mrf.mxu0
      %v4424 = vadd.f32 0.0, %v4423
      %v4425 = vpop.f32.mrf.mxu0
      %4426 = vmatprep.mubr.f32.mxu0 0.0
      %4427 = vmatmul.mubr.f32.gmra.mxu0 %v4228
      %v4428 = vpop.f32.mrf.mxu0
      %v4429 = vadd.f32 0.0, %v4428
      %v4430 = vpop.f32.mrf.mxu0
      %4431 = vmatprep.mubr.f32.mxu0 0.0
      %4432 = vmatmul.mubr.f32.gmra.mxu0 %v4231
      %v4433 = vpop.f32.mrf.mxu0
      %v4434 = vadd.f32 0.0, %v4433
      %v4435 = vpop.f32.mrf.mxu0
      %4436 = vmatprep.mubr.f32.mxu0 0.0
      %4437 = vmatmul.mubr.f32.gmra.mxu0 %v4234
      %v4438 = vpop.f32.mrf.mxu0
      %v4439 = vadd.f32 0.0, %v4438
      %v4440 = vpop.f32.mrf.mxu0
      %4441 = vmatprep.mubr.f32.mxu0 0.0
      %4442 = vmatmul.mubr.f32.gmra.mxu0 %v4237
      %v4443 = vpop.f32.mrf.mxu0
      %v4444 = vadd.f32 0.0, %v4443
      %v4445 = vpop.f32.mrf.mxu0
      %4446 = vmatprep.mubr.f32.mxu0 0.0
      %4447 = vmatmul.mubr.f32.gmra.mxu0 %v4240
      %v4448 = vpop.f32.mrf.mxu0
      %v4449 = vadd.f32 0.0, %v4448
      %v4450 = vpop.f32.mrf.mxu0
      %4451 = vmatprep.mubr.f32.mxu0 0.0
      %4452 = vmatmul.mubr.f32.gmra.mxu0 %v4243
      %v4453 = vpop.f32.mrf.mxu0
      %v4454 = vadd.f32 0.0, %v4453
      %v4455 = vpop.f32.mrf.mxu0
      %4456 = vmatprep.mubr.f32.mxu0 0.0
      %4457 = vmatmul.mubr.f32.gmra.mxu0 %v4246
      %v4458 = vpop.f32.mrf.mxu0
      %v4459 = vadd.f32 0.0, %v4458
      %v4460 = vpop.f32.mrf.mxu0
      %4461 = vmatprep.mubr.f32.mxu0 0.0
      %4462 = vmatmul.mubr.f32.gmra.mxu0 %v4249
      %v4463 = vpop.f32.mrf.mxu0
      %v4464 = vadd.f32 0.0, %v4463
      %v4465 = vpop.f32.mrf.mxu0
      %4466 = vmatprep.mubr.f32.mxu0 0.0
      %4467 = vmatmul.mubr.f32.gmra.mxu0 %v4252
      %v4468 = vpop.f32.mrf.mxu0
      %v4469 = vadd.f32 0.0, %v4468
      %v4470 = vpop.f32.mrf.mxu0
      %4471 = vmatprep.mubr.f32.mxu0 0.0
      %4472 = vmatmul.mubr.f32.gmra.mxu0 %v4255
      %v4473 = vpop.f32.mrf.mxu0
      %v4474 = vadd.f32 0.0, %v4473
      %v4475 = vpop.f32.mrf.mxu0
      %4476 = vmatprep.mubr.f32.mxu0 0.0
      %4477 = vmatmul.mubr.f32.gmra.mxu0 %v4258
      %v4478 = vpop.f32.mrf.mxu0
      %v4479 = vadd.f32 0.0, %v4478
      %v4480 = vpop.f32.mrf.mxu0
      %4481 = vmatprep.mubr.f32.mxu0 0.0
      %4482 = vmatmul.mubr.f32.gmra.mxu0 %v4261
      %v4483 = vpop.f32.mrf.mxu0
      %v4484 = vadd.f32 0.0, %v4483
      %v4485 = vpop.f32.mrf.mxu0
      %4486 = vmatprep.mubr.f32.mxu0 0.0
      %4487 = vmatmul.mubr.f32.gmra.mxu0 %v4264
      %v4488 = vpop.f32.mrf.mxu0
      %v4489 = vadd.f32 0.0, %v4488
      %v4490 = vpop.f32.mrf.mxu0
      %4491 = vmatprep.mubr.f32.mxu0 0.0
      %4492 = vmatmul.mubr.f32.gmra.mxu0 %v4267
      %v4493 = vpop.f32.mrf.mxu0
      %v4494 = vadd.f32 0.0, %v4493
      %v4495 = vpop.f32.mrf.mxu0
      %4496 = vdwg.mxu0
      %v4497 = vsel %vm204, %v4339, 0.0
      %v4498 = vsel %vm204, %v4344, 0.0
      %v4499 = vadd.f32 %v4497, %v4498
      %v4500 = vsel %vm204, %v4349, 0.0
      %v4501 = vadd.f32 %v4499, %v4500
      %v4502 = vsel %vm204, %v4354, 0.0
      %v4503 = vadd.f32 %v4501, %v4502
      %v4504 = vsel %vm204, %v4359, 0.0
      %v4505 = vadd.f32 %v4503, %v4504
      %v4506 = vsel %vm204, %v4364, 0.0
      %v4507 = vadd.f32 %v4505, %v4506
      %v4508 = vsel %vm204, %v4369, 0.0
      %v4509 = vadd.f32 %v4507, %v4508
      %v4510 = vsel %vm204, %v4374, 0.0
      %v4511 = vadd.f32 %v4509, %v4510
      %v4512 = vsel %vm204, %v4379, 0.0
      %v4513 = vadd.f32 %v4511, %v4512
      %v4514 = vsel %vm204, %v4384, 0.0
      %v4515 = vadd.f32 %v4513, %v4514
      %v4516 = vsel %vm204, %v4389, 0.0
      %v4517 = vadd.f32 %v4515, %v4516
      %v4518 = vsel %vm204, %v4394, 0.0
      %v4519 = vadd.f32 %v4517, %v4518
      %v4520 = vsel %vm204, %v4399, 0.0
      %v4521 = vadd.f32 %v4519, %v4520
      %v4522 = vsel %vm204, %v4404, 0.0
      %v4523 = vadd.f32 %v4521, %v4522
      %v4524 = vsel %vm204, %v4409, 0.0
      %v4525 = vadd.f32 %v4523, %v4524
      %v4526 = vsel %vm204, %v4414, 0.0
      %v4527 = vadd.f32 %v4525, %v4526
      %v4528 = vsel %vm204, %v4419, 0.0
      %v4529 = vadd.f32 %v4527, %v4528
      %v4530 = vsel %vm204, %v4424, 0.0
      %v4531 = vadd.f32 %v4529, %v4530
      %v4532 = vsel %vm204, %v4429, 0.0
      %v4533 = vadd.f32 %v4531, %v4532
      %v4534 = vsel %vm204, %v4434, 0.0
      %v4535 = vadd.f32 %v4533, %v4534
      %v4536 = vsel %vm204, %v4439, 0.0
      %v4537 = vadd.f32 %v4535, %v4536
      %v4538 = vsel %vm204, %v4444, 0.0
      %v4539 = vadd.f32 %v4537, %v4538
      %v4540 = vsel %vm204, %v4449, 0.0
      %v4541 = vadd.f32 %v4539, %v4540
      %v4542 = vsel %vm204, %v4454, 0.0
      %v4543 = vadd.f32 %v4541, %v4542
      %v4544 = vsel %vm204, %v4459, 0.0
      %v4545 = vadd.f32 %v4543, %v4544
      %v4546 = vsel %vm204, %v4464, 0.0
      %v4547 = vadd.f32 %v4545, %v4546
      %v4548 = vsel %vm204, %v4469, 0.0
      %v4549 = vadd.f32 %v4547, %v4548
      %v4550 = vsel %vm204, %v4474, 0.0
      %v4551 = vadd.f32 %v4549, %v4550
      %v4552 = vsel %vm204, %v4479, 0.0
      %v4553 = vadd.f32 %v4551, %v4552
      %v4554 = vsel %vm204, %v4484, 0.0
      %v4555 = vadd.f32 %v4553, %v4554
      %v4556 = vsel %vm204, %v4489, 0.0
      %v4557 = vadd.f32 %v4555, %v4556
      %v4558 = vsel %vm204, %v4494, 0.0
      %v4559 = vadd.f32 %v4557, %v4558
      %v4560 = vrot.slane %v4559, 4
      %v4561 = vadd.f32 %v4559, %v4560
      %v4562 = vrot.slane %v4561, 2
      %v4563 = vadd.f32 %v4561, %v4562
      %v4564 = vrot.slane %v4563, 1
      %v4565 = vadd.f32 %v4563, %v4564
      %v4566 = vmul.f32 %v4565, 0.00390625
      %v4567 = vsub.f32 %v4339, %v4566
      %v4568 = vsub.f32 %v4344, %v4566
      %v4569 = vsub.f32 %v4349, %v4566
      %v4570 = vsub.f32 %v4354, %v4566
      %v4571 = vsub.f32 %v4359, %v4566
      %v4572 = vsub.f32 %v4364, %v4566
      %v4573 = vsub.f32 %v4369, %v4566
      %v4574 = vsub.f32 %v4374, %v4566
      %v4575 = vsub.f32 %v4379, %v4566
      %v4576 = vsub.f32 %v4384, %v4566
      %v4577 = vsub.f32 %v4389, %v4566
      %v4578 = vsub.f32 %v4394, %v4566
      %v4579 = vsub.f32 %v4399, %v4566
      %v4580 = vsub.f32 %v4404, %v4566
      %v4581 = vsub.f32 %v4409, %v4566
      %v4582 = vsub.f32 %v4414, %v4566
      %v4583 = vsub.f32 %v4419, %v4566
      %v4584 = vsub.f32 %v4424, %v4566
      %v4585 = vsub.f32 %v4429, %v4566
      %v4586 = vsub.f32 %v4434, %v4566
      %v4587 = vsub.f32 %v4439, %v4566
      %v4588 = vsub.f32 %v4444, %v4566
      %v4589 = vsub.f32 %v4449, %v4566
      %v4590 = vsub.f32 %v4454, %v4566
      %v4591 = vsub.f32 %v4459, %v4566
      %v4592 = vsub.f32 %v4464, %v4566
      %v4593 = vsub.f32 %v4469, %v4566
      %v4594 = vsub.f32 %v4474, %v4566
      %v4595 = vsub.f32 %v4479, %v4566
      %v4596 = vsub.f32 %v4484, %v4566
      %v4597 = vsub.f32 %v4489, %v4566
      %v4598 = vsub.f32 %v4494, %v4566
      %v4599 = vmul.f32 %v4567, %v4567
      %v4600 = vmul.f32 %v4568, %v4568
      %v4601 = vmul.f32 %v4569, %v4569
      %v4602 = vmul.f32 %v4570, %v4570
      %v4603 = vmul.f32 %v4571, %v4571
      %v4604 = vmul.f32 %v4572, %v4572
      %v4605 = vmul.f32 %v4573, %v4573
      %v4606 = vmul.f32 %v4574, %v4574
      %v4607 = vmul.f32 %v4575, %v4575
      %v4608 = vmul.f32 %v4576, %v4576
      %v4609 = vmul.f32 %v4577, %v4577
      %v4610 = vmul.f32 %v4578, %v4578
      %v4611 = vmul.f32 %v4579, %v4579
      %v4612 = vmul.f32 %v4580, %v4580
      %v4613 = vmul.f32 %v4581, %v4581
      %v4614 = vmul.f32 %v4582, %v4582
      %v4615 = vmul.f32 %v4583, %v4583
      %v4616 = vmul.f32 %v4584, %v4584
      %v4617 = vmul.f32 %v4585, %v4585
      %v4618 = vmul.f32 %v4586, %v4586
      %v4619 = vmul.f32 %v4587, %v4587
      %v4620 = vmul.f32 %v4588, %v4588
      %v4621 = vmul.f32 %v4589, %v4589
      %v4622 = vmul.f32 %v4590, %v4590
      %v4623 = vmul.f32 %v4591, %v4591
      %v4624 = vmul.f32 %v4592, %v4592
      %v4625 = vmul.f32 %v4593, %v4593
      %v4626 = vmul.f32 %v4594, %v4594
      %v4627 = vmul.f32 %v4595, %v4595
      %v4628 = vmul.f32 %v4596, %v4596
      %v4629 = vmul.f32 %v4597, %v4597
      %v4630 = vmul.f32 %v4598, %v4598
      %v4631 = vsel %vm204, %v4599, 0.0
      %v4632 = vsel %vm204, %v4600, 0.0
      %v4633 = vadd.f32 %v4631, %v4632
      %v4634 = vsel %vm204, %v4601, 0.0
      %v4635 = vadd.f32 %v4633, %v4634
      %v4636 = vsel %vm204, %v4602, 0.0
      %v4637 = vadd.f32 %v4635, %v4636
      %v4638 = vsel %vm204, %v4603, 0.0
      %v4639 = vadd.f32 %v4637, %v4638
      %v4640 = vsel %vm204, %v4604, 0.0
      %v4641 = vadd.f32 %v4639, %v4640
      %v4642 = vsel %vm204, %v4605, 0.0
      %v4643 = vadd.f32 %v4641, %v4642
      %v4644 = vsel %vm204, %v4606, 0.0
      %v4645 = vadd.f32 %v4643, %v4644
      %v4646 = vsel %vm204, %v4607, 0.0
      %v4647 = vadd.f32 %v4645, %v4646
      %v4648 = vsel %vm204, %v4608, 0.0
      %v4649 = vadd.f32 %v4647, %v4648
      %v4650 = vsel %vm204, %v4609, 0.0
      %v4651 = vadd.f32 %v4649, %v4650
      %v4652 = vsel %vm204, %v4610, 0.0
      %v4653 = vadd.f32 %v4651, %v4652
      %v4654 = vsel %vm204, %v4611, 0.0
      %v4655 = vadd.f32 %v4653, %v4654
      %v4656 = vsel %vm204, %v4612, 0.0
      %v4657 = vadd.f32 %v4655, %v4656
      %v4658 = vsel %vm204, %v4613, 0.0
      %v4659 = vadd.f32 %v4657, %v4658
      %v4660 = vsel %vm204, %v4614, 0.0
      %v4661 = vadd.f32 %v4659, %v4660
      %v4662 = vsel %vm204, %v4615, 0.0
      %v4663 = vadd.f32 %v4661, %v4662
      %v4664 = vsel %vm204, %v4616, 0.0
      %v4665 = vadd.f32 %v4663, %v4664
      %v4666 = vsel %vm204, %v4617, 0.0
      %v4667 = vadd.f32 %v4665, %v4666
      %v4668 = vsel %vm204, %v4618, 0.0
      %v4669 = vadd.f32 %v4667, %v4668
      %v4670 = vsel %vm204, %v4619, 0.0
      %v4671 = vadd.f32 %v4669, %v4670
      %v4672 = vsel %vm204, %v4620, 0.0
      %v4673 = vadd.f32 %v4671, %v4672
      %v4674 = vsel %vm204, %v4621, 0.0
      %v4675 = vadd.f32 %v4673, %v4674
      %v4676 = vsel %vm204, %v4622, 0.0
      %v4677 = vadd.f32 %v4675, %v4676
      %v4678 = vsel %vm204, %v4623, 0.0
      %v4679 = vadd.f32 %v4677, %v4678
      %v4680 = vsel %vm204, %v4624, 0.0
      %v4681 = vadd.f32 %v4679, %v4680
      %v4682 = vsel %vm204, %v4625, 0.0
      %v4683 = vadd.f32 %v4681, %v4682
      %v4684 = vsel %vm204, %v4626, 0.0
      %v4685 = vadd.f32 %v4683, %v4684
      %v4686 = vsel %vm204, %v4627, 0.0
      %v4687 = vadd.f32 %v4685, %v4686
      %v4688 = vsel %vm204, %v4628, 0.0
      %v4689 = vadd.f32 %v4687, %v4688
      %v4690 = vsel %vm204, %v4629, 0.0
      %v4691 = vadd.f32 %v4689, %v4690
      %v4692 = vsel %vm204, %v4630, 0.0
      %v4693 = vadd.f32 %v4691, %v4692
      %v4694 = vrot.slane %v4693, 4
      %v4695 = vadd.f32 %v4693, %v4694
      %v4696 = vrot.slane %v4695, 2
      %v4697 = vadd.f32 %v4695, %v4696
      %v4698 = vrot.slane %v4697, 1
      %v4699 = vadd.f32 %v4697, %v4698
      %v4700 = vmul.f32 %v4699, 0.00390625
      %v4701 = vadd.f32 %v4700, 1e-05
      %v4702 = vrsqrt.pop %v4701
      %v4703 = vmul.f32 %v4567, %v4702
      %v4704 = vmul.f32 %v4568, %v4702
      %v4705 = vmul.f32 %v4569, %v4702
      %v4706 = vmul.f32 %v4570, %v4702
      %v4707 = vmul.f32 %v4571, %v4702
      %v4708 = vmul.f32 %v4572, %v4702
      %v4709 = vmul.f32 %v4573, %v4702
      %v4710 = vmul.f32 %v4574, %v4702
      %v4711 = vmul.f32 %v4575, %v4702
      %v4712 = vmul.f32 %v4576, %v4702
      %v4713 = vmul.f32 %v4577, %v4702
      %v4714 = vmul.f32 %v4578, %v4702
      %v4715 = vmul.f32 %v4579, %v4702
      %v4716 = vmul.f32 %v4580, %v4702
      %v4717 = vmul.f32 %v4581, %v4702
      %v4718 = vmul.f32 %v4582, %v4702
      %v4719 = vmul.f32 %v4583, %v4702
      %v4720 = vmul.f32 %v4584, %v4702
      %v4721 = vmul.f32 %v4585, %v4702
      %v4722 = vmul.f32 %v4586, %v4702
      %v4723 = vmul.f32 %v4587, %v4702
      %v4724 = vmul.f32 %v4588, %v4702
      %v4725 = vmul.f32 %v4589, %v4702
      %v4726 = vmul.f32 %v4590, %v4702
      %v4727 = vmul.f32 %v4591, %v4702
      %v4728 = vmul.f32 %v4592, %v4702
      %v4729 = vmul.f32 %v4593, %v4702
      %v4730 = vmul.f32 %v4594, %v4702
      %v4731 = vmul.f32 %v4595, %v4702
      %v4732 = vmul.f32 %v4596, %v4702
      %v4733 = vmul.f32 %v4597, %v4702
      %v4734 = vmul.f32 %v4598, %v4702
      %v4735 = vld [vmem:[%s165] sm:$0xff]
      %v4736 = vld [vmem:[%s165 + $0x8] sm:$0xff]
      %v4737 = vld [vmem:[%s165 + $0x10] sm:$0xff]
      %v4738 = vld [vmem:[%s165 + $0x18] sm:$0xff]
      %v4739 = vld [vmem:[%s165 + $0x20] sm:$0xff]
      %v4740 = vld [vmem:[%s165 + $0x28] sm:$0xff]
      %v4741 = vld [vmem:[%s165 + $0x30] sm:$0xff]
      %v4742 = vld [vmem:[%s165 + $0x38] sm:$0xff]
      %v4743 = vld [vmem:[%s165 + $0x40] sm:$0xff]
      %v4744 = vld [vmem:[%s165 + $0x48] sm:$0xff]
      %v4745 = vld [vmem:[%s165 + $0x50] sm:$0xff]
      %v4746 = vld [vmem:[%s165 + $0x58] sm:$0xff]
      %v4747 = vld [vmem:[%s165 + $0x60] sm:$0xff]
      %v4748 = vld [vmem:[%s165 + $0x68] sm:$0xff]
      %v4749 = vld [vmem:[%s165 + $0x70] sm:$0xff]
      %v4750 = vld [vmem:[%s165 + $0x78] sm:$0xff]
      %v4751 = vld [vmem:[%s165 + $0x80] sm:$0xff]
      %v4752 = vld [vmem:[%s165 + $0x88] sm:$0xff]
      %v4753 = vld [vmem:[%s165 + $0x90] sm:$0xff]
      %v4754 = vld [vmem:[%s165 + $0x98] sm:$0xff]
      %v4755 = vld [vmem:[%s165 + $0xa0] sm:$0xff]
      %v4756 = vld [vmem:[%s165 + $0xa8] sm:$0xff]
      %v4757 = vld [vmem:[%s165 + $0xb0] sm:$0xff]
      %v4758 = vld [vmem:[%s165 + $0xb8] sm:$0xff]
      %v4759 = vld [vmem:[%s165 + $0xc0] sm:$0xff]
      %v4760 = vld [vmem:[%s165 + $0xc8] sm:$0xff]
      %v4761 = vld [vmem:[%s165 + $0xd0] sm:$0xff]
      %v4762 = vld [vmem:[%s165 + $0xd8] sm:$0xff]
      %v4763 = vld [vmem:[%s165 + $0xe0] sm:$0xff]
      %v4764 = vld [vmem:[%s165 + $0xe8] sm:$0xff]
      %v4765 = vld [vmem:[%s165 + $0xf0] sm:$0xff]
      %v4766 = vld [vmem:[%s165 + $0xf8] sm:$0xff]
      %v4767 = vadd.f32 %v4735, %v4703
      %v4768 = vadd.f32 %v4736, %v4704
      %v4769 = vadd.f32 %v4737, %v4705
      %v4770 = vadd.f32 %v4738, %v4706
      %v4771 = vadd.f32 %v4739, %v4707
      %v4772 = vadd.f32 %v4740, %v4708
      %v4773 = vadd.f32 %v4741, %v4709
      %v4774 = vadd.f32 %v4742, %v4710
      %v4775 = vadd.f32 %v4743, %v4711
      %v4776 = vadd.f32 %v4744, %v4712
      %v4777 = vadd.f32 %v4745, %v4713
      %v4778 = vadd.f32 %v4746, %v4714
      %v4779 = vadd.f32 %v4747, %v4715
      %v4780 = vadd.f32 %v4748, %v4716
      %v4781 = vadd.f32 %v4749, %v4717
      %v4782 = vadd.f32 %v4750, %v4718
      %v4783 = vadd.f32 %v4751, %v4719
      %v4784 = vadd.f32 %v4752, %v4720
      %v4785 = vadd.f32 %v4753, %v4721
      %v4786 = vadd.f32 %v4754, %v4722
      %v4787 = vadd.f32 %v4755, %v4723
      %v4788 = vadd.f32 %v4756, %v4724
      %v4789 = vadd.f32 %v4757, %v4725
      %v4790 = vadd.f32 %v4758, %v4726
      %v4791 = vadd.f32 %v4759, %v4727
      %v4792 = vadd.f32 %v4760, %v4728
      %v4793 = vadd.f32 %v4761, %v4729
      %v4794 = vadd.f32 %v4762, %v4730
      %v4795 = vadd.f32 %v4763, %v4731
      %v4796 = vadd.f32 %v4764, %v4732
      %v4797 = vadd.f32 %v4765, %v4733
      %v4798 = vadd.f32 %v4766, %v4734
      %4799 = vst.msk [vmem:[%s170] sm:$0xff] %vm204, %v4767
      %4800 = vst.msk [vmem:[%s170 + $0x8] sm:$0xff] %vm204, %v4768
      %4801 = vst.msk [vmem:[%s170 + $0x10] sm:$0xff] %vm204, %v4769
      %4802 = vst.msk [vmem:[%s170 + $0x18] sm:$0xff] %vm204, %v4770
      %4803 = vst.msk [vmem:[%s170 + $0x20] sm:$0xff] %vm204, %v4771
      %4804 = vst.msk [vmem:[%s170 + $0x28] sm:$0xff] %vm204, %v4772
      %4805 = vst.msk [vmem:[%s170 + $0x30] sm:$0xff] %vm204, %v4773
      %4806 = vst.msk [vmem:[%s170 + $0x38] sm:$0xff] %vm204, %v4774
      %4807 = vst.msk [vmem:[%s170 + $0x40] sm:$0xff] %vm204, %v4775
      %4808 = vst.msk [vmem:[%s170 + $0x48] sm:$0xff] %vm204, %v4776
      %4809 = vst.msk [vmem:[%s170 + $0x50] sm:$0xff] %vm204, %v4777
      %4810 = vst.msk [vmem:[%s170 + $0x58] sm:$0xff] %vm204, %v4778
      %4811 = vst.msk [vmem:[%s170 + $0x60] sm:$0xff] %vm204, %v4779
      %4812 = vst.msk [vmem:[%s170 + $0x68] sm:$0xff] %vm204, %v4780
      %4813 = vst.msk [vmem:[%s170 + $0x70] sm:$0xff] %vm204, %v4781
      %4814 = vst.msk [vmem:[%s170 + $0x78] sm:$0xff] %vm204, %v4782
      %4815 = vst.msk [vmem:[%s170 + $0x80] sm:$0xff] %vm204, %v4783
      %4816 = vst.msk [vmem:[%s170 + $0x88] sm:$0xff] %vm204, %v4784
      %4817 = vst.msk [vmem:[%s170 + $0x90] sm:$0xff] %vm204, %v4785
      %4818 = vst.msk [vmem:[%s170 + $0x98] sm:$0xff] %vm204, %v4786
      %4819 = vst.msk [vmem:[%s170 + $0xa0] sm:$0xff] %vm204, %v4787
      %4820 = vst.msk [vmem:[%s170 + $0xa8] sm:$0xff] %vm204, %v4788
      %4821 = vst.msk [vmem:[%s170 + $0xb0] sm:$0xff] %vm204, %v4789
      %4822 = vst.msk [vmem:[%s170 + $0xb8] sm:$0xff] %vm204, %v4790
      %4823 = vst.msk [vmem:[%s170 + $0xc0] sm:$0xff] %vm204, %v4791
      %4824 = vst.msk [vmem:[%s170 + $0xc8] sm:$0xff] %vm204, %v4792
      %4825 = vst.msk [vmem:[%s170 + $0xd0] sm:$0xff] %vm204, %v4793
      %4826 = vst.msk [vmem:[%s170 + $0xd8] sm:$0xff] %vm204, %v4794
      %4827 = vst.msk [vmem:[%s170 + $0xe0] sm:$0xff] %vm204, %v4795
      %4828 = vst.msk [vmem:[%s170 + $0xe8] sm:$0xff] %vm204, %v4796
      %4829 = vst.msk [vmem:[%s170 + $0xf0] sm:$0xff] %vm204, %v4797
      %4830 = vst.msk [vmem:[%s170 + $0xf8] sm:$0xff] %vm204, %v4798
      %p4831 = scmp.lt.s32.totalorder %s14, 1
      %s4832 = scalar_select %p4831, %s14, 1
      %s4833 = smul.addr %s4832, 32
      %s4834 = smul.addr %s4833, 8
      %s4835 = scalar_lea.vmem %s3, %s4834
      // Predicated region
      $region33: #{tpu_custom_call.1} parent=31 // pred_check
        %p4836 = pneg %p100
      $region34: #{tpu_custom_call.1} parent=31 // pred_check_branch
        %4838 = sbr.rel (%p4836) target = $region36
      $region35: #{tpu_custom_call.1} parent=31 // pred_region
        _
      $region36: #{tpu_custom_call.1} parent=31 // pred_fallthru
        _
    $region32: #{tpu_custom_call.1} parent=5 // pred_fallthru
      _
    %p4839 = scmp.le.s32.totalorder 2, %s9
    // Predicated region
    $region37: #{tpu_custom_call.1} parent=5 // pred_check
      %p4840 = pneg %p4839
    $region38: #{tpu_custom_call.1} parent=5 // pred_check_branch
      %4842 = sbr.rel (%p4840) target = $region40
    $region39: #{tpu_custom_call.1} parent=5 // pred_region
      %s4843 = ssub.s32 %s9, 2
      // Predicated region
      $region41: #{tpu_custom_call.1} parent=39 // pred_check
        %p4844 = pneg %p106
      $region42: #{tpu_custom_call.1} parent=39 // pred_check_branch
        %4846 = sbr.rel (%p4844) target = $region44
      $region43: #{tpu_custom_call.1} parent=39 // pred_region
        %p4847 = scmp.lt.s32.totalorder %s15, 1
        %s4848 = scalar_select %p4847, %s15, 1
        %s4849 = smul.addr %s4848, 32
        %s4850 = smul.addr %s4849, 8
        %s4851 = scalar_lea.vmem %s3, %s4850
      $region44: #{tpu_custom_call.1} parent=39 // pred_fallthru
        _
    $region40: #{tpu_custom_call.1} parent=5 // pred_fallthru
      _
  $region6: #{tpu_custom_call.1} parent=0 // loop_footer
    %s13 = sadd.s32 1, %s9
  $region7: #{tpu_custom_call.1} parent=0 // loop_footer_branch
    %8 = sbr.rel target = $region3
  $region8: #{tpu_custom_call.1} parent=0 // loop_exit
    _

</llo_original>
